<compile_context>
chip_gen: v7x
topology: tpu7x:2x2x1
jax: 0.10.0
libtpu: 0.0.40
codegen_flags: <defaults>
</compile_context>

<pallas_src>
import math
from functools import partial

import jax
import jax.numpy as jnp
from jax.experimental import pallas as pl
from jax.experimental.pallas import tpu as pltpu

# ---------------- config ----------------
DIM = 32          # dim_emb
N_HEAD = 4        # n_head
HEAD_DIM = DIM // N_HEAD
DIM_FFN = 64      # dim_ffn
N_LAYER = 2       # n_layer
EPS = 1e-5
NEG_INF = -1e9


# ---------------- in-kernel helpers ----------------
def _layer_norm(h, g, b):
    # h is f32; statistics in f32.
    mu = jnp.mean(h, axis=-1, keepdims=True)
    var = jnp.mean(jnp.square(h - mu), axis=-1, keepdims=True)
    return (h - mu) * jax.lax.rsqrt(var + EPS) * g + b


def _gelu(h):
    # TODO(synk): PyTorch F.gelu default is the exact erf form; the tanh
    # approximation (~1e-3 divergence) is used since erf lowering on Mosaic
    # is not guaranteed on all generations.
    c = math.sqrt(2.0 / math.pi)
    return 0.5 * h * (1.0 + jnp.tanh(c * (h + 0.044715 * h * h * h)))


# ---------------- fused Pallas kernel ----------------
def fused_encoder_kernel(x_ref, pe_ref, bias_ref,
                         ln1g_ref, ln1b_ref,
                         wqkv_ref, bqkv_ref, wo_ref, bo_ref,
                         ln2g_ref, ln2b_ref,
                         w1_ref, b1_ref, w2_ref, b2_ref,
                         fng_ref, fnb_ref,
                         out_ref, *, n_layer, is_causal):
    """Whole forward (PE add + n_layer pre-norm layers + final norm) for a
    (BT, S, D) batch slab, kept resident in VMEM/vregs."""
    BT, S, D = x_ref.shape
    cdt = wqkv_ref.dtype                                  # compute dtype (f32 or bf16)

    # Residual stream kept in f32 for numerics.
    x = x_ref[...].astype(jnp.float32) + pe_ref[...].astype(jnp.float32)[None, :, :]
    xf = x.reshape(BT * S, D)                             # (BT*S, D) f32

    # Additive attention bias, materialized to (BT, S, S) ONCE (hoisted out of
    # the layer/head loops -- JAX does not CSE broadcast_in_dim).
    bias = bias_ref[...].astype(jnp.float32)              # (BT, 1, S) or (BT, S, S)
    if bias.shape[1] == 1:
        bias = jnp.broadcast_to(bias, (BT, S, S))
    if is_causal:
        row = jax.lax.broadcasted_iota(jnp.int32, (S, S), 0)
        col = jax.lax.broadcasted_iota(jnp.int32, (S, S), 1)
        bias = bias + jnp.where(col > row, NEG_INF, 0.0)[None, :, :]

    scale = 1.0 / math.sqrt(HEAD_DIM)

    for l in range(n_layer):                              # static layer loop
        # ---- self-attention block (pre-norm) ----
        xn = _layer_norm(xf, ln1g_ref[l], ln1b_ref[l])                    # f32 (BT*S, D)
        qkv = jnp.dot(xn.astype(cdt), wqkv_ref[l],
                      preferred_element_type=jnp.float32) + bqkv_ref[l]   # (BT*S, 3D) f32
        qkv = qkv.astype(cdt).reshape(BT, S, 3 * D)

        heads = []
        for h in range(N_HEAD):                           # static head loop; all ops batched over BT
            lo = h * HEAD_DIM
            qh = qkv[:, :, lo:lo + HEAD_DIM]                              # (BT, S, Dh)
            kh = qkv[:, :, D + lo:D + lo + HEAD_DIM]                      # (BT, S, Dh)
            vh = qkv[:, :, 2 * D + lo:2 * D + lo + HEAD_DIM]              # (BT, S, Dh)
            s = jnp.einsum('bqd,bkd->bqk', qh, kh,
                           preferred_element_type=jnp.float32) * scale + bias
            s = s - jnp.max(s, axis=-1, keepdims=True)
            p = jnp.exp(s)
            p = p * pl.reciprocal(jnp.sum(p, axis=-1, keepdims=True), approx=True)
            oh = jnp.einsum('bqk,bkd->bqd', p.astype(cdt), vh,
                            preferred_element_type=jnp.float32)           # (BT, S, Dh) f32
            heads.append(oh)

        # one lane-concat + ONE (BT*S, D) x (D, D) output projection
        o = jnp.concatenate(heads, axis=-1).reshape(BT * S, D)
        attn = jnp.dot(o.astype(cdt), wo_ref[l],
                       preferred_element_type=jnp.float32) + bo_ref[l]
        xf = xf + attn                                    # residual (dropout=0)

        # ---- feed-forward block (pre-norm) ----
        xn2 = _layer_norm(xf, ln2g_ref[l], ln2b_ref[l])
        hdn = _gelu(jnp.dot(xn2.astype(cdt), w1_ref[l],
                            preferred_element_type=jnp.float32) + b1_ref[l])
        xf = xf + jnp.dot(hdn.astype(cdt), w2_ref[l],
                          preferred_element_type=jnp.float32) + b2_ref[l]

    # final LayerNorm (norm_first=True) -- single store site per program
    y = _layer_norm(xf, fng_ref[...], fnb_ref[...])
    out_ref[...] = y.reshape(BT, S, D).astype(out_ref.dtype)


# ---------------- glue: sinusoidal PE ----------------
def sinusoidal_pe(slen, dim):
    pos = jnp.arange(slen, dtype=jnp.float32)[:, None]
    i = jnp.arange(0, dim, 2, dtype=jnp.float32)
    div = jnp.exp(-math.log(10000.0) * i / dim)
    pe = jnp.zeros((slen, dim), jnp.float32)
    pe = pe.at[:, 0::2].set(jnp.sin(pos * div))
    pe = pe.at[:, 1::2].set(jnp.cos(pos * div))
    return pe


# ---------------- wrapper helpers ----------------
def _compute_dtype():
    """bf16 on v6e/v7x (native bf16 VPU/EUP/MXU), f32 otherwise (v5e & older)."""
    try:
        kind = jax.devices()[0].device_kind.lower()
    except Exception:
        return jnp.float32
    if 'v6' in kind or 'v7' in kind:
        return jnp.bfloat16
    return jnp.float32


def _pick_bt(B):
    """Batch tile: big enough to fill MXU rows (BT*S ~ 128 at S=8), but keep
    >= 2 grid steps so both v7x TensorCores get work."""
    bt = min(16, B)
    if B > 1 and -(-B // bt) < 2:
        bt = -(-B // 2)
    return max(1, bt)


# ---------------- forward wrapper (one pallas_call) ----------------
def transformer_symbol_encoder(tokens, params, mask=None,
                               src_key_padding_mask=None, is_causal=False):
    """tokens: (B, S) int32 -> (B, S, DIM) float32"""
    B, S = tokens.shape
    cdt = _compute_dtype()

    # word embedding lookup (padding row of the table is zero) -- XLA glue
    x = jnp.take(params['emb'], tokens, axis=0).astype(cdt)         # (B, S, D)
    pe = sinusoidal_pe(S, DIM).astype(cdt)                          # (S, D), added in-kernel

    # Small additive bias (kept f32): (B, 1, S) unless a full (B, S, S) mask is given.
    if src_key_padding_mask is not None:
        bias = jnp.where(src_key_padding_mask, NEG_INF, 0.0).astype(jnp.float32)[:, None, :]
    else:
        bias = jnp.zeros((B, 1, S), jnp.float32)
    if mask is not None:
        # TODO(synk): PyTorch `mask` may be bool or float; treated as additive float here.
        bias = bias + mask.astype(jnp.float32)                      # -> (B, S, S)
    kb = bias.shape[1]

    # batch blocking: pad B up to a multiple of BT
    BT = _pick_bt(B)
    Bp = pl.cdiv(B, BT) * BT
    if Bp != B:
        x = jnp.pad(x, ((0, Bp - B), (0, 0), (0, 0)))
        bias = jnp.pad(bias, ((0, Bp - B), (0, 0), (0, 0)))

    # matmul weights in compute dtype; biases / LN params stay f32
    weight_list = [params['ln1_g'], params['ln1_b'],
                   params['wqkv'].astype(cdt), params['bqkv'],
                   params['wo'].astype(cdt), params['bo'],
                   params['ln2_g'], params['ln2_b'],
                   params['w1'].astype(cdt), params['b1'],
                   params['w2'].astype(cdt), params['b2'],
                   params['final_g'], params['final_b']]

    in_specs = [
        pl.BlockSpec((BT, S, DIM), lambda b: (b, 0, 0)),            # x: (BT, S, D) slab
        pl.BlockSpec((S, DIM), lambda b: (0, 0)),                   # positional encoding
        pl.BlockSpec((BT, kb, S), lambda b: (b, 0, 0)),             # additive bias
    ]
    # replicated weights: full-shape blocks, constant index maps (DMA'd once)
    in_specs += [pl.BlockSpec(w.shape, (lambda b, n=w.ndim: (0,) * n))
                 for w in weight_list]

    # advisory cost estimate so XLA schedules the custom call sensibly
    flops = int(2 * Bp * S * N_LAYER
                * (DIM * 3 * DIM + 2 * S * DIM + DIM * DIM + 2 * DIM * DIM_FFN))
    transcendentals = int(Bp * S * N_LAYER * (N_HEAD * S + DIM_FFN))
    weight_bytes = sum(int(w.size) * w.dtype.itemsize for w in weight_list)
    bytes_accessed = (int(x.size) * x.dtype.itemsize + int(pe.size) * pe.dtype.itemsize
                      + int(bias.size) * 4 + int(Bp * S * DIM) * 4 + weight_bytes)
    ce = pl.CostEstimate(flops=flops, transcendentals=transcendentals,
                         bytes_accessed=bytes_accessed)

    kernel = partial(fused_encoder_kernel, n_layer=N_LAYER, is_causal=bool(is_causal))
    out = pl.pallas_call(
        kernel,
        out_shape=jax.ShapeDtypeStruct((Bp, S, DIM), jnp.float32),
        grid=(Bp // BT,),
        in_specs=in_specs,
        out_specs=pl.BlockSpec((BT, S, DIM), lambda b: (b, 0, 0)),
        compiler_params=pltpu.CompilerParams(dimension_semantics=("parallel",)),
        cost_estimate=ce,
    )(x, pe, bias, *weight_list)
    return out[:B]


# ---------------- deterministic parameter init (stacked per-layer) ----------------
def init_params(key, n_words, pad_index):
    keys = jax.random.split(key, 1 + 6 * N_LAYER)
    emb = 0.02 * jax.random.normal(keys[0], (n_words, DIM), jnp.float32)
    emb = emb.at[pad_index].set(0.0)   # Embedding(padding_idx=pad) -> zero row

    def lin(k, fin, fout):
        return (1.0 / math.sqrt(fin)) * jax.random.normal(k, (fin, fout), jnp.float32)

    wq, wk, wv, wo, w1, w2 = [], [], [], [], [], []
    for l in range(N_LAYER):
        lk = keys[1 + 6 * l: 1 + 6 * (l + 1)]
        wq.append(lin(lk[0], DIM, DIM))
        wk.append(lin(lk[1], DIM, DIM))
        wv.append(lin(lk[2], DIM, DIM))
        wo.append(lin(lk[3], DIM, DIM))
        w1.append(lin(lk[4], DIM, DIM_FFN))
        w2.append(lin(lk[5], DIM_FFN, DIM))

    wqkv = jnp.concatenate([jnp.stack(wq), jnp.stack(wk), jnp.stack(wv)], axis=-1)  # (L, D, 3D)
    wo = jnp.stack(wo)                                                              # (L, D, D)

    return dict(
        emb=emb,
        ln1_g=jnp.ones((N_LAYER, 1, DIM), jnp.float32),
        ln1_b=jnp.zeros((N_LAYER, 1, DIM), jnp.float32),
        wqkv=wqkv,
        bqkv=jnp.zeros((N_LAYER, 1, 3 * DIM), jnp.float32),
        wo=wo,
        bo=jnp.zeros((N_LAYER, 1, DIM), jnp.float32),
        ln2_g=jnp.ones((N_LAYER, 1, DIM), jnp.float32),
        ln2_b=jnp.zeros((N_LAYER, 1, DIM), jnp.float32),
        w1=jnp.stack(w1),
        b1=jnp.zeros((N_LAYER, 1, DIM_FFN), jnp.float32),
        w2=jnp.stack(w2),
        b2=jnp.zeros((N_LAYER, 1, DIM), jnp.float32),
        final_g=jnp.ones((1, DIM), jnp.float32),
        final_b=jnp.zeros((1, DIM), jnp.float32),
    )


# ---------------- demo ----------------
if __name__ == "__main__":
    # tiny symbol vocabulary, like id2word in the module
    symbols = ['<BOS>', '<EOS>', '<PAD>', 'a', 'b', 'c', '+', '*', 'x', 'y',
               '0', '1', '2', '3', '4', '5']
    id2word = {i: s for i, s in enumerate(symbols)}
    word2id = {s: i for i, s in id2word.items()}
    n_words = len(id2word)
    bos_index, eos_index, pad_index = word2id['<BOS>'], word2id['<EOS>'], word2id['<PAD>']

    key = jax.random.PRNGKey(0)
    kp, kt = jax.random.split(key)
    params = init_params(kp, n_words, pad_index)

    B, S = 2, 8
    tokens = jax.random.randint(kt, (B, S), 3, n_words).astype(jnp.int32)
    tokens = tokens.at[:, 0].set(bos_index)
    tokens = tokens.at[:, -1].set(eos_index)
    tokens = tokens.at[1, -2:].set(pad_index)          # padded tail in batch 1
    src_key_padding_mask = tokens == pad_index         # True -> ignored

    out = transformer_symbol_encoder(tokens, params,
                                     src_key_padding_mask=src_key_padding_mask,
                                     is_causal=False)
    out = jax.block_until_ready(out)
    assert out.shape == (B, S, DIM)
    assert bool(jnp.isfinite(out).all())
    print("KERNEL_OK")
</pallas_src>

<mosaic_0001>
module attributes {stable_mosaic.version = 11 : i64} {
  func.func @fused_encoder_kernel(%arg0: i32, %arg1: memref<1x8x32xf32, #tpu.memory_space<vmem>>, %arg2: memref<8x32xf32, #tpu.memory_space<vmem>>, %arg3: memref<1x1x8xf32, #tpu.memory_space<vmem>>, %arg4: memref<2x1x32xf32, #tpu.memory_space<vmem>>, %arg5: memref<2x1x32xf32, #tpu.memory_space<vmem>>, %arg6: memref<2x32x96xf32, #tpu.memory_space<vmem>>, %arg7: memref<2x1x96xf32, #tpu.memory_space<vmem>>, %arg8: memref<2x32x32xf32, #tpu.memory_space<vmem>>, %arg9: memref<2x1x32xf32, #tpu.memory_space<vmem>>, %arg10: memref<2x1x32xf32, #tpu.memory_space<vmem>>, %arg11: memref<2x1x32xf32, #tpu.memory_space<vmem>>, %arg12: memref<2x32x64xf32, #tpu.memory_space<vmem>>, %arg13: memref<2x1x64xf32, #tpu.memory_space<vmem>>, %arg14: memref<2x64x32xf32, #tpu.memory_space<vmem>>, %arg15: memref<2x1x32xf32, #tpu.memory_space<vmem>>, %arg16: memref<1x32xf32, #tpu.memory_space<vmem>>, %arg17: memref<1x32xf32, #tpu.memory_space<vmem>>, %arg18: memref<1x8x32xf32, #tpu.memory_space<vmem>>) attributes {dimension_semantics = [#tpu.dimension_semantics<parallel>], iteration_bounds = array<i64: 2>, scalar_prefetch = 0 : i64, scratch_operands = 0 : i64, tpu.core_type = #tpu.core_type<tc>, window_params = [{transform_indices = @transform_0, window_bounds = array<i64: 1, 8, 32>}, {pipeline_mode = #tpu.pipeline_mode<synchronous>, transform_indices = @transform_1, window_bounds = array<i64: 8, 32>}, {transform_indices = @transform_2, window_bounds = array<i64: 1, 1, 8>}, {pipeline_mode = #tpu.pipeline_mode<synchronous>, transform_indices = @transform_3, window_bounds = array<i64: 2, 1, 32>}, {pipeline_mode = #tpu.pipeline_mode<synchronous>, transform_indices = @transform_4, window_bounds = array<i64: 2, 1, 32>}, {pipeline_mode = #tpu.pipeline_mode<synchronous>, transform_indices = @transform_5, window_bounds = array<i64: 2, 32, 96>}, {pipeline_mode = #tpu.pipeline_mode<synchronous>, transform_indices = @transform_6, window_bounds = array<i64: 2, 1, 96>}, {pipeline_mode = #tpu.pipeline_mode<synchronous>, transform_indices = @transform_7, window_bounds = array<i64: 2, 32, 32>}, {pipeline_mode = #tpu.pipeline_mode<synchronous>, transform_indices = @transform_8, window_bounds = array<i64: 2, 1, 32>}, {pipeline_mode = #tpu.pipeline_mode<synchronous>, transform_indices = @transform_9, window_bounds = array<i64: 2, 1, 32>}, {pipeline_mode = #tpu.pipeline_mode<synchronous>, transform_indices = @transform_10, window_bounds = array<i64: 2, 1, 32>}, {pipeline_mode = #tpu.pipeline_mode<synchronous>, transform_indices = @transform_11, window_bounds = array<i64: 2, 32, 64>}, {pipeline_mode = #tpu.pipeline_mode<synchronous>, transform_indices = @transform_12, window_bounds = array<i64: 2, 1, 64>}, {pipeline_mode = #tpu.pipeline_mode<synchronous>, transform_indices = @transform_13, window_bounds = array<i64: 2, 64, 32>}, {pipeline_mode = #tpu.pipeline_mode<synchronous>, transform_indices = @transform_14, window_bounds = array<i64: 2, 1, 32>}, {pipeline_mode = #tpu.pipeline_mode<synchronous>, transform_indices = @transform_15, window_bounds = array<i64: 1, 32>}, {pipeline_mode = #tpu.pipeline_mode<synchronous>, transform_indices = @transform_16, window_bounds = array<i64: 1, 32>}, {transform_indices = @transform_17, window_bounds = array<i64: 1, 8, 32>}]} {
    %c0 = arith.constant 0 : index
    %c0_0 = arith.constant 0 : index
    %c0_1 = arith.constant 0 : index
    %0 = vector.load %arg1[%c0, %c0_0, %c0_1] : memref<1x8x32xf32, #tpu.memory_space<vmem>>, vector<1x8x32xf32>
    %c0_2 = arith.constant 0 : index
    %c0_3 = arith.constant 0 : index
    %1 = vector.load %arg2[%c0_2, %c0_3] : memref<8x32xf32, #tpu.memory_space<vmem>>, vector<8x32xf32>
    %2 = vector.shape_cast %1 : vector<8x32xf32> to vector<1x8x32xf32>
    %3 = arith.addf %0, %2 : vector<1x8x32xf32>
    %4 = vector.shape_cast %3 : vector<1x8x32xf32> to vector<8x32xf32>
    %c0_4 = arith.constant 0 : index
    %c0_5 = arith.constant 0 : index
    %c0_6 = arith.constant 0 : index
    %5 = vector.load %arg3[%c0_4, %c0_5, %c0_6] : memref<1x1x8xf32, #tpu.memory_space<vmem>>, vector<1x1x8xf32>
    %6 = vector.shape_cast %5 : vector<1x1x8xf32> to vector<1x1x8xf32>
    %7 = vector.broadcast %6 : vector<1x1x8xf32> to vector<1x8x8xf32>
    %c0_7 = arith.constant 0 : index
    %c0_8 = arith.constant 0 : index
    %c0_9 = arith.constant 0 : index
    %8 = vector.load %arg4[%c0_7, %c0_8, %c0_9] : memref<2x1x32xf32, #tpu.memory_space<vmem>>, vector<1x1x32xf32>
    %9 = vector.shape_cast %8 : vector<1x1x32xf32> to vector<1x32xf32>
    %c0_10 = arith.constant 0 : index
    %c0_11 = arith.constant 0 : index
    %c0_12 = arith.constant 0 : index
    %10 = vector.load %arg5[%c0_10, %c0_11, %c0_12] : memref<2x1x32xf32, #tpu.memory_space<vmem>>, vector<1x1x32xf32>
    %11 = vector.shape_cast %10 : vector<1x1x32xf32> to vector<1x32xf32>
    %cst = arith.constant dense<0.000000e+00> : vector<8xf32>
    %12 = vector.multi_reduction <add>, %4, %cst [1] : vector<8x32xf32> to vector<8xf32>
    %13 = vector.shape_cast %12 : vector<8xf32> to vector<8x1xf32>
    %cst_13 = arith.constant 3.200000e+01 : f32
    %14 = vector.broadcast %cst_13 : f32 to vector<8x1xf32>
    %15 = arith.divf %13, %14 : vector<8x1xf32>
    %16 = vector.broadcast %15 : vector<8x1xf32> to vector<8x32xf32>
    %17 = arith.subf %4, %16 : vector<8x32xf32>
    %18 = arith.mulf %17, %17 : vector<8x32xf32>
    %cst_14 = arith.constant dense<0.000000e+00> : vector<8xf32>
    %19 = vector.multi_reduction <add>, %18, %cst_14 [1] : vector<8x32xf32> to vector<8xf32>
    %20 = vector.shape_cast %19 : vector<8xf32> to vector<8x1xf32>
    %cst_15 = arith.constant 3.200000e+01 : f32
    %21 = vector.broadcast %cst_15 : f32 to vector<8x1xf32>
    %22 = arith.divf %20, %21 : vector<8x1xf32>
    %23 = vector.broadcast %15 : vector<8x1xf32> to vector<8x32xf32>
    %24 = arith.subf %4, %23 : vector<8x32xf32>
    %cst_16 = arith.constant 9.99999974E-6 : f32
    %25 = vector.broadcast %cst_16 : f32 to vector<8x1xf32>
    %26 = arith.addf %22, %25 : vector<8x1xf32>
    %27 = math.rsqrt %26 : vector<8x1xf32>
    %28 = vector.broadcast %27 : vector<8x1xf32> to vector<8x32xf32>
    %29 = arith.mulf %24, %28 : vector<8x32xf32>
    %30 = vector.broadcast %9 : vector<1x32xf32> to vector<8x32xf32>
    %31 = arith.mulf %29, %30 : vector<8x32xf32>
    %32 = vector.broadcast %11 : vector<1x32xf32> to vector<8x32xf32>
    %33 = arith.addf %31, %32 : vector<8x32xf32>
    %c0_17 = arith.constant 0 : index
    %c0_18 = arith.constant 0 : index
    %c0_19 = arith.constant 0 : index
    %34 = vector.load %arg6[%c0_17, %c0_18, %c0_19] : memref<2x32x96xf32, #tpu.memory_space<vmem>>, vector<1x32x96xf32>
    %35 = vector.shape_cast %34 : vector<1x32x96xf32> to vector<32x96xf32>
    %cst_20 = arith.constant dense<0.000000e+00> : vector<8x96xf32>
    %36 = tpu.matmul %33, %35, %cst_20 {dimension_numbers = #tpu.dot_dimension_numbers<[1], [0], [0], [1], [0, 0, 1, 1], [], []>} : vector<8x32xf32>, vector<32x96xf32>, vector<8x96xf32> -> vector<8x96xf32>
    %c0_21 = arith.constant 0 : index
    %c0_22 = arith.constant 0 : index
    %c0_23 = arith.constant 0 : index
    %37 = vector.load %arg7[%c0_21, %c0_22, %c0_23] : memref<2x1x96xf32, #tpu.memory_space<vmem>>, vector<1x1x96xf32>
    %38 = vector.shape_cast %37 : vector<1x1x96xf32> to vector<1x96xf32>
    %39 = vector.broadcast %38 : vector<1x96xf32> to vector<8x96xf32>
    %40 = arith.addf %36, %39 : vector<8x96xf32>
    %41 = vector.shape_cast %40 : vector<8x96xf32> to vector<1x8x96xf32>
    %42 = vector.extract_strided_slice %41 {offsets = [0, 0, 0], sizes = [1, 8, 8], strides = [1, 1, 1]} : vector<1x8x96xf32> to vector<1x8x8xf32>
    %43 = vector.extract_strided_slice %41 {offsets = [0, 0, 32], sizes = [1, 8, 8], strides = [1, 1, 1]} : vector<1x8x96xf32> to vector<1x8x8xf32>
    %44 = vector.extract_strided_slice %41 {offsets = [0, 0, 64], sizes = [1, 8, 8], strides = [1, 1, 1]} : vector<1x8x96xf32> to vector<1x8x8xf32>
    "tpu.trace_start"() <{level = 10 : i32, message = "bqd,bkd->bqk"}> : () -> ()
    %cst_24 = arith.constant dense<0.000000e+00> : vector<1x8x8xf32>
    %45 = tpu.matmul %42, %43, %cst_24 {dimension_numbers = #tpu.dot_dimension_numbers<[2], [2], [1], [1], [0, 0, 0, 1, 1, 1], [0], [0]>} : vector<1x8x8xf32>, vector<1x8x8xf32>, vector<1x8x8xf32> -> vector<1x8x8xf32>
    "tpu.trace_stop"() : () -> ()
    %cst_25 = arith.constant 0.353553385 : f32
    %46 = vector.broadcast %cst_25 : f32 to vector<1x8x8xf32>
    %47 = arith.mulf %45, %46 : vector<1x8x8xf32>
    %48 = arith.addf %47, %7 : vector<1x8x8xf32>
    %cst_26 = arith.constant dense<0xFF800000> : vector<1x8xf32>
    %49 = vector.multi_reduction <maximumf>, %48, %cst_26 [2] : vector<1x8x8xf32> to vector<1x8xf32>
    %50 = vector.shape_cast %49 : vector<1x8xf32> to vector<1x8x1xf32>
    %51 = vector.broadcast %50 : vector<1x8x1xf32> to vector<1x8x8xf32>
    %52 = arith.subf %48, %51 : vector<1x8x8xf32>
    %53 = math.exp %52 : vector<1x8x8xf32>
    %cst_27 = arith.constant dense<0.000000e+00> : vector<1x8xf32>
    %54 = vector.multi_reduction <add>, %53, %cst_27 [2] : vector<1x8x8xf32> to vector<1x8xf32>
    %55 = vector.shape_cast %54 : vector<1x8xf32> to vector<1x8x1xf32>
    %56 = tpu.reciprocal %55 {approx = true} : vector<1x8x1xf32> -> vector<1x8x1xf32>
    %57 = vector.broadcast %56 : vector<1x8x1xf32> to vector<1x8x8xf32>
    %58 = arith.mulf %53, %57 : vector<1x8x8xf32>
    "tpu.trace_start"() <{level = 10 : i32, message = "bqk,bkd->bqd"}> : () -> ()
    %cst_28 = arith.constant dense<0.000000e+00> : vector<1x8x8xf32>
    %59 = tpu.matmul %58, %44, %cst_28 {dimension_numbers = #tpu.dot_dimension_numbers<[2], [1], [1], [2], [0, 0, 0, 1, 1, 2], [0], [0]>} : vector<1x8x8xf32>, vector<1x8x8xf32>, vector<1x8x8xf32> -> vector<1x8x8xf32>
    "tpu.trace_stop"() : () -> ()
    %60 = vector.extract_strided_slice %41 {offsets = [0, 0, 8], sizes = [1, 8, 8], strides = [1, 1, 1]} : vector<1x8x96xf32> to vector<1x8x8xf32>
    %61 = vector.extract_strided_slice %41 {offsets = [0, 0, 40], sizes = [1, 8, 8], strides = [1, 1, 1]} : vector<1x8x96xf32> to vector<1x8x8xf32>
    %62 = vector.extract_strided_slice %41 {offsets = [0, 0, 72], sizes = [1, 8, 8], strides = [1, 1, 1]} : vector<1x8x96xf32> to vector<1x8x8xf32>
    "tpu.trace_start"() <{level = 10 : i32, message = "bqd,bkd->bqk"}> : () -> ()
    %cst_29 = arith.constant dense<0.000000e+00> : vector<1x8x8xf32>
    %63 = tpu.matmul %60, %61, %cst_29 {dimension_numbers = #tpu.dot_dimension_numbers<[2], [2], [1], [1], [0, 0, 0, 1, 1, 1], [0], [0]>} : vector<1x8x8xf32>, vector<1x8x8xf32>, vector<1x8x8xf32> -> vector<1x8x8xf32>
    "tpu.trace_stop"() : () -> ()
    %cst_30 = arith.constant 0.353553385 : f32
    %64 = vector.broadcast %cst_30 : f32 to vector<1x8x8xf32>
    %65 = arith.mulf %63, %64 : vector<1x8x8xf32>
    %66 = arith.addf %65, %7 : vector<1x8x8xf32>
    %cst_31 = arith.constant dense<0xFF800000> : vector<1x8xf32>
    %67 = vector.multi_reduction <maximumf>, %66, %cst_31 [2] : vector<1x8x8xf32> to vector<1x8xf32>
    %68 = vector.shape_cast %67 : vector<1x8xf32> to vector<1x8x1xf32>
    %69 = vector.broadcast %68 : vector<1x8x1xf32> to vector<1x8x8xf32>
    %70 = arith.subf %66, %69 : vector<1x8x8xf32>
    %71 = math.exp %70 : vector<1x8x8xf32>
    %cst_32 = arith.constant dense<0.000000e+00> : vector<1x8xf32>
    %72 = vector.multi_reduction <add>, %71, %cst_32 [2] : vector<1x8x8xf32> to vector<1x8xf32>
    %73 = vector.shape_cast %72 : vector<1x8xf32> to vector<1x8x1xf32>
    %74 = tpu.reciprocal %73 {approx = true} : vector<1x8x1xf32> -> vector<1x8x1xf32>
    %75 = vector.broadcast %74 : vector<1x8x1xf32> to vector<1x8x8xf32>
    %76 = arith.mulf %71, %75 : vector<1x8x8xf32>
    "tpu.trace_start"() <{level = 10 : i32, message = "bqk,bkd->bqd"}> : () -> ()
    %cst_33 = arith.constant dense<0.000000e+00> : vector<1x8x8xf32>
    %77 = tpu.matmul %76, %62, %cst_33 {dimension_numbers = #tpu.dot_dimension_numbers<[2], [1], [1], [2], [0, 0, 0, 1, 1, 2], [0], [0]>} : vector<1x8x8xf32>, vector<1x8x8xf32>, vector<1x8x8xf32> -> vector<1x8x8xf32>
    "tpu.trace_stop"() : () -> ()
    %78 = vector.extract_strided_slice %41 {offsets = [0, 0, 16], sizes = [1, 8, 8], strides = [1, 1, 1]} : vector<1x8x96xf32> to vector<1x8x8xf32>
    %79 = vector.extract_strided_slice %41 {offsets = [0, 0, 48], sizes = [1, 8, 8], strides = [1, 1, 1]} : vector<1x8x96xf32> to vector<1x8x8xf32>
    %80 = vector.extract_strided_slice %41 {offsets = [0, 0, 80], sizes = [1, 8, 8], strides = [1, 1, 1]} : vector<1x8x96xf32> to vector<1x8x8xf32>
    "tpu.trace_start"() <{level = 10 : i32, message = "bqd,bkd->bqk"}> : () -> ()
    %cst_34 = arith.constant dense<0.000000e+00> : vector<1x8x8xf32>
    %81 = tpu.matmul %78, %79, %cst_34 {dimension_numbers = #tpu.dot_dimension_numbers<[2], [2], [1], [1], [0, 0, 0, 1, 1, 1], [0], [0]>} : vector<1x8x8xf32>, vector<1x8x8xf32>, vector<1x8x8xf32> -> vector<1x8x8xf32>
    "tpu.trace_stop"() : () -> ()
    %cst_35 = arith.constant 0.353553385 : f32
    %82 = vector.broadcast %cst_35 : f32 to vector<1x8x8xf32>
    %83 = arith.mulf %81, %82 : vector<1x8x8xf32>
    %84 = arith.addf %83, %7 : vector<1x8x8xf32>
    %cst_36 = arith.constant dense<0xFF800000> : vector<1x8xf32>
    %85 = vector.multi_reduction <maximumf>, %84, %cst_36 [2] : vector<1x8x8xf32> to vector<1x8xf32>
    %86 = vector.shape_cast %85 : vector<1x8xf32> to vector<1x8x1xf32>
    %87 = vector.broadcast %86 : vector<1x8x1xf32> to vector<1x8x8xf32>
    %88 = arith.subf %84, %87 : vector<1x8x8xf32>
    %89 = math.exp %88 : vector<1x8x8xf32>
    %cst_37 = arith.constant dense<0.000000e+00> : vector<1x8xf32>
    %90 = vector.multi_reduction <add>, %89, %cst_37 [2] : vector<1x8x8xf32> to vector<1x8xf32>
    %91 = vector.shape_cast %90 : vector<1x8xf32> to vector<1x8x1xf32>
    %92 = tpu.reciprocal %91 {approx = true} : vector<1x8x1xf32> -> vector<1x8x1xf32>
    %93 = vector.broadcast %92 : vector<1x8x1xf32> to vector<1x8x8xf32>
    %94 = arith.mulf %89, %93 : vector<1x8x8xf32>
    "tpu.trace_start"() <{level = 10 : i32, message = "bqk,bkd->bqd"}> : () -> ()
    %cst_38 = arith.constant dense<0.000000e+00> : vector<1x8x8xf32>
    %95 = tpu.matmul %94, %80, %cst_38 {dimension_numbers = #tpu.dot_dimension_numbers<[2], [1], [1], [2], [0, 0, 0, 1, 1, 2], [0], [0]>} : vector<1x8x8xf32>, vector<1x8x8xf32>, vector<1x8x8xf32> -> vector<1x8x8xf32>
    "tpu.trace_stop"() : () -> ()
    %96 = vector.extract_strided_slice %41 {offsets = [0, 0, 24], sizes = [1, 8, 8], strides = [1, 1, 1]} : vector<1x8x96xf32> to vector<1x8x8xf32>
    %97 = vector.extract_strided_slice %41 {offsets = [0, 0, 56], sizes = [1, 8, 8], strides = [1, 1, 1]} : vector<1x8x96xf32> to vector<1x8x8xf32>
    %98 = vector.extract_strided_slice %41 {offsets = [0, 0, 88], sizes = [1, 8, 8], strides = [1, 1, 1]} : vector<1x8x96xf32> to vector<1x8x8xf32>
    "tpu.trace_start"() <{level = 10 : i32, message = "bqd,bkd->bqk"}> : () -> ()
    %cst_39 = arith.constant dense<0.000000e+00> : vector<1x8x8xf32>
    %99 = tpu.matmul %96, %97, %cst_39 {dimension_numbers = #tpu.dot_dimension_numbers<[2], [2], [1], [1], [0, 0, 0, 1, 1, 1], [0], [0]>} : vector<1x8x8xf32>, vector<1x8x8xf32>, vector<1x8x8xf32> -> vector<1x8x8xf32>
    "tpu.trace_stop"() : () -> ()
    %cst_40 = arith.constant 0.353553385 : f32
    %100 = vector.broadcast %cst_40 : f32 to vector<1x8x8xf32>
    %101 = arith.mulf %99, %100 : vector<1x8x8xf32>
    %102 = arith.addf %101, %7 : vector<1x8x8xf32>
    %cst_41 = arith.constant dense<0xFF800000> : vector<1x8xf32>
    %103 = vector.multi_reduction <maximumf>, %102, %cst_41 [2] : vector<1x8x8xf32> to vector<1x8xf32>
    %104 = vector.shape_cast %103 : vector<1x8xf32> to vector<1x8x1xf32>
    %105 = vector.broadcast %104 : vector<1x8x1xf32> to vector<1x8x8xf32>
    %106 = arith.subf %102, %105 : vector<1x8x8xf32>
    %107 = math.exp %106 : vector<1x8x8xf32>
    %cst_42 = arith.constant dense<0.000000e+00> : vector<1x8xf32>
    %108 = vector.multi_reduction <add>, %107, %cst_42 [2] : vector<1x8x8xf32> to vector<1x8xf32>
    %109 = vector.shape_cast %108 : vector<1x8xf32> to vector<1x8x1xf32>
    %110 = tpu.reciprocal %109 {approx = true} : vector<1x8x1xf32> -> vector<1x8x1xf32>
    %111 = vector.broadcast %110 : vector<1x8x1xf32> to vector<1x8x8xf32>
    %112 = arith.mulf %107, %111 : vector<1x8x8xf32>
    "tpu.trace_start"() <{level = 10 : i32, message = "bqk,bkd->bqd"}> : () -> ()
    %cst_43 = arith.constant dense<0.000000e+00> : vector<1x8x8xf32>
    %113 = tpu.matmul %112, %98, %cst_43 {dimension_numbers = #tpu.dot_dimension_numbers<[2], [1], [1], [2], [0, 0, 0, 1, 1, 2], [0], [0]>} : vector<1x8x8xf32>, vector<1x8x8xf32>, vector<1x8x8xf32> -> vector<1x8x8xf32>
    "tpu.trace_stop"() : () -> ()
    %114 = tpu.concatenate %59, %77, %95, %113 in 2 : vector<1x8x8xf32>, vector<1x8x8xf32>, vector<1x8x8xf32>, vector<1x8x8xf32> -> vector<1x8x32xf32>
    %115 = vector.shape_cast %114 : vector<1x8x32xf32> to vector<8x32xf32>
    %c0_44 = arith.constant 0 : index
    %c0_45 = arith.constant 0 : index
    %c0_46 = arith.constant 0 : index
    %116 = vector.load %arg8[%c0_44, %c0_45, %c0_46] : memref<2x32x32xf32, #tpu.memory_space<vmem>>, vector<1x32x32xf32>
    %117 = vector.shape_cast %116 : vector<1x32x32xf32> to vector<32x32xf32>
    %cst_47 = arith.constant dense<0.000000e+00> : vector<8x32xf32>
    %118 = tpu.matmul %115, %117, %cst_47 {dimension_numbers = #tpu.dot_dimension_numbers<[1], [0], [0], [1], [0, 0, 1, 1], [], []>} : vector<8x32xf32>, vector<32x32xf32>, vector<8x32xf32> -> vector<8x32xf32>
    %c0_48 = arith.constant 0 : index
    %c0_49 = arith.constant 0 : index
    %c0_50 = arith.constant 0 : index
    %119 = vector.load %arg9[%c0_48, %c0_49, %c0_50] : memref<2x1x32xf32, #tpu.memory_space<vmem>>, vector<1x1x32xf32>
    %120 = vector.shape_cast %119 : vector<1x1x32xf32> to vector<1x32xf32>
    %121 = vector.broadcast %120 : vector<1x32xf32> to vector<8x32xf32>
    %122 = arith.addf %118, %121 : vector<8x32xf32>
    %123 = arith.addf %4, %122 : vector<8x32xf32>
    %c0_51 = arith.constant 0 : index
    %c0_52 = arith.constant 0 : index
    %c0_53 = arith.constant 0 : index
    %124 = vector.load %arg10[%c0_51, %c0_52, %c0_53] : memref<2x1x32xf32, #tpu.memory_space<vmem>>, vector<1x1x32xf32>
    %125 = vector.shape_cast %124 : vector<1x1x32xf32> to vector<1x32xf32>
    %c0_54 = arith.constant 0 : index
    %c0_55 = arith.constant 0 : index
    %c0_56 = arith.constant 0 : index
    %126 = vector.load %arg11[%c0_54, %c0_55, %c0_56] : memref<2x1x32xf32, #tpu.memory_space<vmem>>, vector<1x1x32xf32>
    %127 = vector.shape_cast %126 : vector<1x1x32xf32> to vector<1x32xf32>
    %cst_57 = arith.constant dense<0.000000e+00> : vector<8xf32>
    %128 = vector.multi_reduction <add>, %123, %cst_57 [1] : vector<8x32xf32> to vector<8xf32>
    %129 = vector.shape_cast %128 : vector<8xf32> to vector<8x1xf32>
    %cst_58 = arith.constant 3.200000e+01 : f32
    %130 = vector.broadcast %cst_58 : f32 to vector<8x1xf32>
    %131 = arith.divf %129, %130 : vector<8x1xf32>
    %132 = vector.broadcast %131 : vector<8x1xf32> to vector<8x32xf32>
    %133 = arith.subf %123, %132 : vector<8x32xf32>
    %134 = arith.mulf %133, %133 : vector<8x32xf32>
    %cst_59 = arith.constant dense<0.000000e+00> : vector<8xf32>
    %135 = vector.multi_reduction <add>, %134, %cst_59 [1] : vector<8x32xf32> to vector<8xf32>
    %136 = vector.shape_cast %135 : vector<8xf32> to vector<8x1xf32>
    %cst_60 = arith.constant 3.200000e+01 : f32
    %137 = vector.broadcast %cst_60 : f32 to vector<8x1xf32>
    %138 = arith.divf %136, %137 : vector<8x1xf32>
    %139 = vector.broadcast %131 : vector<8x1xf32> to vector<8x32xf32>
    %140 = arith.subf %123, %139 : vector<8x32xf32>
    %cst_61 = arith.constant 9.99999974E-6 : f32
    %141 = vector.broadcast %cst_61 : f32 to vector<8x1xf32>
    %142 = arith.addf %138, %141 : vector<8x1xf32>
    %143 = math.rsqrt %142 : vector<8x1xf32>
    %144 = vector.broadcast %143 : vector<8x1xf32> to vector<8x32xf32>
    %145 = arith.mulf %140, %144 : vector<8x32xf32>
    %146 = vector.broadcast %125 : vector<1x32xf32> to vector<8x32xf32>
    %147 = arith.mulf %145, %146 : vector<8x32xf32>
    %148 = vector.broadcast %127 : vector<1x32xf32> to vector<8x32xf32>
    %149 = arith.addf %147, %148 : vector<8x32xf32>
    %c0_62 = arith.constant 0 : index
    %c0_63 = arith.constant 0 : index
    %c0_64 = arith.constant 0 : index
    %150 = vector.load %arg12[%c0_62, %c0_63, %c0_64] : memref<2x32x64xf32, #tpu.memory_space<vmem>>, vector<1x32x64xf32>
    %151 = vector.shape_cast %150 : vector<1x32x64xf32> to vector<32x64xf32>
    %cst_65 = arith.constant dense<0.000000e+00> : vector<8x64xf32>
    %152 = tpu.matmul %149, %151, %cst_65 {dimension_numbers = #tpu.dot_dimension_numbers<[1], [0], [0], [1], [0, 0, 1, 1], [], []>} : vector<8x32xf32>, vector<32x64xf32>, vector<8x64xf32> -> vector<8x64xf32>
    %c0_66 = arith.constant 0 : index
    %c0_67 = arith.constant 0 : index
    %c0_68 = arith.constant 0 : index
    %153 = vector.load %arg13[%c0_66, %c0_67, %c0_68] : memref<2x1x64xf32, #tpu.memory_space<vmem>>, vector<1x1x64xf32>
    %154 = vector.shape_cast %153 : vector<1x1x64xf32> to vector<1x64xf32>
    %155 = vector.broadcast %154 : vector<1x64xf32> to vector<8x64xf32>
    %156 = arith.addf %152, %155 : vector<8x64xf32>
    %cst_69 = arith.constant 5.000000e-01 : f32
    %157 = vector.broadcast %cst_69 : f32 to vector<8x64xf32>
    %158 = arith.mulf %157, %156 : vector<8x64xf32>
    %cst_70 = arith.constant 4.471500e-02 : f32
    %159 = vector.broadcast %cst_70 : f32 to vector<8x64xf32>
    %160 = arith.mulf %159, %156 : vector<8x64xf32>
    %161 = arith.mulf %160, %156 : vector<8x64xf32>
    %162 = arith.mulf %161, %156 : vector<8x64xf32>
    %163 = arith.addf %156, %162 : vector<8x64xf32>
    %cst_71 = arith.constant 0.797884583 : f32
    %164 = vector.broadcast %cst_71 : f32 to vector<8x64xf32>
    %165 = arith.mulf %164, %163 : vector<8x64xf32>
    %166 = math.tanh %165 : vector<8x64xf32>
    %cst_72 = arith.constant 1.000000e+00 : f32
    %167 = vector.broadcast %cst_72 : f32 to vector<8x64xf32>
    %168 = arith.addf %167, %166 : vector<8x64xf32>
    %169 = arith.mulf %158, %168 : vector<8x64xf32>
    %c0_73 = arith.constant 0 : index
    %c0_74 = arith.constant 0 : index
    %c0_75 = arith.constant 0 : index
    %170 = vector.load %arg14[%c0_73, %c0_74, %c0_75] : memref<2x64x32xf32, #tpu.memory_space<vmem>>, vector<1x64x32xf32>
    %171 = vector.shape_cast %170 : vector<1x64x32xf32> to vector<64x32xf32>
    %cst_76 = arith.constant dense<0.000000e+00> : vector<8x32xf32>
    %172 = tpu.matmul %169, %171, %cst_76 {dimension_numbers = #tpu.dot_dimension_numbers<[1], [0], [0], [1], [0, 0, 1, 1], [], []>} : vector<8x64xf32>, vector<64x32xf32>, vector<8x32xf32> -> vector<8x32xf32>
    %173 = arith.addf %123, %172 : vector<8x32xf32>
    %c0_77 = arith.constant 0 : index
    %c0_78 = arith.constant 0 : index
    %c0_79 = arith.constant 0 : index
    %174 = vector.load %arg15[%c0_77, %c0_78, %c0_79] : memref<2x1x32xf32, #tpu.memory_space<vmem>>, vector<1x1x32xf32>
    %175 = vector.shape_cast %174 : vector<1x1x32xf32> to vector<1x32xf32>
    %176 = vector.broadcast %175 : vector<1x32xf32> to vector<8x32xf32>
    %177 = arith.addf %173, %176 : vector<8x32xf32>
    %c1 = arith.constant 1 : index
    %c0_80 = arith.constant 0 : index
    %c0_81 = arith.constant 0 : index
    %178 = vector.load %arg4[%c1, %c0_80, %c0_81] : memref<2x1x32xf32, #tpu.memory_space<vmem>>, vector<1x1x32xf32>
    %179 = vector.shape_cast %178 : vector<1x1x32xf32> to vector<1x32xf32>
    %c1_82 = arith.constant 1 : index
    %c0_83 = arith.constant 0 : index
    %c0_84 = arith.constant 0 : index
    %180 = vector.load %arg5[%c1_82, %c0_83, %c0_84] : memref<2x1x32xf32, #tpu.memory_space<vmem>>, vector<1x1x32xf32>
    %181 = vector.shape_cast %180 : vector<1x1x32xf32> to vector<1x32xf32>
    %cst_85 = arith.constant dense<0.000000e+00> : vector<8xf32>
    %182 = vector.multi_reduction <add>, %177, %cst_85 [1] : vector<8x32xf32> to vector<8xf32>
    %183 = vector.shape_cast %182 : vector<8xf32> to vector<8x1xf32>
    %cst_86 = arith.constant 3.200000e+01 : f32
    %184 = vector.broadcast %cst_86 : f32 to vector<8x1xf32>
    %185 = arith.divf %183, %184 : vector<8x1xf32>
    %186 = vector.broadcast %185 : vector<8x1xf32> to vector<8x32xf32>
    %187 = arith.subf %177, %186 : vector<8x32xf32>
    %188 = arith.mulf %187, %187 : vector<8x32xf32>
    %cst_87 = arith.constant dense<0.000000e+00> : vector<8xf32>
    %189 = vector.multi_reduction <add>, %188, %cst_87 [1] : vector<8x32xf32> to vector<8xf32>
    %190 = vector.shape_cast %189 : vector<8xf32> to vector<8x1xf32>
    %cst_88 = arith.constant 3.200000e+01 : f32
    %191 = vector.broadcast %cst_88 : f32 to vector<8x1xf32>
    %192 = arith.divf %190, %191 : vector<8x1xf32>
    %193 = vector.broadcast %185 : vector<8x1xf32> to vector<8x32xf32>
    %194 = arith.subf %177, %193 : vector<8x32xf32>
    %cst_89 = arith.constant 9.99999974E-6 : f32
    %195 = vector.broadcast %cst_89 : f32 to vector<8x1xf32>
    %196 = arith.addf %192, %195 : vector<8x1xf32>
    %197 = math.rsqrt %196 : vector<8x1xf32>
    %198 = vector.broadcast %197 : vector<8x1xf32> to vector<8x32xf32>
    %199 = arith.mulf %194, %198 : vector<8x32xf32>
    %200 = vector.broadcast %179 : vector<1x32xf32> to vector<8x32xf32>
    %201 = arith.mulf %199, %200 : vector<8x32xf32>
    %202 = vector.broadcast %181 : vector<1x32xf32> to vector<8x32xf32>
    %203 = arith.addf %201, %202 : vector<8x32xf32>
    %c1_90 = arith.constant 1 : index
    %c0_91 = arith.constant 0 : index
    %c0_92 = arith.constant 0 : index
    %204 = vector.load %arg6[%c1_90, %c0_91, %c0_92] : memref<2x32x96xf32, #tpu.memory_space<vmem>>, vector<1x32x96xf32>
    %205 = vector.shape_cast %204 : vector<1x32x96xf32> to vector<32x96xf32>
    %cst_93 = arith.constant dense<0.000000e+00> : vector<8x96xf32>
    %206 = tpu.matmul %203, %205, %cst_93 {dimension_numbers = #tpu.dot_dimension_numbers<[1], [0], [0], [1], [0, 0, 1, 1], [], []>} : vector<8x32xf32>, vector<32x96xf32>, vector<8x96xf32> -> vector<8x96xf32>
    %c1_94 = arith.constant 1 : index
    %c0_95 = arith.constant 0 : index
    %c0_96 = arith.constant 0 : index
    %207 = vector.load %arg7[%c1_94, %c0_95, %c0_96] : memref<2x1x96xf32, #tpu.memory_space<vmem>>, vector<1x1x96xf32>
    %208 = vector.shape_cast %207 : vector<1x1x96xf32> to vector<1x96xf32>
    %209 = vector.broadcast %208 : vector<1x96xf32> to vector<8x96xf32>
    %210 = arith.addf %206, %209 : vector<8x96xf32>
    %211 = vector.shape_cast %210 : vector<8x96xf32> to vector<1x8x96xf32>
    %212 = vector.extract_strided_slice %211 {offsets = [0, 0, 0], sizes = [1, 8, 8], strides = [1, 1, 1]} : vector<1x8x96xf32> to vector<1x8x8xf32>
    %213 = vector.extract_strided_slice %211 {offsets = [0, 0, 32], sizes = [1, 8, 8], strides = [1, 1, 1]} : vector<1x8x96xf32> to vector<1x8x8xf32>
    %214 = vector.extract_strided_slice %211 {offsets = [0, 0, 64], sizes = [1, 8, 8], strides = [1, 1, 1]} : vector<1x8x96xf32> to vector<1x8x8xf32>
    "tpu.trace_start"() <{level = 10 : i32, message = "bqd,bkd->bqk"}> : () -> ()
    %cst_97 = arith.constant dense<0.000000e+00> : vector<1x8x8xf32>
    %215 = tpu.matmul %212, %213, %cst_97 {dimension_numbers = #tpu.dot_dimension_numbers<[2], [2], [1], [1], [0, 0, 0, 1, 1, 1], [0], [0]>} : vector<1x8x8xf32>, vector<1x8x8xf32>, vector<1x8x8xf32> -> vector<1x8x8xf32>
    "tpu.trace_stop"() : () -> ()
    %cst_98 = arith.constant 0.353553385 : f32
    %216 = vector.broadcast %cst_98 : f32 to vector<1x8x8xf32>
    %217 = arith.mulf %215, %216 : vector<1x8x8xf32>
    %218 = arith.addf %217, %7 : vector<1x8x8xf32>
    %cst_99 = arith.constant dense<0xFF800000> : vector<1x8xf32>
    %219 = vector.multi_reduction <maximumf>, %218, %cst_99 [2] : vector<1x8x8xf32> to vector<1x8xf32>
    %220 = vector.shape_cast %219 : vector<1x8xf32> to vector<1x8x1xf32>
    %221 = vector.broadcast %220 : vector<1x8x1xf32> to vector<1x8x8xf32>
    %222 = arith.subf %218, %221 : vector<1x8x8xf32>
    %223 = math.exp %222 : vector<1x8x8xf32>
    %cst_100 = arith.constant dense<0.000000e+00> : vector<1x8xf32>
    %224 = vector.multi_reduction <add>, %223, %cst_100 [2] : vector<1x8x8xf32> to vector<1x8xf32>
    %225 = vector.shape_cast %224 : vector<1x8xf32> to vector<1x8x1xf32>
    %226 = tpu.reciprocal %225 {approx = true} : vector<1x8x1xf32> -> vector<1x8x1xf32>
    %227 = vector.broadcast %226 : vector<1x8x1xf32> to vector<1x8x8xf32>
    %228 = arith.mulf %223, %227 : vector<1x8x8xf32>
    "tpu.trace_start"() <{level = 10 : i32, message = "bqk,bkd->bqd"}> : () -> ()
    %cst_101 = arith.constant dense<0.000000e+00> : vector<1x8x8xf32>
    %229 = tpu.matmul %228, %214, %cst_101 {dimension_numbers = #tpu.dot_dimension_numbers<[2], [1], [1], [2], [0, 0, 0, 1, 1, 2], [0], [0]>} : vector<1x8x8xf32>, vector<1x8x8xf32>, vector<1x8x8xf32> -> vector<1x8x8xf32>
    "tpu.trace_stop"() : () -> ()
    %230 = vector.extract_strided_slice %211 {offsets = [0, 0, 8], sizes = [1, 8, 8], strides = [1, 1, 1]} : vector<1x8x96xf32> to vector<1x8x8xf32>
    %231 = vector.extract_strided_slice %211 {offsets = [0, 0, 40], sizes = [1, 8, 8], strides = [1, 1, 1]} : vector<1x8x96xf32> to vector<1x8x8xf32>
    %232 = vector.extract_strided_slice %211 {offsets = [0, 0, 72], sizes = [1, 8, 8], strides = [1, 1, 1]} : vector<1x8x96xf32> to vector<1x8x8xf32>
    "tpu.trace_start"() <{level = 10 : i32, message = "bqd,bkd->bqk"}> : () -> ()
    %cst_102 = arith.constant dense<0.000000e+00> : vector<1x8x8xf32>
    %233 = tpu.matmul %230, %231, %cst_102 {dimension_numbers = #tpu.dot_dimension_numbers<[2], [2], [1], [1], [0, 0, 0, 1, 1, 1], [0], [0]>} : vector<1x8x8xf32>, vector<1x8x8xf32>, vector<1x8x8xf32> -> vector<1x8x8xf32>
    "tpu.trace_stop"() : () -> ()
    %cst_103 = arith.constant 0.353553385 : f32
    %234 = vector.broadcast %cst_103 : f32 to vector<1x8x8xf32>
    %235 = arith.mulf %233, %234 : vector<1x8x8xf32>
    %236 = arith.addf %235, %7 : vector<1x8x8xf32>
    %cst_104 = arith.constant dense<0xFF800000> : vector<1x8xf32>
    %237 = vector.multi_reduction <maximumf>, %236, %cst_104 [2] : vector<1x8x8xf32> to vector<1x8xf32>
    %238 = vector.shape_cast %237 : vector<1x8xf32> to vector<1x8x1xf32>
    %239 = vector.broadcast %238 : vector<1x8x1xf32> to vector<1x8x8xf32>
    %240 = arith.subf %236, %239 : vector<1x8x8xf32>
    %241 = math.exp %240 : vector<1x8x8xf32>
    %cst_105 = arith.constant dense<0.000000e+00> : vector<1x8xf32>
    %242 = vector.multi_reduction <add>, %241, %cst_105 [2] : vector<1x8x8xf32> to vector<1x8xf32>
    %243 = vector.shape_cast %242 : vector<1x8xf32> to vector<1x8x1xf32>
    %244 = tpu.reciprocal %243 {approx = true} : vector<1x8x1xf32> -> vector<1x8x1xf32>
    %245 = vector.broadcast %244 : vector<1x8x1xf32> to vector<1x8x8xf32>
    %246 = arith.mulf %241, %245 : vector<1x8x8xf32>
    "tpu.trace_start"() <{level = 10 : i32, message = "bqk,bkd->bqd"}> : () -> ()
    %cst_106 = arith.constant dense<0.000000e+00> : vector<1x8x8xf32>
    %247 = tpu.matmul %246, %232, %cst_106 {dimension_numbers = #tpu.dot_dimension_numbers<[2], [1], [1], [2], [0, 0, 0, 1, 1, 2], [0], [0]>} : vector<1x8x8xf32>, vector<1x8x8xf32>, vector<1x8x8xf32> -> vector<1x8x8xf32>
    "tpu.trace_stop"() : () -> ()
    %248 = vector.extract_strided_slice %211 {offsets = [0, 0, 16], sizes = [1, 8, 8], strides = [1, 1, 1]} : vector<1x8x96xf32> to vector<1x8x8xf32>
    %249 = vector.extract_strided_slice %211 {offsets = [0, 0, 48], sizes = [1, 8, 8], strides = [1, 1, 1]} : vector<1x8x96xf32> to vector<1x8x8xf32>
    %250 = vector.extract_strided_slice %211 {offsets = [0, 0, 80], sizes = [1, 8, 8], strides = [1, 1, 1]} : vector<1x8x96xf32> to vector<1x8x8xf32>
    "tpu.trace_start"() <{level = 10 : i32, message = "bqd,bkd->bqk"}> : () -> ()
    %cst_107 = arith.constant dense<0.000000e+00> : vector<1x8x8xf32>
    %251 = tpu.matmul %248, %249, %cst_107 {dimension_numbers = #tpu.dot_dimension_numbers<[2], [2], [1], [1], [0, 0, 0, 1, 1, 1], [0], [0]>} : vector<1x8x8xf32>, vector<1x8x8xf32>, vector<1x8x8xf32> -> vector<1x8x8xf32>
    "tpu.trace_stop"() : () -> ()
    %cst_108 = arith.constant 0.353553385 : f32
    %252 = vector.broadcast %cst_108 : f32 to vector<1x8x8xf32>
    %253 = arith.mulf %251, %252 : vector<1x8x8xf32>
    %254 = arith.addf %253, %7 : vector<1x8x8xf32>
    %cst_109 = arith.constant dense<0xFF800000> : vector<1x8xf32>
    %255 = vector.multi_reduction <maximumf>, %254, %cst_109 [2] : vector<1x8x8xf32> to vector<1x8xf32>
    %256 = vector.shape_cast %255 : vector<1x8xf32> to vector<1x8x1xf32>
    %257 = vector.broadcast %256 : vector<1x8x1xf32> to vector<1x8x8xf32>
    %258 = arith.subf %254, %257 : vector<1x8x8xf32>
    %259 = math.exp %258 : vector<1x8x8xf32>
    %cst_110 = arith.constant dense<0.000000e+00> : vector<1x8xf32>
    %260 = vector.multi_reduction <add>, %259, %cst_110 [2] : vector<1x8x8xf32> to vector<1x8xf32>
    %261 = vector.shape_cast %260 : vector<1x8xf32> to vector<1x8x1xf32>
    %262 = tpu.reciprocal %261 {approx = true} : vector<1x8x1xf32> -> vector<1x8x1xf32>
    %263 = vector.broadcast %262 : vector<1x8x1xf32> to vector<1x8x8xf32>
    %264 = arith.mulf %259, %263 : vector<1x8x8xf32>
    "tpu.trace_start"() <{level = 10 : i32, message = "bqk,bkd->bqd"}> : () -> ()
    %cst_111 = arith.constant dense<0.000000e+00> : vector<1x8x8xf32>
    %265 = tpu.matmul %264, %250, %cst_111 {dimension_numbers = #tpu.dot_dimension_numbers<[2], [1], [1], [2], [0, 0, 0, 1, 1, 2], [0], [0]>} : vector<1x8x8xf32>, vector<1x8x8xf32>, vector<1x8x8xf32> -> vector<1x8x8xf32>
    "tpu.trace_stop"() : () -> ()
    %266 = vector.extract_strided_slice %211 {offsets = [0, 0, 24], sizes = [1, 8, 8], strides = [1, 1, 1]} : vector<1x8x96xf32> to vector<1x8x8xf32>
    %267 = vector.extract_strided_slice %211 {offsets = [0, 0, 56], sizes = [1, 8, 8], strides = [1, 1, 1]} : vector<1x8x96xf32> to vector<1x8x8xf32>
    %268 = vector.extract_strided_slice %211 {offsets = [0, 0, 88], sizes = [1, 8, 8], strides = [1, 1, 1]} : vector<1x8x96xf32> to vector<1x8x8xf32>
    "tpu.trace_start"() <{level = 10 : i32, message = "bqd,bkd->bqk"}> : () -> ()
    %cst_112 = arith.constant dense<0.000000e+00> : vector<1x8x8xf32>
    %269 = tpu.matmul %266, %267, %cst_112 {dimension_numbers = #tpu.dot_dimension_numbers<[2], [2], [1], [1], [0, 0, 0, 1, 1, 1], [0], [0]>} : vector<1x8x8xf32>, vector<1x8x8xf32>, vector<1x8x8xf32> -> vector<1x8x8xf32>
    "tpu.trace_stop"() : () -> ()
    %cst_113 = arith.constant 0.353553385 : f32
    %270 = vector.broadcast %cst_113 : f32 to vector<1x8x8xf32>
    %271 = arith.mulf %269, %270 : vector<1x8x8xf32>
    %272 = arith.addf %271, %7 : vector<1x8x8xf32>
    %cst_114 = arith.constant dense<0xFF800000> : vector<1x8xf32>
    %273 = vector.multi_reduction <maximumf>, %272, %cst_114 [2] : vector<1x8x8xf32> to vector<1x8xf32>
    %274 = vector.shape_cast %273 : vector<1x8xf32> to vector<1x8x1xf32>
    %275 = vector.broadcast %274 : vector<1x8x1xf32> to vector<1x8x8xf32>
    %276 = arith.subf %272, %275 : vector<1x8x8xf32>
    %277 = math.exp %276 : vector<1x8x8xf32>
    %cst_115 = arith.constant dense<0.000000e+00> : vector<1x8xf32>
    %278 = vector.multi_reduction <add>, %277, %cst_115 [2] : vector<1x8x8xf32> to vector<1x8xf32>
    %279 = vector.shape_cast %278 : vector<1x8xf32> to vector<1x8x1xf32>
    %280 = tpu.reciprocal %279 {approx = true} : vector<1x8x1xf32> -> vector<1x8x1xf32>
    %281 = vector.broadcast %280 : vector<1x8x1xf32> to vector<1x8x8xf32>
    %282 = arith.mulf %277, %281 : vector<1x8x8xf32>
    "tpu.trace_start"() <{level = 10 : i32, message = "bqk,bkd->bqd"}> : () -> ()
    %cst_116 = arith.constant dense<0.000000e+00> : vector<1x8x8xf32>
    %283 = tpu.matmul %282, %268, %cst_116 {dimension_numbers = #tpu.dot_dimension_numbers<[2], [1], [1], [2], [0, 0, 0, 1, 1, 2], [0], [0]>} : vector<1x8x8xf32>, vector<1x8x8xf32>, vector<1x8x8xf32> -> vector<1x8x8xf32>
    "tpu.trace_stop"() : () -> ()
    %284 = tpu.concatenate %229, %247, %265, %283 in 2 : vector<1x8x8xf32>, vector<1x8x8xf32>, vector<1x8x8xf32>, vector<1x8x8xf32> -> vector<1x8x32xf32>
    %285 = vector.shape_cast %284 : vector<1x8x32xf32> to vector<8x32xf32>
    %c1_117 = arith.constant 1 : index
    %c0_118 = arith.constant 0 : index
    %c0_119 = arith.constant 0 : index
    %286 = vector.load %arg8[%c1_117, %c0_118, %c0_119] : memref<2x32x32xf32, #tpu.memory_space<vmem>>, vector<1x32x32xf32>
    %287 = vector.shape_cast %286 : vector<1x32x32xf32> to vector<32x32xf32>
    %cst_120 = arith.constant dense<0.000000e+00> : vector<8x32xf32>
    %288 = tpu.matmul %285, %287, %cst_120 {dimension_numbers = #tpu.dot_dimension_numbers<[1], [0], [0], [1], [0, 0, 1, 1], [], []>} : vector<8x32xf32>, vector<32x32xf32>, vector<8x32xf32> -> vector<8x32xf32>
    %c1_121 = arith.constant 1 : index
    %c0_122 = arith.constant 0 : index
    %c0_123 = arith.constant 0 : index
    %289 = vector.load %arg9[%c1_121, %c0_122, %c0_123] : memref<2x1x32xf32, #tpu.memory_space<vmem>>, vector<1x1x32xf32>
    %290 = vector.shape_cast %289 : vector<1x1x32xf32> to vector<1x32xf32>
    %291 = vector.broadcast %290 : vector<1x32xf32> to vector<8x32xf32>
    %292 = arith.addf %288, %291 : vector<8x32xf32>
    %293 = arith.addf %177, %292 : vector<8x32xf32>
    %c1_124 = arith.constant 1 : index
    %c0_125 = arith.constant 0 : index
    %c0_126 = arith.constant 0 : index
    %294 = vector.load %arg10[%c1_124, %c0_125, %c0_126] : memref<2x1x32xf32, #tpu.memory_space<vmem>>, vector<1x1x32xf32>
    %295 = vector.shape_cast %294 : vector<1x1x32xf32> to vector<1x32xf32>
    %c1_127 = arith.constant 1 : index
    %c0_128 = arith.constant 0 : index
    %c0_129 = arith.constant 0 : index
    %296 = vector.load %arg11[%c1_127, %c0_128, %c0_129] : memref<2x1x32xf32, #tpu.memory_space<vmem>>, vector<1x1x32xf32>
    %297 = vector.shape_cast %296 : vector<1x1x32xf32> to vector<1x32xf32>
    %cst_130 = arith.constant dense<0.000000e+00> : vector<8xf32>
    %298 = vector.multi_reduction <add>, %293, %cst_130 [1] : vector<8x32xf32> to vector<8xf32>
    %299 = vector.shape_cast %298 : vector<8xf32> to vector<8x1xf32>
    %cst_131 = arith.constant 3.200000e+01 : f32
    %300 = vector.broadcast %cst_131 : f32 to vector<8x1xf32>
    %301 = arith.divf %299, %300 : vector<8x1xf32>
    %302 = vector.broadcast %301 : vector<8x1xf32> to vector<8x32xf32>
    %303 = arith.subf %293, %302 : vector<8x32xf32>
    %304 = arith.mulf %303, %303 : vector<8x32xf32>
    %cst_132 = arith.constant dense<0.000000e+00> : vector<8xf32>
    %305 = vector.multi_reduction <add>, %304, %cst_132 [1] : vector<8x32xf32> to vector<8xf32>
    %306 = vector.shape_cast %305 : vector<8xf32> to vector<8x1xf32>
    %cst_133 = arith.constant 3.200000e+01 : f32
    %307 = vector.broadcast %cst_133 : f32 to vector<8x1xf32>
    %308 = arith.divf %306, %307 : vector<8x1xf32>
    %309 = vector.broadcast %301 : vector<8x1xf32> to vector<8x32xf32>
    %310 = arith.subf %293, %309 : vector<8x32xf32>
    %cst_134 = arith.constant 9.99999974E-6 : f32
    %311 = vector.broadcast %cst_134 : f32 to vector<8x1xf32>
    %312 = arith.addf %308, %311 : vector<8x1xf32>
    %313 = math.rsqrt %312 : vector<8x1xf32>
    %314 = vector.broadcast %313 : vector<8x1xf32> to vector<8x32xf32>
    %315 = arith.mulf %310, %314 : vector<8x32xf32>
    %316 = vector.broadcast %295 : vector<1x32xf32> to vector<8x32xf32>
    %317 = arith.mulf %315, %316 : vector<8x32xf32>
    %318 = vector.broadcast %297 : vector<1x32xf32> to vector<8x32xf32>
    %319 = arith.addf %317, %318 : vector<8x32xf32>
    %c1_135 = arith.constant 1 : index
    %c0_136 = arith.constant 0 : index
    %c0_137 = arith.constant 0 : index
    %320 = vector.load %arg12[%c1_135, %c0_136, %c0_137] : memref<2x32x64xf32, #tpu.memory_space<vmem>>, vector<1x32x64xf32>
    %321 = vector.shape_cast %320 : vector<1x32x64xf32> to vector<32x64xf32>
    %cst_138 = arith.constant dense<0.000000e+00> : vector<8x64xf32>
    %322 = tpu.matmul %319, %321, %cst_138 {dimension_numbers = #tpu.dot_dimension_numbers<[1], [0], [0], [1], [0, 0, 1, 1], [], []>} : vector<8x32xf32>, vector<32x64xf32>, vector<8x64xf32> -> vector<8x64xf32>
    %c1_139 = arith.constant 1 : index
    %c0_140 = arith.constant 0 : index
    %c0_141 = arith.constant 0 : index
    %323 = vector.load %arg13[%c1_139, %c0_140, %c0_141] : memref<2x1x64xf32, #tpu.memory_space<vmem>>, vector<1x1x64xf32>
    %324 = vector.shape_cast %323 : vector<1x1x64xf32> to vector<1x64xf32>
    %325 = vector.broadcast %324 : vector<1x64xf32> to vector<8x64xf32>
    %326 = arith.addf %322, %325 : vector<8x64xf32>
    %cst_142 = arith.constant 5.000000e-01 : f32
    %327 = vector.broadcast %cst_142 : f32 to vector<8x64xf32>
    %328 = arith.mulf %327, %326 : vector<8x64xf32>
    %cst_143 = arith.constant 4.471500e-02 : f32
    %329 = vector.broadcast %cst_143 : f32 to vector<8x64xf32>
    %330 = arith.mulf %329, %326 : vector<8x64xf32>
    %331 = arith.mulf %330, %326 : vector<8x64xf32>
    %332 = arith.mulf %331, %326 : vector<8x64xf32>
    %333 = arith.addf %326, %332 : vector<8x64xf32>
    %cst_144 = arith.constant 0.797884583 : f32
    %334 = vector.broadcast %cst_144 : f32 to vector<8x64xf32>
    %335 = arith.mulf %334, %333 : vector<8x64xf32>
    %336 = math.tanh %335 : vector<8x64xf32>
    %cst_145 = arith.constant 1.000000e+00 : f32
    %337 = vector.broadcast %cst_145 : f32 to vector<8x64xf32>
    %338 = arith.addf %337, %336 : vector<8x64xf32>
    %339 = arith.mulf %328, %338 : vector<8x64xf32>
    %c1_146 = arith.constant 1 : index
    %c0_147 = arith.constant 0 : index
    %c0_148 = arith.constant 0 : index
    %340 = vector.load %arg14[%c1_146, %c0_147, %c0_148] : memref<2x64x32xf32, #tpu.memory_space<vmem>>, vector<1x64x32xf32>
    %341 = vector.shape_cast %340 : vector<1x64x32xf32> to vector<64x32xf32>
    %cst_149 = arith.constant dense<0.000000e+00> : vector<8x32xf32>
    %342 = tpu.matmul %339, %341, %cst_149 {dimension_numbers = #tpu.dot_dimension_numbers<[1], [0], [0], [1], [0, 0, 1, 1], [], []>} : vector<8x64xf32>, vector<64x32xf32>, vector<8x32xf32> -> vector<8x32xf32>
    %343 = arith.addf %293, %342 : vector<8x32xf32>
    %c1_150 = arith.constant 1 : index
    %c0_151 = arith.constant 0 : index
    %c0_152 = arith.constant 0 : index
    %344 = vector.load %arg15[%c1_150, %c0_151, %c0_152] : memref<2x1x32xf32, #tpu.memory_space<vmem>>, vector<1x1x32xf32>
    %345 = vector.shape_cast %344 : vector<1x1x32xf32> to vector<1x32xf32>
    %346 = vector.broadcast %345 : vector<1x32xf32> to vector<8x32xf32>
    %347 = arith.addf %343, %346 : vector<8x32xf32>
    %c0_153 = arith.constant 0 : index
    %c0_154 = arith.constant 0 : index
    %348 = vector.load %arg16[%c0_153, %c0_154] : memref<1x32xf32, #tpu.memory_space<vmem>>, vector<1x32xf32>
    %c0_155 = arith.constant 0 : index
    %c0_156 = arith.constant 0 : index
    %349 = vector.load %arg17[%c0_155, %c0_156] : memref<1x32xf32, #tpu.memory_space<vmem>>, vector<1x32xf32>
    %cst_157 = arith.constant dense<0.000000e+00> : vector<8xf32>
    %350 = vector.multi_reduction <add>, %347, %cst_157 [1] : vector<8x32xf32> to vector<8xf32>
    %351 = vector.shape_cast %350 : vector<8xf32> to vector<8x1xf32>
    %cst_158 = arith.constant 3.200000e+01 : f32
    %352 = vector.broadcast %cst_158 : f32 to vector<8x1xf32>
    %353 = arith.divf %351, %352 : vector<8x1xf32>
    %354 = vector.broadcast %353 : vector<8x1xf32> to vector<8x32xf32>
    %355 = arith.subf %347, %354 : vector<8x32xf32>
    %356 = arith.mulf %355, %355 : vector<8x32xf32>
    %cst_159 = arith.constant dense<0.000000e+00> : vector<8xf32>
    %357 = vector.multi_reduction <add>, %356, %cst_159 [1] : vector<8x32xf32> to vector<8xf32>
    %358 = vector.shape_cast %357 : vector<8xf32> to vector<8x1xf32>
    %cst_160 = arith.constant 3.200000e+01 : f32
    %359 = vector.broadcast %cst_160 : f32 to vector<8x1xf32>
    %360 = arith.divf %358, %359 : vector<8x1xf32>
    %361 = vector.broadcast %353 : vector<8x1xf32> to vector<8x32xf32>
    %362 = arith.subf %347, %361 : vector<8x32xf32>
    %cst_161 = arith.constant 9.99999974E-6 : f32
    %363 = vector.broadcast %cst_161 : f32 to vector<8x1xf32>
    %364 = arith.addf %360, %363 : vector<8x1xf32>
    %365 = math.rsqrt %364 : vector<8x1xf32>
    %366 = vector.broadcast %365 : vector<8x1xf32> to vector<8x32xf32>
    %367 = arith.mulf %362, %366 : vector<8x32xf32>
    %368 = vector.broadcast %348 : vector<1x32xf32> to vector<8x32xf32>
    %369 = arith.mulf %367, %368 : vector<8x32xf32>
    %370 = vector.broadcast %349 : vector<1x32xf32> to vector<8x32xf32>
    %371 = arith.addf %369, %370 : vector<8x32xf32>
    %372 = vector.shape_cast %371 : vector<8x32xf32> to vector<1x8x32xf32>
    %c0_162 = arith.constant 0 : index
    %c0_163 = arith.constant 0 : index
    %c0_164 = arith.constant 0 : index
    %373 = vector.load %arg18[%c0_162, %c0_163, %c0_164] : memref<1x8x32xf32, #tpu.memory_space<vmem>>, vector<1x8x32xf32>
    tpu.vector_store %arg18[%c0_162, %c0_163, %c0_164], %372 {strides = array<i32>} : memref<1x8x32xf32, #tpu.memory_space<vmem>>, vector<1x8x32xf32>,
    return
  }
  func.func @transform_0(%arg0: i32) -> (i32, i32, i32) {
    %c0_i32 = arith.constant 0 : i32
    %c0_i32_0 = arith.constant 0 : i32
    %c0_i32_1 = arith.constant 0 : i32
    return %arg0, %c0_i32, %c0_i32_0 : i32, i32, i32
  }
  func.func @transform_1(%arg0: i32) -> (i32, i32) {
    %c0_i32 = arith.constant 0 : i32
    %c0_i32_0 = arith.constant 0 : i32
    %c0_i32_1 = arith.constant 0 : i32
    return %c0_i32, %c0_i32_0 : i32, i32
  }
  func.func @transform_2(%arg0: i32) -> (i32, i32, i32) {
    %c0_i32 = arith.constant 0 : i32
    %c0_i32_0 = arith.constant 0 : i32
    %c0_i32_1 = arith.constant 0 : i32
    return %arg0, %c0_i32, %c0_i32_0 : i32, i32, i32
  }
  func.func @transform_3(%arg0: i32) -> (i32, i32, i32) {
    %c0_i32 = arith.constant 0 : i32
    %c0_i32_0 = arith.constant 0 : i32
    %c0_i32_1 = arith.constant 0 : i32
    %c0_i32_2 = arith.constant 0 : i32
    return %c0_i32, %c0_i32_0, %c0_i32_1 : i32, i32, i32
  }
  func.func @transform_4(%arg0: i32) -> (i32, i32, i32) {
    %c0_i32 = arith.constant 0 : i32
    %c0_i32_0 = arith.constant 0 : i32
    %c0_i32_1 = arith.constant 0 : i32
    %c0_i32_2 = arith.constant 0 : i32
    return %c0_i32, %c0_i32_0, %c0_i32_1 : i32, i32, i32
  }
  func.func @transform_5(%arg0: i32) -> (i32, i32, i32) {
    %c0_i32 = arith.constant 0 : i32
    %c0_i32_0 = arith.constant 0 : i32
    %c0_i32_1 = arith.constant 0 : i32
    %c0_i32_2 = arith.constant 0 : i32
    return %c0_i32, %c0_i32_0, %c0_i32_1 : i32, i32, i32
  }
  func.func @transform_6(%arg0: i32) -> (i32, i32, i32) {
    %c0_i32 = arith.constant 0 : i32
    %c0_i32_0 = arith.constant 0 : i32
    %c0_i32_1 = arith.constant 0 : i32
    %c0_i32_2 = arith.constant 0 : i32
    return %c0_i32, %c0_i32_0, %c0_i32_1 : i32, i32, i32
  }
  func.func @transform_7(%arg0: i32) -> (i32, i32, i32) {
    %c0_i32 = arith.constant 0 : i32
    %c0_i32_0 = arith.constant 0 : i32
    %c0_i32_1 = arith.constant 0 : i32
    %c0_i32_2 = arith.constant 0 : i32
    return %c0_i32, %c0_i32_0, %c0_i32_1 : i32, i32, i32
  }
  func.func @transform_8(%arg0: i32) -> (i32, i32, i32) {
    %c0_i32 = arith.constant 0 : i32
    %c0_i32_0 = arith.constant 0 : i32
    %c0_i32_1 = arith.constant 0 : i32
    %c0_i32_2 = arith.constant 0 : i32
    return %c0_i32, %c0_i32_0, %c0_i32_1 : i32, i32, i32
  }
  func.func @transform_9(%arg0: i32) -> (i32, i32, i32) {
    %c0_i32 = arith.constant 0 : i32
    %c0_i32_0 = arith.constant 0 : i32
    %c0_i32_1 = arith.constant 0 : i32
    %c0_i32_2 = arith.constant 0 : i32
    return %c0_i32, %c0_i32_0, %c0_i32_1 : i32, i32, i32
  }
  func.func @transform_10(%arg0: i32) -> (i32, i32, i32) {
    %c0_i32 = arith.constant 0 : i32
    %c0_i32_0 = arith.constant 0 : i32
    %c0_i32_1 = arith.constant 0 : i32
    %c0_i32_2 = arith.constant 0 : i32
    return %c0_i32, %c0_i32_0, %c0_i32_1 : i32, i32, i32
  }
  func.func @transform_11(%arg0: i32) -> (i32, i32, i32) {
    %c0_i32 = arith.constant 0 : i32
    %c0_i32_0 = arith.constant 0 : i32
    %c0_i32_1 = arith.constant 0 : i32
    %c0_i32_2 = arith.constant 0 : i32
    return %c0_i32, %c0_i32_0, %c0_i32_1 : i32, i32, i32
  }
  func.func @transform_12(%arg0: i32) -> (i32, i32, i32) {
    %c0_i32 = arith.constant 0 : i32
    %c0_i32_0 = arith.constant 0 : i32
    %c0_i32_1 = arith.constant 0 : i32
    %c0_i32_2 = arith.constant 0 : i32
    return %c0_i32, %c0_i32_0, %c0_i32_1 : i32, i32, i32
  }
  func.func @transform_13(%arg0: i32) -> (i32, i32, i32) {
    %c0_i32 = arith.constant 0 : i32
    %c0_i32_0 = arith.constant 0 : i32
    %c0_i32_1 = arith.constant 0 : i32
    %c0_i32_2 = arith.constant 0 : i32
    return %c0_i32, %c0_i32_0, %c0_i32_1 : i32, i32, i32
  }
  func.func @transform_14(%arg0: i32) -> (i32, i32, i32) {
    %c0_i32 = arith.constant 0 : i32
    %c0_i32_0 = arith.constant 0 : i32
    %c0_i32_1 = arith.constant 0 : i32
    %c0_i32_2 = arith.constant 0 : i32
    return %c0_i32, %c0_i32_0, %c0_i32_1 : i32, i32, i32
  }
  func.func @transform_15(%arg0: i32) -> (i32, i32) {
    %c0_i32 = arith.constant 0 : i32
    %c0_i32_0 = arith.constant 0 : i32
    %c0_i32_1 = arith.constant 0 : i32
    return %c0_i32, %c0_i32_0 : i32, i32
  }
  func.func @transform_16(%arg0: i32) -> (i32, i32) {
    %c0_i32 = arith.constant 0 : i32
    %c0_i32_0 = arith.constant 0 : i32
    %c0_i32_1 = arith.constant 0 : i32
    return %c0_i32, %c0_i32_0 : i32, i32
  }
  func.func @transform_17(%arg0: i32) -> (i32, i32, i32) {
    %c0_i32 = arith.constant 0 : i32
    %c0_i32_0 = arith.constant 0 : i32
    %c0_i32_1 = arith.constant 0 : i32
    return %arg0, %c0_i32, %c0_i32_0 : i32, i32, i32
  }
}

</mosaic_0001>

<llo_original>
// kernel: tpu_custom_call.1
$region0: #{tpu_custom_call.1}
  #allocation0 [shape = 'u32[]', space=smem, size = 0x4, offset = 0x4, fixed_abs, tag = 'smem constant byte address 0x4 - core index']
  #allocation1 [shape = 'u32[144,128]{1,0:T(1,128)}', space=vmem, size = 0x12000, scoped, tag = 'internal scratch']
  %s0 = inlined_call_operand.hbm [shape: f32[2,8,32], index: 0, kind: input, shape index: {}]
  %s1 = inlined_call_operand.hbm [shape: f32[8,32], index: 1, kind: input, shape index: {}]
  %s2 = inlined_call_operand.vmem [shape: f32[2,1,8], index: 2, kind: input, shape index: {}]
  %s3 = inlined_call_operand.vmem [shape: f32[2,1,32], index: 3, kind: input, shape index: {}]
  %s4 = inlined_call_operand.vmem [shape: f32[2,1,32], index: 4, kind: input, shape index: {}]
  %s5 = inlined_call_operand.vmem [shape: f32[2,32,96], index: 5, kind: input, shape index: {}]
  %s6 = inlined_call_operand.vmem [shape: f32[2,1,96], index: 6, kind: input, shape index: {}]
  %s7 = inlined_call_operand.vmem [shape: f32[2,32,32], index: 7, kind: input, shape index: {}]
  %s8 = inlined_call_operand.vmem [shape: f32[2,1,32], index: 8, kind: input, shape index: {}]
  %s9 = inlined_call_operand.vmem [shape: f32[2,1,32], index: 9, kind: input, shape index: {}]
  %s10 = inlined_call_operand.vmem [shape: f32[2,1,32], index: 10, kind: input, shape index: {}]
  %s11 = inlined_call_operand.vmem [shape: f32[2,32,64], index: 11, kind: input, shape index: {}]
  %s12 = inlined_call_operand.vmem [shape: f32[2,1,64], index: 12, kind: input, shape index: {}]
  %s13 = inlined_call_operand.vmem [shape: f32[2,64,32], index: 13, kind: input, shape index: {}]
  %s14 = inlined_call_operand.vmem [shape: f32[2,1,32], index: 14, kind: input, shape index: {}]
  %s15 = inlined_call_operand.vmem [shape: f32[1,32], index: 15, kind: input, shape index: {}]
  %s16 = inlined_call_operand.vmem [shape: f32[1,32], index: 16, kind: input, shape index: {}]
  %s17 = inlined_call_operand.hbm [shape: f32[2,8,32], index: 17, kind: output, shape index: {}]
  %s18 = sld [smem:[#allocation0]]
  $region109: #{tpu_custom_call.1} parent=0
    _
  %s20 = ssub.s32 1, %s18
  %s21 = scalar_select 0, %s20, %s18
  $region1: #{tpu_custom_call.1} parent=0
    #allocation2 [shape = 'u8[8192]{0}', space=vmem, size = 0x2000, scoped, tag = 'input window, operand 0']
    #allocation3 [shape = 's32[2]{0}', space=sflag, size = 0x8, scoped, tag = 'scoped memory for tpu_custom_call.1']
    #allocation4 [shape = 's32[2]{0}', space=sflag, size = 0x8, scoped, tag = 'scoped memory for tpu_custom_call.1']
    #allocation5 [shape = 'u8[4096]{0}', space=vmem, size = 0x1000, scoped, tag = 'input window, operand 1, single buffered']
    #allocation6 [shape = 's32[1]{0}', space=sflag, size = 0x4, scoped, tag = 'scoped memory for tpu_custom_call.1']
    #allocation7 [shape = 'u8[8192]{0}', space=vmem, size = 0x2000, scoped, tag = 'output window, operand 0']
    %22 = vsyncpa [#allocation3], 0
    %s23 = scalar_lea.sflag [#allocation3], 1
    %24 = vsyncpa %s23, 0
    %25 = vsyncpa [#allocation6], 0
    %26 = vsyncpa [#allocation4], 0
    %s27 = scalar_lea.sflag [#allocation4], 1
    %28 = vsyncpa %s27, 0
    loop: start=0, step=1, limit=4
    $region2: #{tpu_custom_call.1} parent=1 // loop_pre_header
      _
    $region3: #{tpu_custom_call.1} parent=1 // loop_header
      %s30 = sphi 0, %s34
      %p31 = scmp.ge.s32.totalorder %s30, 4
      %s40 = sphi 0, %s42
      %s43 = sphi 0, %s40
      %s44 = sphi 0, %s43
      %s60 = sphi 0, %s44
      %s64 = sphi 0, %s64
      %s66 = sphi 0, %s64
      %s67 = sphi 0, %s66
      %s81 = sphi 0, %s67
      %s87 = sphi 0, %s89
      %s90 = sphi 0, %s87
      %s91 = sphi 0, %s90
      %s107 = sphi 0, %s91
      %s111 = sphi 0, %s111
      %s113 = sphi 0, %s111
      %s114 = sphi 0, %s113
      %s128 = sphi 0, %s114
      %s132 = sphi 0, %s132
      %s134 = sphi 0, %s132
      %s135 = sphi 0, %s134
      %s149 = sphi 0, %s135
      %s153 = sphi 0, %s153
      %s155 = sphi 0, %s153
      %s156 = sphi 0, %s155
      %s170 = sphi 0, %s156
      %s174 = sphi 0, %s174
      %s176 = sphi 0, %s174
      %s177 = sphi 0, %s176
      %s191 = sphi 0, %s177
      %s195 = sphi 0, %s195
      %s197 = sphi 0, %s195
      %s198 = sphi 0, %s197
      %s212 = sphi 0, %s198
      %s216 = sphi 0, %s216
      %s218 = sphi 0, %s216
      %s219 = sphi 0, %s218
      %s233 = sphi 0, %s219
      %s237 = sphi 0, %s237
      %s239 = sphi 0, %s237
      %s240 = sphi 0, %s239
      %s254 = sphi 0, %s240
      %s258 = sphi 0, %s258
      %s260 = sphi 0, %s258
      %s261 = sphi 0, %s260
      %s275 = sphi 0, %s261
      %s279 = sphi 0, %s279
      %s281 = sphi 0, %s279
      %s282 = sphi 0, %s281
      %s296 = sphi 0, %s282
      %s300 = sphi 0, %s300
      %s302 = sphi 0, %s300
      %s303 = sphi 0, %s302
      %s317 = sphi 0, %s303
      %s321 = sphi 0, %s321
      %s323 = sphi 0, %s321
      %s324 = sphi 0, %s323
      %s338 = sphi 0, %s324
      %s342 = sphi 0, %s342
      %s344 = sphi 0, %s342
      %s345 = sphi 0, %s344
      %s359 = sphi 0, %s345
      %s363 = sphi 0, %s363
      %s365 = sphi 0, %s363
      %s366 = sphi 0, %s365
      %s380 = sphi 0, %s366
      %s384 = sphi 0, %s384
      %s386 = sphi 0, %s384
      %s387 = sphi 0, %s386
      %s401 = sphi 0, %s387
      %s407 = sphi 0, %s409
      %s410 = sphi 0, %s407
      %s411 = sphi 0, %s410
      %s427 = sphi 0, %s411
    $region4: #{tpu_custom_call.1} parent=1 // loop_header_branch
      %33 = sbr.rel (%p31) target = $region8
    $region5: #{tpu_custom_call.1} parent=1 // loop_body
      %s35 = ssub.s32 %s30, 1
      %s36 = ssub.s32 %s30, 2
      %s37 = sadd.s32 %s30, 1
      %s38 = ssub.s32 %s30, %s37
      %p39 = scmp.eq.s32.totalorder %s38, 0
      %s41 = sadd.s32 %s40, 1
      %s42 = scalar_select %p39, %s40, %s41
      %p45 = pneg %p39
      %p46 = scmp.eq.s32.totalorder %s30, 1
      %p47 = por %p45, %p46
      %p48 = scmp.ne.s32.totalorder %s40, %s43
      %p49 = scmp.eq.s32.totalorder %s30, 0
      %p50 = por %p48, %p49
      %p51 = scmp.ne.s32.totalorder %s40, %s43
      %p52 = scmp.eq.s32.totalorder %s35, 1
      %p53 = por %p51, %p52
      %p54 = scmp.ne.s32.totalorder %s43, %s44
      %p55 = scmp.eq.s32.totalorder %s35, 0
      %p56 = por %p54, %p55
      %p57 = scmp.ne.s32.totalorder %s43, %s44
      %p58 = scmp.eq.s32.totalorder %s36, 1
      %p59 = por %p57, %p58
      %p61 = scmp.ne.s32.totalorder %s44, %s60
      %p62 = scmp.eq.s32.totalorder %s36, 0
      %p63 = por %p61, %p62
      %s65 = sadd.s32 %s64, 1
      %p68 = scmp.eq.s32.totalorder %s30, 1
      %p69 = scmp.ne.s32.totalorder %s64, %s66
      %p70 = scmp.eq.s32.totalorder %s30, 0
      %p71 = por %p69, %p70
      %p72 = scmp.ne.s32.totalorder %s64, %s66
      %p73 = scmp.eq.s32.totalorder %s35, 1
      %p74 = por %p72, %p73
      %p75 = scmp.ne.s32.totalorder %s66, %s67
      %p76 = scmp.eq.s32.totalorder %s35, 0
      %p77 = por %p75, %p76
      %p78 = scmp.ne.s32.totalorder %s66, %s67
      %p79 = scmp.eq.s32.totalorder %s36, 1
      %p80 = por %p78, %p79
      %p82 = scmp.ne.s32.totalorder %s67, %s81
      %p83 = scmp.eq.s32.totalorder %s36, 0
      %p84 = por %p82, %p83
      %s85 = ssub.s32 %s30, %s37
      %p86 = scmp.eq.s32.totalorder %s85, 0
      %s88 = sadd.s32 %s87, 1
      %s89 = scalar_select %p86, %s87, %s88
      %p92 = pneg %p86
      %p93 = scmp.eq.s32.totalorder %s30, 1
      %p94 = por %p92, %p93
      %p95 = scmp.ne.s32.totalorder %s87, %s90
      %p96 = scmp.eq.s32.totalorder %s30, 0
      %p97 = por %p95, %p96
      %p98 = scmp.ne.s32.totalorder %s87, %s90
      %p99 = scmp.eq.s32.totalorder %s35, 1
      %p100 = por %p98, %p99
      %p101 = scmp.ne.s32.totalorder %s90, %s91
      %p102 = scmp.eq.s32.totalorder %s35, 0
      %p103 = por %p101, %p102
      %p104 = scmp.ne.s32.totalorder %s90, %s91
      %p105 = scmp.eq.s32.totalorder %s36, 1
      %p106 = por %p104, %p105
      %p108 = scmp.ne.s32.totalorder %s91, %s107
      %p109 = scmp.eq.s32.totalorder %s36, 0
      %p110 = por %p108, %p109
      %s112 = sadd.s32 %s111, 1
      %p115 = scmp.eq.s32.totalorder %s30, 1
      %p116 = scmp.ne.s32.totalorder %s111, %s113
      %p117 = scmp.eq.s32.totalorder %s30, 0
      %p118 = por %p116, %p117
      %p119 = scmp.ne.s32.totalorder %s111, %s113
      %p120 = scmp.eq.s32.totalorder %s35, 1
      %p121 = por %p119, %p120
      %p122 = scmp.ne.s32.totalorder %s113, %s114
      %p123 = scmp.eq.s32.totalorder %s35, 0
      %p124 = por %p122, %p123
      %p125 = scmp.ne.s32.totalorder %s113, %s114
      %p126 = scmp.eq.s32.totalorder %s36, 1
      %p127 = por %p125, %p126
      %p129 = scmp.ne.s32.totalorder %s114, %s128
      %p130 = scmp.eq.s32.totalorder %s36, 0
      %p131 = por %p129, %p130
      %s133 = sadd.s32 %s132, 1
      %p136 = scmp.eq.s32.totalorder %s30, 1
      %p137 = scmp.ne.s32.totalorder %s132, %s134
      %p138 = scmp.eq.s32.totalorder %s30, 0
      %p139 = por %p137, %p138
      %p140 = scmp.ne.s32.totalorder %s132, %s134
      %p141 = scmp.eq.s32.totalorder %s35, 1
      %p142 = por %p140, %p141
      %p143 = scmp.ne.s32.totalorder %s134, %s135
      %p144 = scmp.eq.s32.totalorder %s35, 0
      %p145 = por %p143, %p144
      %p146 = scmp.ne.s32.totalorder %s134, %s135
      %p147 = scmp.eq.s32.totalorder %s36, 1
      %p148 = por %p146, %p147
      %p150 = scmp.ne.s32.totalorder %s135, %s149
      %p151 = scmp.eq.s32.totalorder %s36, 0
      %p152 = por %p150, %p151
      %s154 = sadd.s32 %s153, 1
      %p157 = scmp.eq.s32.totalorder %s30, 1
      %p158 = scmp.ne.s32.totalorder %s153, %s155
      %p159 = scmp.eq.s32.totalorder %s30, 0
      %p160 = por %p158, %p159
      %p161 = scmp.ne.s32.totalorder %s153, %s155
      %p162 = scmp.eq.s32.totalorder %s35, 1
      %p163 = por %p161, %p162
      %p164 = scmp.ne.s32.totalorder %s155, %s156
      %p165 = scmp.eq.s32.totalorder %s35, 0
      %p166 = por %p164, %p165
      %p167 = scmp.ne.s32.totalorder %s155, %s156
      %p168 = scmp.eq.s32.totalorder %s36, 1
      %p169 = por %p167, %p168
      %p171 = scmp.ne.s32.totalorder %s156, %s170
      %p172 = scmp.eq.s32.totalorder %s36, 0
      %p173 = por %p171, %p172
      %s175 = sadd.s32 %s174, 1
      %p178 = scmp.eq.s32.totalorder %s30, 1
      %p179 = scmp.ne.s32.totalorder %s174, %s176
      %p180 = scmp.eq.s32.totalorder %s30, 0
      %p181 = por %p179, %p180
      %p182 = scmp.ne.s32.totalorder %s174, %s176
      %p183 = scmp.eq.s32.totalorder %s35, 1
      %p184 = por %p182, %p183
      %p185 = scmp.ne.s32.totalorder %s176, %s177
      %p186 = scmp.eq.s32.totalorder %s35, 0
      %p187 = por %p185, %p186
      %p188 = scmp.ne.s32.totalorder %s176, %s177
      %p189 = scmp.eq.s32.totalorder %s36, 1
      %p190 = por %p188, %p189
      %p192 = scmp.ne.s32.totalorder %s177, %s191
      %p193 = scmp.eq.s32.totalorder %s36, 0
      %p194 = por %p192, %p193
      %s196 = sadd.s32 %s195, 1
      %p199 = scmp.eq.s32.totalorder %s30, 1
      %p200 = scmp.ne.s32.totalorder %s195, %s197
      %p201 = scmp.eq.s32.totalorder %s30, 0
      %p202 = por %p200, %p201
      %p203 = scmp.ne.s32.totalorder %s195, %s197
      %p204 = scmp.eq.s32.totalorder %s35, 1
      %p205 = por %p203, %p204
      %p206 = scmp.ne.s32.totalorder %s197, %s198
      %p207 = scmp.eq.s32.totalorder %s35, 0
      %p208 = por %p206, %p207
      %p209 = scmp.ne.s32.totalorder %s197, %s198
      %p210 = scmp.eq.s32.totalorder %s36, 1
      %p211 = por %p209, %p210
      %p213 = scmp.ne.s32.totalorder %s198, %s212
      %p214 = scmp.eq.s32.totalorder %s36, 0
      %p215 = por %p213, %p214
      %s217 = sadd.s32 %s216, 1
      %p220 = scmp.eq.s32.totalorder %s30, 1
      %p221 = scmp.ne.s32.totalorder %s216, %s218
      %p222 = scmp.eq.s32.totalorder %s30, 0
      %p223 = por %p221, %p222
      %p224 = scmp.ne.s32.totalorder %s216, %s218
      %p225 = scmp.eq.s32.totalorder %s35, 1
      %p226 = por %p224, %p225
      %p227 = scmp.ne.s32.totalorder %s218, %s219
      %p228 = scmp.eq.s32.totalorder %s35, 0
      %p229 = por %p227, %p228
      %p230 = scmp.ne.s32.totalorder %s218, %s219
      %p231 = scmp.eq.s32.totalorder %s36, 1
      %p232 = por %p230, %p231
      %p234 = scmp.ne.s32.totalorder %s219, %s233
      %p235 = scmp.eq.s32.totalorder %s36, 0
      %p236 = por %p234, %p235
      %s238 = sadd.s32 %s237, 1
      %p241 = scmp.eq.s32.totalorder %s30, 1
      %p242 = scmp.ne.s32.totalorder %s237, %s239
      %p243 = scmp.eq.s32.totalorder %s30, 0
      %p244 = por %p242, %p243
      %p245 = scmp.ne.s32.totalorder %s237, %s239
      %p246 = scmp.eq.s32.totalorder %s35, 1
      %p247 = por %p245, %p246
      %p248 = scmp.ne.s32.totalorder %s239, %s240
      %p249 = scmp.eq.s32.totalorder %s35, 0
      %p250 = por %p248, %p249
      %p251 = scmp.ne.s32.totalorder %s239, %s240
      %p252 = scmp.eq.s32.totalorder %s36, 1
      %p253 = por %p251, %p252
      %p255 = scmp.ne.s32.totalorder %s240, %s254
      %p256 = scmp.eq.s32.totalorder %s36, 0
      %p257 = por %p255, %p256
      %s259 = sadd.s32 %s258, 1
      %p262 = scmp.eq.s32.totalorder %s30, 1
      %p263 = scmp.ne.s32.totalorder %s258, %s260
      %p264 = scmp.eq.s32.totalorder %s30, 0
      %p265 = por %p263, %p264
      %p266 = scmp.ne.s32.totalorder %s258, %s260
      %p267 = scmp.eq.s32.totalorder %s35, 1
      %p268 = por %p266, %p267
      %p269 = scmp.ne.s32.totalorder %s260, %s261
      %p270 = scmp.eq.s32.totalorder %s35, 0
      %p271 = por %p269, %p270
      %p272 = scmp.ne.s32.totalorder %s260, %s261
      %p273 = scmp.eq.s32.totalorder %s36, 1
      %p274 = por %p272, %p273
      %p276 = scmp.ne.s32.totalorder %s261, %s275
      %p277 = scmp.eq.s32.totalorder %s36, 0
      %p278 = por %p276, %p277
      %s280 = sadd.s32 %s279, 1
      %p283 = scmp.eq.s32.totalorder %s30, 1
      %p284 = scmp.ne.s32.totalorder %s279, %s281
      %p285 = scmp.eq.s32.totalorder %s30, 0
      %p286 = por %p284, %p285
      %p287 = scmp.ne.s32.totalorder %s279, %s281
      %p288 = scmp.eq.s32.totalorder %s35, 1
      %p289 = por %p287, %p288
      %p290 = scmp.ne.s32.totalorder %s281, %s282
      %p291 = scmp.eq.s32.totalorder %s35, 0
      %p292 = por %p290, %p291
      %p293 = scmp.ne.s32.totalorder %s281, %s282
      %p294 = scmp.eq.s32.totalorder %s36, 1
      %p295 = por %p293, %p294
      %p297 = scmp.ne.s32.totalorder %s282, %s296
      %p298 = scmp.eq.s32.totalorder %s36, 0
      %p299 = por %p297, %p298
      %s301 = sadd.s32 %s300, 1
      %p304 = scmp.eq.s32.totalorder %s30, 1
      %p305 = scmp.ne.s32.totalorder %s300, %s302
      %p306 = scmp.eq.s32.totalorder %s30, 0
      %p307 = por %p305, %p306
      %p308 = scmp.ne.s32.totalorder %s300, %s302
      %p309 = scmp.eq.s32.totalorder %s35, 1
      %p310 = por %p308, %p309
      %p311 = scmp.ne.s32.totalorder %s302, %s303
      %p312 = scmp.eq.s32.totalorder %s35, 0
      %p313 = por %p311, %p312
      %p314 = scmp.ne.s32.totalorder %s302, %s303
      %p315 = scmp.eq.s32.totalorder %s36, 1
      %p316 = por %p314, %p315
      %p318 = scmp.ne.s32.totalorder %s303, %s317
      %p319 = scmp.eq.s32.totalorder %s36, 0
      %p320 = por %p318, %p319
      %s322 = sadd.s32 %s321, 1
      %p325 = scmp.eq.s32.totalorder %s30, 1
      %p326 = scmp.ne.s32.totalorder %s321, %s323
      %p327 = scmp.eq.s32.totalorder %s30, 0
      %p328 = por %p326, %p327
      %p329 = scmp.ne.s32.totalorder %s321, %s323
      %p330 = scmp.eq.s32.totalorder %s35, 1
      %p331 = por %p329, %p330
      %p332 = scmp.ne.s32.totalorder %s323, %s324
      %p333 = scmp.eq.s32.totalorder %s35, 0
      %p334 = por %p332, %p333
      %p335 = scmp.ne.s32.totalorder %s323, %s324
      %p336 = scmp.eq.s32.totalorder %s36, 1
      %p337 = por %p335, %p336
      %p339 = scmp.ne.s32.totalorder %s324, %s338
      %p340 = scmp.eq.s32.totalorder %s36, 0
      %p341 = por %p339, %p340
      %s343 = sadd.s32 %s342, 1
      %p346 = scmp.eq.s32.totalorder %s30, 1
      %p347 = scmp.ne.s32.totalorder %s342, %s344
      %p348 = scmp.eq.s32.totalorder %s30, 0
      %p349 = por %p347, %p348
      %p350 = scmp.ne.s32.totalorder %s342, %s344
      %p351 = scmp.eq.s32.totalorder %s35, 1
      %p352 = por %p350, %p351
      %p353 = scmp.ne.s32.totalorder %s344, %s345
      %p354 = scmp.eq.s32.totalorder %s35, 0
      %p355 = por %p353, %p354
      %p356 = scmp.ne.s32.totalorder %s344, %s345
      %p357 = scmp.eq.s32.totalorder %s36, 1
      %p358 = por %p356, %p357
      %p360 = scmp.ne.s32.totalorder %s345, %s359
      %p361 = scmp.eq.s32.totalorder %s36, 0
      %p362 = por %p360, %p361
      %s364 = sadd.s32 %s363, 1
      %p367 = scmp.eq.s32.totalorder %s30, 1
      %p368 = scmp.ne.s32.totalorder %s363, %s365
      %p369 = scmp.eq.s32.totalorder %s30, 0
      %p370 = por %p368, %p369
      %p371 = scmp.ne.s32.totalorder %s363, %s365
      %p372 = scmp.eq.s32.totalorder %s35, 1
      %p373 = por %p371, %p372
      %p374 = scmp.ne.s32.totalorder %s365, %s366
      %p375 = scmp.eq.s32.totalorder %s35, 0
      %p376 = por %p374, %p375
      %p377 = scmp.ne.s32.totalorder %s365, %s366
      %p378 = scmp.eq.s32.totalorder %s36, 1
      %p379 = por %p377, %p378
      %p381 = scmp.ne.s32.totalorder %s366, %s380
      %p382 = scmp.eq.s32.totalorder %s36, 0
      %p383 = por %p381, %p382
      %s385 = sadd.s32 %s384, 1
      %p388 = scmp.eq.s32.totalorder %s30, 1
      %p389 = scmp.ne.s32.totalorder %s384, %s386
      %p390 = scmp.eq.s32.totalorder %s30, 0
      %p391 = por %p389, %p390
      %p392 = scmp.ne.s32.totalorder %s384, %s386
      %p393 = scmp.eq.s32.totalorder %s35, 1
      %p394 = por %p392, %p393
      %p395 = scmp.ne.s32.totalorder %s386, %s387
      %p396 = scmp.eq.s32.totalorder %s35, 0
      %p397 = por %p395, %p396
      %p398 = scmp.ne.s32.totalorder %s386, %s387
      %p399 = scmp.eq.s32.totalorder %s36, 1
      %p400 = por %p398, %p399
      %p402 = scmp.ne.s32.totalorder %s387, %s401
      %p403 = scmp.eq.s32.totalorder %s36, 0
      %p404 = por %p402, %p403
      %s405 = ssub.s32 %s30, %s37
      %p406 = scmp.eq.s32.totalorder %s405, 0
      %s408 = sadd.s32 %s407, 1
      %s409 = scalar_select %p406, %s407, %s408
      %p412 = pneg %p406
      %p413 = scmp.eq.s32.totalorder %s30, 1
      %p414 = por %p412, %p413
      %p415 = scmp.ne.s32.totalorder %s407, %s410
      %p416 = scmp.eq.s32.totalorder %s30, 0
      %p417 = por %p415, %p416
      %p418 = scmp.ne.s32.totalorder %s407, %s410
      %p419 = scmp.eq.s32.totalorder %s35, 1
      %p420 = por %p418, %p419
      %p421 = scmp.ne.s32.totalorder %s410, %s411
      %p422 = scmp.eq.s32.totalorder %s35, 0
      %p423 = por %p421, %p422
      %p424 = scmp.ne.s32.totalorder %s410, %s411
      %p425 = scmp.eq.s32.totalorder %s36, 1
      %p426 = por %p424, %p425
      %p428 = scmp.ne.s32.totalorder %s411, %s427
      %p429 = scmp.eq.s32.totalorder %s36, 0
      %p430 = por %p428, %p429
      %p431 = scmp.le.s32.totalorder 1, %s30
      %p432 = scmp.lt.s32.totalorder %s30, 3
      %p433 = pnand %p431, %p432
      %p434 = pneg %p433
      // Predicated region
      $region9: #{tpu_custom_call.1} parent=5 // pred_check
        _
      $region10: #{tpu_custom_call.1} parent=5 // pred_check_branch
        %436 = sbr.rel (%p433) target = $region12
      $region11: #{tpu_custom_call.1} parent=5 // pred_region
        %s437 = ssub.s32 %s30, 1
        // Predicated region
        $region13: #{tpu_custom_call.1} parent=11 // pred_check
          %p438 = pneg %p77
        $region14: #{tpu_custom_call.1} parent=11 // pred_check_branch
          %440 = sbr.rel (%p438) target = $region16
        $region15: #{tpu_custom_call.1} parent=11 // pred_region
          %s442 = ssub.s32 128, 128
          %443 = vsyncadd [#allocation6], %s442
          %s445 = sshll.u32 [#allocation5], 4
          %s446 = int_to_ptr.vmem [resolvable:$true] %s445
          %448 = dma.hbm_to_vmem [thread:$0]  %s1, 128, %s446, [#allocation6]
        $region16: #{tpu_custom_call.1} parent=11 // pred_fallthru
          _
        // Predicated region
        $region17: #{tpu_custom_call.1} parent=11 // pred_check
          %p449 = pneg %p124
        $region18: #{tpu_custom_call.1} parent=11 // pred_check_branch
          %451 = sbr.rel (%p449) target = $region20
        $region19: #{tpu_custom_call.1} parent=11 // pred_region
          _
        $region20: #{tpu_custom_call.1} parent=11 // pred_fallthru
          _
        // Predicated region
        $region21: #{tpu_custom_call.1} parent=11 // pred_check
          %p452 = pneg %p145
        $region22: #{tpu_custom_call.1} parent=11 // pred_check_branch
          %454 = sbr.rel (%p452) target = $region24
        $region23: #{tpu_custom_call.1} parent=11 // pred_region
          _
        $region24: #{tpu_custom_call.1} parent=11 // pred_fallthru
          _
        // Predicated region
        $region25: #{tpu_custom_call.1} parent=11 // pred_check
          %p455 = pneg %p166
        $region26: #{tpu_custom_call.1} parent=11 // pred_check_branch
          %457 = sbr.rel (%p455) target = $region28
        $region27: #{tpu_custom_call.1} parent=11 // pred_region
          _
        $region28: #{tpu_custom_call.1} parent=11 // pred_fallthru
          _
        // Predicated region
        $region29: #{tpu_custom_call.1} parent=11 // pred_check
          %p458 = pneg %p187
        $region30: #{tpu_custom_call.1} parent=11 // pred_check_branch
          %460 = sbr.rel (%p458) target = $region32
        $region31: #{tpu_custom_call.1} parent=11 // pred_region
          _
        $region32: #{tpu_custom_call.1} parent=11 // pred_fallthru
          _
        // Predicated region
        $region33: #{tpu_custom_call.1} parent=11 // pred_check
          %p461 = pneg %p208
        $region34: #{tpu_custom_call.1} parent=11 // pred_check_branch
          %463 = sbr.rel (%p461) target = $region36
        $region35: #{tpu_custom_call.1} parent=11 // pred_region
          _
        $region36: #{tpu_custom_call.1} parent=11 // pred_fallthru
          _
        // Predicated region
        $region37: #{tpu_custom_call.1} parent=11 // pred_check
          %p464 = pneg %p229
        $region38: #{tpu_custom_call.1} parent=11 // pred_check_branch
          %466 = sbr.rel (%p464) target = $region40
        $region39: #{tpu_custom_call.1} parent=11 // pred_region
          _
        $region40: #{tpu_custom_call.1} parent=11 // pred_fallthru
          _
        // Predicated region
        $region41: #{tpu_custom_call.1} parent=11 // pred_check
          %p467 = pneg %p250
        $region42: #{tpu_custom_call.1} parent=11 // pred_check_branch
          %469 = sbr.rel (%p467) target = $region44
        $region43: #{tpu_custom_call.1} parent=11 // pred_region
          _
        $region44: #{tpu_custom_call.1} parent=11 // pred_fallthru
          _
        // Predicated region
        $region45: #{tpu_custom_call.1} parent=11 // pred_check
          %p470 = pneg %p271
        $region46: #{tpu_custom_call.1} parent=11 // pred_check_branch
          %472 = sbr.rel (%p470) target = $region48
        $region47: #{tpu_custom_call.1} parent=11 // pred_region
          _
        $region48: #{tpu_custom_call.1} parent=11 // pred_fallthru
          _
        // Predicated region
        $region49: #{tpu_custom_call.1} parent=11 // pred_check
          %p473 = pneg %p292
        $region50: #{tpu_custom_call.1} parent=11 // pred_check_branch
          %475 = sbr.rel (%p473) target = $region52
        $region51: #{tpu_custom_call.1} parent=11 // pred_region
          _
        $region52: #{tpu_custom_call.1} parent=11 // pred_fallthru
          _
        // Predicated region
        $region53: #{tpu_custom_call.1} parent=11 // pred_check
          %p476 = pneg %p313
        $region54: #{tpu_custom_call.1} parent=11 // pred_check_branch
          %478 = sbr.rel (%p476) target = $region56
        $region55: #{tpu_custom_call.1} parent=11 // pred_region
          _
        $region56: #{tpu_custom_call.1} parent=11 // pred_fallthru
          _
        // Predicated region
        $region57: #{tpu_custom_call.1} parent=11 // pred_check
          %p479 = pneg %p334
        $region58: #{tpu_custom_call.1} parent=11 // pred_check_branch
          %481 = sbr.rel (%p479) target = $region60
        $region59: #{tpu_custom_call.1} parent=11 // pred_region
          _
        $region60: #{tpu_custom_call.1} parent=11 // pred_fallthru
          _
        // Predicated region
        $region61: #{tpu_custom_call.1} parent=11 // pred_check
          %p482 = pneg %p355
        $region62: #{tpu_custom_call.1} parent=11 // pred_check_branch
          %484 = sbr.rel (%p482) target = $region64
        $region63: #{tpu_custom_call.1} parent=11 // pred_region
          _
        $region64: #{tpu_custom_call.1} parent=11 // pred_fallthru
          _
        // Predicated region
        $region65: #{tpu_custom_call.1} parent=11 // pred_check
          %p485 = pneg %p376
        $region66: #{tpu_custom_call.1} parent=11 // pred_check_branch
          %487 = sbr.rel (%p485) target = $region68
        $region67: #{tpu_custom_call.1} parent=11 // pred_region
          _
        $region68: #{tpu_custom_call.1} parent=11 // pred_fallthru
          _
        // Predicated region
        $region69: #{tpu_custom_call.1} parent=11 // pred_check
          %p488 = pneg %p397
        $region70: #{tpu_custom_call.1} parent=11 // pred_check_branch
          %490 = sbr.rel (%p488) target = $region72
        $region71: #{tpu_custom_call.1} parent=11 // pred_region
          _
        $region72: #{tpu_custom_call.1} parent=11 // pred_fallthru
          _
      $region12: #{tpu_custom_call.1} parent=5 // pred_fallthru
        _
      %p491 = scmp.lt.s32.totalorder %s30, 2
      // Predicated region
      $region73: #{tpu_custom_call.1} parent=5 // pred_check
        %p492 = pneg %p491
      $region74: #{tpu_custom_call.1} parent=5 // pred_check_branch
        %494 = sbr.rel (%p492) target = $region76
      $region75: #{tpu_custom_call.1} parent=5 // pred_region
        // Predicated region
        $region77: #{tpu_custom_call.1} parent=75 // pred_check
          %p495 = pneg %p50
        $region78: #{tpu_custom_call.1} parent=75 // pred_check_branch
          %497 = sbr.rel (%p495) target = $region80
        $region79: #{tpu_custom_call.1} parent=75 // pred_region
          %s498 = sand.u32 %s40, 1
          %s499 = scalar_lea.sflag [#allocation3], %s498
          %s500 = sand.u32 %s40, 1
          %s501 = smul.addr %s500, 8
          %s502 = scalar_lea.vmem [#allocation2], %s501
          %s504 = ssub.s32 128, 128
          %505 = vsyncadd %s499, %s504
          %s506 = smul.addr %s30, 128
          %s507 = scalar_lea.hbm %s0, %s506
          %s509 = sshll.u32 %s502, 4
          %s510 = int_to_ptr.vmem [resolvable:$true] %s509
          %512 = dma.hbm_to_vmem [thread:$0]  %s507, 128, %s510, %s499
        $region80: #{tpu_custom_call.1} parent=75 // pred_fallthru
          _
        // Predicated region
        $region81: #{tpu_custom_call.1} parent=75 // pred_check
          %p513 = pneg %p97
        $region82: #{tpu_custom_call.1} parent=75 // pred_check_branch
          %515 = sbr.rel (%p513) target = $region84
        $region83: #{tpu_custom_call.1} parent=75 // pred_region
          %p516 = scmp.lt.s32.totalorder %s30, 1
          %s517 = scalar_select %p516, %s30, 1
          %s518 = scalar_lea.vmem %s2, %s517
        $region84: #{tpu_custom_call.1} parent=75 // pred_fallthru
          _
      $region76: #{tpu_custom_call.1} parent=5 // pred_fallthru
        _
      %p519 = scmp.le.s32.totalorder 1, %s30
      %p520 = scmp.lt.s32.totalorder %s30, 3
      %p521 = pnand %p519, %p520
      %p522 = pneg %p521
      // Predicated region
      $region85: #{tpu_custom_call.1} parent=5 // pred_check
        _
      $region86: #{tpu_custom_call.1} parent=5 // pred_check_branch
        %524 = sbr.rel (%p521) target = $region88
      $region87: #{tpu_custom_call.1} parent=5 // pred_region
        %s525 = ssub.s32 %s30, 1
        %s526 = sand.u32 %s43, 1
        %s527 = scalar_lea.sflag [#allocation3], %s526
        %s528 = sand.u32 %s43, 1
        %s529 = smul.addr %s528, 8
        %s530 = scalar_lea.vmem [#allocation2], %s529
        // Predicated region
        $region89: #{tpu_custom_call.1} parent=87 // pred_check
          %p531 = pneg %p56
        $region90: #{tpu_custom_call.1} parent=87 // pred_check_branch
          %533 = sbr.rel (%p531) target = $region92
        $region91: #{tpu_custom_call.1} parent=87 // pred_region
          %534 = dma.done %s527, 128
        $region92: #{tpu_custom_call.1} parent=87 // pred_fallthru
          _
        // Predicated region
        $region93: #{tpu_custom_call.1} parent=87 // pred_check
          %p535 = pneg %p77
        $region94: #{tpu_custom_call.1} parent=87 // pred_check_branch
          %537 = sbr.rel (%p535) target = $region96
        $region95: #{tpu_custom_call.1} parent=87 // pred_region
          %538 = dma.done [#allocation6], 128
        $region96: #{tpu_custom_call.1} parent=87 // pred_fallthru
          _
        %s539 = sand.u32 %s43, 1
        %s540 = scalar_lea.sflag [#allocation3], %s539
        %s541 = sand.u32 %s43, 1
        %s542 = smul.addr %s541, 8
        %s543 = scalar_lea.vmem [#allocation2], %s542
        %p544 = pneg %p56
        %p545 = pneg %p53
        %p546 = pneg %p77
        %p547 = pneg %p74
        %p548 = scmp.lt.s32.totalorder %s35, 1
        %s549 = scalar_select %p548, %s35, 1
        %s550 = scalar_lea.vmem %s2, %s549
        %p551 = pneg %p103
        %p552 = pneg %p100
        %p553 = pneg %p124
        %p554 = pneg %p121
        %p555 = pneg %p145
        %p556 = pneg %p142
        %p557 = pneg %p166
        %p558 = pneg %p163
        %p559 = pneg %p187
        %p560 = pneg %p184
        %p561 = pneg %p208
        %p562 = pneg %p205
        %p563 = pneg %p229
        %p564 = pneg %p226
        %p565 = pneg %p250
        %p566 = pneg %p247
        %p567 = pneg %p271
        %p568 = pneg %p268
        %p569 = pneg %p292
        %p570 = pneg %p289
        %p571 = pneg %p313
        %p572 = pneg %p310
        %p573 = pneg %p334
        %p574 = pneg %p331
        %p575 = pneg %p355
        %p576 = pneg %p352
        %p577 = pneg %p376
        %p578 = pneg %p373
        %p579 = pneg %p397
        %p580 = pneg %p394
        %p581 = pneg %p423
        %p582 = pneg %p420
        %s583 = sand.u32 %s410, 1
        %s584 = scalar_lea.sflag [#allocation4], %s583
        %s585 = sand.u32 %s410, 1
        %s586 = smul.addr %s585, 8
        %s587 = scalar_lea.vmem [#allocation7], %s586
        %p588 = scmp.lt.s32.totalorder %s35, 1
        %s589 = scalar_select %p588, %s35, 1
        %s590 = scalar_lea.vmem %s2, %s589
        %v591 = vld [vmem:[%s530] sm:$0xff]
        %v592 = vld [vmem:[#allocation5] sm:$0xff]
        %v593 = vadd.f32 %v591, %v592
        %v594 = vld [vmem:[%s590] sm:$0x1]
        %v596 = vlaneseq
        %v597 = vshrl.u32 %v596, 7
        %v598 = vsub.s32 0, %v597
        %v599 = vrot.slane %v594, %v598
        %v601 = vld [vmem:[%s3] sm:$0x1]
        %v602 = vld [vmem:[%s4] sm:$0x1]
        %vm603 = vcmask 261120
        %v604 = vsel %vm603, %v593, 0.0
        %605 = vadd.xlane.f32.xlu0 %v604
        %v606 = vpop.xlane.xlu0 %605
        %v607 = vrcp.pop 32.0
        %v608 = vmul.f32 %v606, %v607
        %v609 = vsub.f32 %v593, %v608
        %v610 = vmul.f32 %v609, %v609
        %v611 = vsel %vm603, %v610, 0.0
        %612 = vadd.xlane.f32.xlu0 %v611
        %v613 = vpop.xlane.xlu0 %612
        %v614 = vmul.f32 %v613, %v607
        %v615 = vadd.f32 %v614, 1e-05
        %v616 = vrsqrt.pop %v615
        %v617 = vmul.f32 %v609, %v616
        %v619 = vlaneseq
        %v620 = vshrl.u32 %v619, 7
        %v621 = vsub.s32 0, %v620
        %v622 = vrot.slane %v601, %v621
        %v624 = vmul.f32 %v617, %v622
        %v626 = vlaneseq
        %v627 = vshrl.u32 %v626, 7
        %v628 = vsub.s32 0, %v627
        %v629 = vrot.slane %v602, %v628
        %v631 = vadd.f32 %v624, %v629
        %v632 = vld [vmem:[%s5] sm:$0xff]
        %v633 = vld [vmem:[%s5 + $0x8] sm:$0xff]
        %v634 = vld [vmem:[%s5 + $0x10] sm:$0xff]
        %v635 = vld [vmem:[%s5 + $0x18] sm:$0xff]
        %v636 = vld [vmem:[%s6] sm:$0x1]
        %v638 = vlaneseq
        %v639 = vshrl.u32 %v638, 7
        %v640 = vsub.s32 0, %v639
        %v641 = vrot.slane %v636, %v640
        %v644 = vsel %vm603, %v631, 0
        %646 = vmatprep.subr.mxu0 0.0
        %647 = vmatpush1.msra.mxu0 %v632
        %648 = vmatprep.subr.mxu0 0.0
        %649 = vmatpush1.msra.mxu0 %v633
        %650 = vmatprep.subr.mxu0 0.0
        %651 = vmatpush1.msra.mxu0 %v634
        %652 = vmatprep.subr.mxu0 0.0
        %653 = vmatpush1.msra.mxu0 %v635
        %654 = vmatprep.subr.mxu0 0.0
        %655 = vmatpush1.msra.mxu0 0.0
        %656 = vmatprep.subr.mxu0 0.0
        %657 = vmatpush1.msra.mxu0 0.0
        %658 = vmatprep.subr.mxu0 0.0
        %659 = vmatpush1.msra.mxu0 0.0
        %660 = vmatprep.subr.mxu0 0.0
        %661 = vmatpush1.msra.mxu0 0.0
        %662 = vmatprep.subr.mxu0 0.0
        %663 = vmatpush1.msra.mxu0 0.0
        %664 = vmatprep.subr.mxu0 0.0
        %665 = vmatpush1.msra.mxu0 0.0
        %666 = vmatprep.subr.mxu0 0.0
        %667 = vmatpush1.msra.mxu0 0.0
        %668 = vmatprep.subr.mxu0 0.0
        %669 = vmatpush1.msra.mxu0 0.0
        %670 = vmatprep.subr.mxu0 0.0
        %671 = vmatpush1.msra.mxu0 0.0
        %672 = vmatprep.subr.mxu0 0.0
        %673 = vmatpush1.msra.mxu0 0.0
        %674 = vmatprep.subr.mxu0 0.0
        %675 = vmatpush1.msra.mxu0 0.0
        %676 = vmatprep.subr.mxu0 0.0
        %677 = vmatpush1.msra.mxu0 0.0
        %678 = vmatprep.subr.mxu0 0.0
        %679 = vmatpush1.msra.mxu0 0.0
        %680 = vmatprep.subr.mxu0 0.0
        %681 = vmatpush1.msra.mxu0 0.0
        %682 = vmatprep.subr.mxu0 0.0
        %683 = vmatpush1.msra.mxu0 0.0
        %684 = vmatprep.subr.mxu0 0.0
        %685 = vmatpush1.msra.mxu0 0.0
        %686 = vmatprep.subr.mxu0 0.0
        %687 = vmatpush1.msra.mxu0 0.0
        %688 = vmatprep.subr.mxu0 0.0
        %689 = vmatpush1.msra.mxu0 0.0
        %690 = vmatprep.subr.mxu0 0.0
        %691 = vmatpush1.msra.mxu0 0.0
        %692 = vmatprep.subr.mxu0 0.0
        %693 = vmatpush1.msra.mxu0 0.0
        %694 = vmatprep.subr.mxu0 0.0
        %695 = vmatpush1.msra.mxu0 0.0
        %696 = vmatprep.subr.mxu0 0.0
        %697 = vmatpush1.msra.mxu0 0.0
        %698 = vmatprep.subr.mxu0 0.0
        %699 = vmatpush1.msra.mxu0 0.0
        %700 = vmatprep.subr.mxu0 0.0
        %701 = vmatpush1.msra.mxu0 0.0
        %702 = vmatprep.subr.mxu0 0.0
        %703 = vmatpush1.msra.mxu0 0.0
        %704 = vmatprep.subr.mxu0 0.0
        %705 = vmatpush1.msra.mxu0 0.0
        %706 = vmatprep.subr.mxu0 0.0
        %707 = vmatpush1.msra.mxu0 0.0
        %708 = vmatprep.subr.mxu0 0.0
        %709 = vmatpush1.msra.mxu0 0.0
        %710 = vmatprep.mubr.f32.mxu0 0.0
        %711 = vmatmul.mubr.f32.gmra.mrb[0].mxu0 %v644
        %v712 = vpop.f32.mrb[0].mxu0
        %v713 = vadd.f32 %v641, %v712
        %v714 = vpop.f32.mrb[0].mxu0
        %715 = vdwg.mxu0
        %717 = vrot.lane.b32.xlu0 %v713, 96
        %v718 = vpop.permute.xlu0 %717
        %vm719 = vcmask 64512
        %v720 = vsel %vm719, %v713, 0
        %v722 = vsel %vm719, %v718, 0
        %724 = vmatprep.subr.mxu0 0.0
        %725 = vmatpush1.xpose.msra.mxu0 %v722
        %726 = vmatprep.subr.mxu0 0.0
        %727 = vmatpush1.xpose.msra.mxu0 0.0
        %728 = vmatprep.subr.mxu0 0.0
        %729 = vmatpush1.xpose.msra.mxu0 0.0
        %730 = vmatprep.subr.mxu0 0.0
        %731 = vmatpush1.xpose.msra.mxu0 0.0
        %732 = vmatprep.subr.mxu0 0.0
        %733 = vmatpush1.xpose.msra.mxu0 0.0
        %734 = vmatprep.subr.mxu0 0.0
        %735 = vmatpush1.xpose.msra.mxu0 0.0
        %736 = vmatprep.subr.mxu0 0.0
        %737 = vmatpush1.xpose.msra.mxu0 0.0
        %738 = vmatprep.subr.mxu0 0.0
        %739 = vmatpush1.xpose.msra.mxu0 0.0
        %740 = vmatprep.subr.mxu0 0.0
        %741 = vmatpush1.xpose.msra.mxu0 0.0
        %742 = vmatprep.subr.mxu0 0.0
        %743 = vmatpush1.xpose.msra.mxu0 0.0
        %744 = vmatprep.subr.mxu0 0.0
        %745 = vmatpush1.xpose.msra.mxu0 0.0
        %746 = vmatprep.subr.mxu0 0.0
        %747 = vmatpush1.xpose.msra.mxu0 0.0
        %748 = vmatprep.subr.mxu0 0.0
        %749 = vmatpush1.xpose.msra.mxu0 0.0
        %750 = vmatprep.subr.mxu0 0.0
        %751 = vmatpush1.xpose.msra.mxu0 0.0
        %752 = vmatprep.subr.mxu0 0.0
        %753 = vmatpush1.xpose.msra.mxu0 0.0
        %754 = vmatprep.subr.mxu0 0.0
        %755 = vmatpush1.xpose.msra.mxu0 0.0
        %756 = vmatprep.subr.mxu0 0.0
        %757 = vmatpush1.xpose.msra.mxu0 0.0
        %758 = vmatprep.subr.mxu0 0.0
        %759 = vmatpush1.xpose.msra.mxu0 0.0
        %760 = vmatprep.subr.mxu0 0.0
        %761 = vmatpush1.xpose.msra.mxu0 0.0
        %762 = vmatprep.subr.mxu0 0.0
        %763 = vmatpush1.xpose.msra.mxu0 0.0
        %764 = vmatprep.subr.mxu0 0.0
        %765 = vmatpush1.xpose.msra.mxu0 0.0
        %766 = vmatprep.subr.mxu0 0.0
        %767 = vmatpush1.xpose.msra.mxu0 0.0
        %768 = vmatprep.subr.mxu0 0.0
        %769 = vmatpush1.xpose.msra.mxu0 0.0
        %770 = vmatprep.subr.mxu0 0.0
        %771 = vmatpush1.xpose.msra.mxu0 0.0
        %772 = vmatprep.subr.mxu0 0.0
        %773 = vmatpush1.xpose.msra.mxu0 0.0
        %774 = vmatprep.subr.mxu0 0.0
        %775 = vmatpush1.xpose.msra.mxu0 0.0
        %776 = vmatprep.subr.mxu0 0.0
        %777 = vmatpush1.xpose.msra.mxu0 0.0
        %778 = vmatprep.subr.mxu0 0.0
        %779 = vmatpush1.xpose.msra.mxu0 0.0
        %780 = vmatprep.subr.mxu0 0.0
        %781 = vmatpush1.xpose.msra.mxu0 0.0
        %782 = vmatprep.subr.mxu0 0.0
        %783 = vmatpush1.xpose.msra.mxu0 0.0
        %784 = vmatprep.subr.mxu0 0.0
        %785 = vmatpush1.xpose.msra.mxu0 0.0
        %786 = vmatprep.subr.mxu0 0.0
        %787 = vmatpush1.xpose.msra.mxu0 0.0
        %788 = vmatprep.mubr.f32.mxu0 0.0
        %789 = vmatmul.mubr.f32.gmra.mrb[0].mxu0 %v720
        %v790 = vpop.f32.mrb[0].mxu0
        %v791 = vadd.f32 0.0, %v790
        %v792 = vpop.f32.mrb[0].mxu0
        %793 = vdwg.mxu0
        %v794 = vmul.f32 %v791, 0.35355338
        %v795 = vadd.f32 %v794, %v599
        %v796 = vsel %vm719, %v795, -inf
        %797 = vmax.xlane.f32.xlu0 %v796
        %v798 = vpop.xlane.xlu0 %797
        %v799 = vsub.f32 %v795, %v798
        %v800 = vmul.f32 %v799, 1.442695
        %v801 = vpow.pop %v800
        %v802 = vsel %vm719, %v801, 0.0
        %803 = vadd.xlane.f32.xlu0 %v802
        %v804 = vpop.xlane.xlu0 %803
        %v805 = vrcp.pop %v804
        %v806 = vmul.f32 %v801, %v805
        %807 = vrot.lane.b32.xlu0 %v713, 64
        %v808 = vpop.permute.xlu0 %807
        %v811 = vsel %vm719, %v806, 0
        %813 = vmatprep.subr.mxu0 0.0
        %814 = vmatpush1.msra.mxu0 %v808
        %815 = vmatprep.subr.mxu0 0.0
        %816 = vmatpush1.msra.mxu0 0.0
        %817 = vmatprep.subr.mxu0 0.0
        %818 = vmatpush1.msra.mxu0 0.0
        %819 = vmatprep.subr.mxu0 0.0
        %820 = vmatpush1.msra.mxu0 0.0
        %821 = vmatprep.subr.mxu0 0.0
        %822 = vmatpush1.msra.mxu0 0.0
        %823 = vmatprep.subr.mxu0 0.0
        %824 = vmatpush1.msra.mxu0 0.0
        %825 = vmatprep.subr.mxu0 0.0
        %826 = vmatpush1.msra.mxu0 0.0
        %827 = vmatprep.subr.mxu0 0.0
        %828 = vmatpush1.msra.mxu0 0.0
        %829 = vmatprep.subr.mxu0 0.0
        %830 = vmatpush1.msra.mxu0 0.0
        %831 = vmatprep.subr.mxu0 0.0
        %832 = vmatpush1.msra.mxu0 0.0
        %833 = vmatprep.subr.mxu0 0.0
        %834 = vmatpush1.msra.mxu0 0.0
        %835 = vmatprep.subr.mxu0 0.0
        %836 = vmatpush1.msra.mxu0 0.0
        %837 = vmatprep.subr.mxu0 0.0
        %838 = vmatpush1.msra.mxu0 0.0
        %839 = vmatprep.subr.mxu0 0.0
        %840 = vmatpush1.msra.mxu0 0.0
        %841 = vmatprep.subr.mxu0 0.0
        %842 = vmatpush1.msra.mxu0 0.0
        %843 = vmatprep.subr.mxu0 0.0
        %844 = vmatpush1.msra.mxu0 0.0
        %845 = vmatprep.subr.mxu0 0.0
        %846 = vmatpush1.msra.mxu0 0.0
        %847 = vmatprep.subr.mxu0 0.0
        %848 = vmatpush1.msra.mxu0 0.0
        %849 = vmatprep.subr.mxu0 0.0
        %850 = vmatpush1.msra.mxu0 0.0
        %851 = vmatprep.subr.mxu0 0.0
        %852 = vmatpush1.msra.mxu0 0.0
        %853 = vmatprep.subr.mxu0 0.0
        %854 = vmatpush1.msra.mxu0 0.0
        %855 = vmatprep.subr.mxu0 0.0
        %856 = vmatpush1.msra.mxu0 0.0
        %857 = vmatprep.subr.mxu0 0.0
        %858 = vmatpush1.msra.mxu0 0.0
        %859 = vmatprep.subr.mxu0 0.0
        %860 = vmatpush1.msra.mxu0 0.0
        %861 = vmatprep.subr.mxu0 0.0
        %862 = vmatpush1.msra.mxu0 0.0
        %863 = vmatprep.subr.mxu0 0.0
        %864 = vmatpush1.msra.mxu0 0.0
        %865 = vmatprep.subr.mxu0 0.0
        %866 = vmatpush1.msra.mxu0 0.0
        %867 = vmatprep.subr.mxu0 0.0
        %868 = vmatpush1.msra.mxu0 0.0
        %869 = vmatprep.subr.mxu0 0.0
        %870 = vmatpush1.msra.mxu0 0.0
        %871 = vmatprep.subr.mxu0 0.0
        %872 = vmatpush1.msra.mxu0 0.0
        %873 = vmatprep.subr.mxu0 0.0
        %874 = vmatpush1.msra.mxu0 0.0
        %875 = vmatprep.subr.mxu0 0.0
        %876 = vmatpush1.msra.mxu0 0.0
        %877 = vmatprep.mubr.f32.mxu0 0.0
        %878 = vmatmul.mubr.f32.gmra.mrb[0].mxu0 %v811
        %v879 = vpop.f32.mrb[0].mxu0
        %v880 = vadd.f32 0.0, %v879
        %v881 = vpop.f32.mrb[0].mxu0
        %882 = vdwg.mxu0
        %883 = vrot.lane.b32.xlu0 %v713, 120
        %v884 = vpop.permute.xlu0 %883
        %885 = vrot.lane.b32.xlu0 %v713, 88
        %v886 = vpop.permute.xlu0 %885
        %v887 = vsel %vm719, %v884, 0
        %v889 = vsel %vm719, %v886, 0
        %891 = vmatprep.subr.mxu0 0.0
        %892 = vmatpush1.xpose.msra.mxu0 %v889
        %893 = vmatprep.subr.mxu0 0.0
        %894 = vmatpush1.xpose.msra.mxu0 0.0
        %895 = vmatprep.subr.mxu0 0.0
        %896 = vmatpush1.xpose.msra.mxu0 0.0
        %897 = vmatprep.subr.mxu0 0.0
        %898 = vmatpush1.xpose.msra.mxu0 0.0
        %899 = vmatprep.subr.mxu0 0.0
        %900 = vmatpush1.xpose.msra.mxu0 0.0
        %901 = vmatprep.subr.mxu0 0.0
        %902 = vmatpush1.xpose.msra.mxu0 0.0
        %903 = vmatprep.subr.mxu0 0.0
        %904 = vmatpush1.xpose.msra.mxu0 0.0
        %905 = vmatprep.subr.mxu0 0.0
        %906 = vmatpush1.xpose.msra.mxu0 0.0
        %907 = vmatprep.subr.mxu0 0.0
        %908 = vmatpush1.xpose.msra.mxu0 0.0
        %909 = vmatprep.subr.mxu0 0.0
        %910 = vmatpush1.xpose.msra.mxu0 0.0
        %911 = vmatprep.subr.mxu0 0.0
        %912 = vmatpush1.xpose.msra.mxu0 0.0
        %913 = vmatprep.subr.mxu0 0.0
        %914 = vmatpush1.xpose.msra.mxu0 0.0
        %915 = vmatprep.subr.mxu0 0.0
        %916 = vmatpush1.xpose.msra.mxu0 0.0
        %917 = vmatprep.subr.mxu0 0.0
        %918 = vmatpush1.xpose.msra.mxu0 0.0
        %919 = vmatprep.subr.mxu0 0.0
        %920 = vmatpush1.xpose.msra.mxu0 0.0
        %921 = vmatprep.subr.mxu0 0.0
        %922 = vmatpush1.xpose.msra.mxu0 0.0
        %923 = vmatprep.subr.mxu0 0.0
        %924 = vmatpush1.xpose.msra.mxu0 0.0
        %925 = vmatprep.subr.mxu0 0.0
        %926 = vmatpush1.xpose.msra.mxu0 0.0
        %927 = vmatprep.subr.mxu0 0.0
        %928 = vmatpush1.xpose.msra.mxu0 0.0
        %929 = vmatprep.subr.mxu0 0.0
        %930 = vmatpush1.xpose.msra.mxu0 0.0
        %931 = vmatprep.subr.mxu0 0.0
        %932 = vmatpush1.xpose.msra.mxu0 0.0
        %933 = vmatprep.subr.mxu0 0.0
        %934 = vmatpush1.xpose.msra.mxu0 0.0
        %935 = vmatprep.subr.mxu0 0.0
        %936 = vmatpush1.xpose.msra.mxu0 0.0
        %937 = vmatprep.subr.mxu0 0.0
        %938 = vmatpush1.xpose.msra.mxu0 0.0
        %939 = vmatprep.subr.mxu0 0.0
        %940 = vmatpush1.xpose.msra.mxu0 0.0
        %941 = vmatprep.subr.mxu0 0.0
        %942 = vmatpush1.xpose.msra.mxu0 0.0
        %943 = vmatprep.subr.mxu0 0.0
        %944 = vmatpush1.xpose.msra.mxu0 0.0
        %945 = vmatprep.subr.mxu0 0.0
        %946 = vmatpush1.xpose.msra.mxu0 0.0
        %947 = vmatprep.subr.mxu0 0.0
        %948 = vmatpush1.xpose.msra.mxu0 0.0
        %949 = vmatprep.subr.mxu0 0.0
        %950 = vmatpush1.xpose.msra.mxu0 0.0
        %951 = vmatprep.subr.mxu0 0.0
        %952 = vmatpush1.xpose.msra.mxu0 0.0
        %953 = vmatprep.subr.mxu0 0.0
        %954 = vmatpush1.xpose.msra.mxu0 0.0
        %955 = vmatprep.mubr.f32.mxu0 0.0
        %956 = vmatmul.mubr.f32.gmra.mrb[0].mxu0 %v887
        %v957 = vpop.f32.mrb[0].mxu0
        %v958 = vadd.f32 0.0, %v957
        %v959 = vpop.f32.mrb[0].mxu0
        %960 = vdwg.mxu0
        %v961 = vmul.f32 %v958, 0.35355338
        %v962 = vadd.f32 %v961, %v599
        %v963 = vsel %vm719, %v962, -inf
        %964 = vmax.xlane.f32.xlu0 %v963
        %v965 = vpop.xlane.xlu0 %964
        %v966 = vsub.f32 %v962, %v965
        %v967 = vmul.f32 %v966, 1.442695
        %v968 = vpow.pop %v967
        %v969 = vsel %vm719, %v968, 0.0
        %970 = vadd.xlane.f32.xlu0 %v969
        %v971 = vpop.xlane.xlu0 %970
        %v972 = vrcp.pop %v971
        %v973 = vmul.f32 %v968, %v972
        %974 = vrot.lane.b32.xlu0 %v713, 56
        %v975 = vpop.permute.xlu0 %974
        %v978 = vsel %vm719, %v973, 0
        %980 = vmatprep.subr.mxu0 0.0
        %981 = vmatpush1.msra.mxu0 %v975
        %982 = vmatprep.subr.mxu0 0.0
        %983 = vmatpush1.msra.mxu0 0.0
        %984 = vmatprep.subr.mxu0 0.0
        %985 = vmatpush1.msra.mxu0 0.0
        %986 = vmatprep.subr.mxu0 0.0
        %987 = vmatpush1.msra.mxu0 0.0
        %988 = vmatprep.subr.mxu0 0.0
        %989 = vmatpush1.msra.mxu0 0.0
        %990 = vmatprep.subr.mxu0 0.0
        %991 = vmatpush1.msra.mxu0 0.0
        %992 = vmatprep.subr.mxu0 0.0
        %993 = vmatpush1.msra.mxu0 0.0
        %994 = vmatprep.subr.mxu0 0.0
        %995 = vmatpush1.msra.mxu0 0.0
        %996 = vmatprep.subr.mxu0 0.0
        %997 = vmatpush1.msra.mxu0 0.0
        %998 = vmatprep.subr.mxu0 0.0
        %999 = vmatpush1.msra.mxu0 0.0
        %1000 = vmatprep.subr.mxu0 0.0
        %1001 = vmatpush1.msra.mxu0 0.0
        %1002 = vmatprep.subr.mxu0 0.0
        %1003 = vmatpush1.msra.mxu0 0.0
        %1004 = vmatprep.subr.mxu0 0.0
        %1005 = vmatpush1.msra.mxu0 0.0
        %1006 = vmatprep.subr.mxu0 0.0
        %1007 = vmatpush1.msra.mxu0 0.0
        %1008 = vmatprep.subr.mxu0 0.0
        %1009 = vmatpush1.msra.mxu0 0.0
        %1010 = vmatprep.subr.mxu0 0.0
        %1011 = vmatpush1.msra.mxu0 0.0
        %1012 = vmatprep.subr.mxu0 0.0
        %1013 = vmatpush1.msra.mxu0 0.0
        %1014 = vmatprep.subr.mxu0 0.0
        %1015 = vmatpush1.msra.mxu0 0.0
        %1016 = vmatprep.subr.mxu0 0.0
        %1017 = vmatpush1.msra.mxu0 0.0
        %1018 = vmatprep.subr.mxu0 0.0
        %1019 = vmatpush1.msra.mxu0 0.0
        %1020 = vmatprep.subr.mxu0 0.0
        %1021 = vmatpush1.msra.mxu0 0.0
        %1022 = vmatprep.subr.mxu0 0.0
        %1023 = vmatpush1.msra.mxu0 0.0
        %1024 = vmatprep.subr.mxu0 0.0
        %1025 = vmatpush1.msra.mxu0 0.0
        %1026 = vmatprep.subr.mxu0 0.0
        %1027 = vmatpush1.msra.mxu0 0.0
        %1028 = vmatprep.subr.mxu0 0.0
        %1029 = vmatpush1.msra.mxu0 0.0
        %1030 = vmatprep.subr.mxu0 0.0
        %1031 = vmatpush1.msra.mxu0 0.0
        %1032 = vmatprep.subr.mxu0 0.0
        %1033 = vmatpush1.msra.mxu0 0.0
        %1034 = vmatprep.subr.mxu0 0.0
        %1035 = vmatpush1.msra.mxu0 0.0
        %1036 = vmatprep.subr.mxu0 0.0
        %1037 = vmatpush1.msra.mxu0 0.0
        %1038 = vmatprep.subr.mxu0 0.0
        %1039 = vmatpush1.msra.mxu0 0.0
        %1040 = vmatprep.subr.mxu0 0.0
        %1041 = vmatpush1.msra.mxu0 0.0
        %1042 = vmatprep.subr.mxu0 0.0
        %1043 = vmatpush1.msra.mxu0 0.0
        %1044 = vmatprep.mubr.f32.mxu0 0.0
        %1045 = vmatmul.mubr.f32.gmra.mrb[0].mxu0 %v978
        %v1046 = vpop.f32.mrb[0].mxu0
        %v1047 = vadd.f32 0.0, %v1046
        %v1048 = vpop.f32.mrb[0].mxu0
        %1049 = vdwg.mxu0
        %1050 = vrot.lane.b32.xlu0 %v713, 112
        %v1051 = vpop.permute.xlu0 %1050
        %1052 = vrot.lane.b32.xlu0 %v713, 80
        %v1053 = vpop.permute.xlu0 %1052
        %v1054 = vsel %vm719, %v1051, 0
        %v1056 = vsel %vm719, %v1053, 0
        %1058 = vmatprep.subr.mxu0 0.0
        %1059 = vmatpush1.xpose.msra.mxu0 %v1056
        %1060 = vmatprep.subr.mxu0 0.0
        %1061 = vmatpush1.xpose.msra.mxu0 0.0
        %1062 = vmatprep.subr.mxu0 0.0
        %1063 = vmatpush1.xpose.msra.mxu0 0.0
        %1064 = vmatprep.subr.mxu0 0.0
        %1065 = vmatpush1.xpose.msra.mxu0 0.0
        %1066 = vmatprep.subr.mxu0 0.0
        %1067 = vmatpush1.xpose.msra.mxu0 0.0
        %1068 = vmatprep.subr.mxu0 0.0
        %1069 = vmatpush1.xpose.msra.mxu0 0.0
        %1070 = vmatprep.subr.mxu0 0.0
        %1071 = vmatpush1.xpose.msra.mxu0 0.0
        %1072 = vmatprep.subr.mxu0 0.0
        %1073 = vmatpush1.xpose.msra.mxu0 0.0
        %1074 = vmatprep.subr.mxu0 0.0
        %1075 = vmatpush1.xpose.msra.mxu0 0.0
        %1076 = vmatprep.subr.mxu0 0.0
        %1077 = vmatpush1.xpose.msra.mxu0 0.0
        %1078 = vmatprep.subr.mxu0 0.0
        %1079 = vmatpush1.xpose.msra.mxu0 0.0
        %1080 = vmatprep.subr.mxu0 0.0
        %1081 = vmatpush1.xpose.msra.mxu0 0.0
        %1082 = vmatprep.subr.mxu0 0.0
        %1083 = vmatpush1.xpose.msra.mxu0 0.0
        %1084 = vmatprep.subr.mxu0 0.0
        %1085 = vmatpush1.xpose.msra.mxu0 0.0
        %1086 = vmatprep.subr.mxu0 0.0
        %1087 = vmatpush1.xpose.msra.mxu0 0.0
        %1088 = vmatprep.subr.mxu0 0.0
        %1089 = vmatpush1.xpose.msra.mxu0 0.0
        %1090 = vmatprep.subr.mxu0 0.0
        %1091 = vmatpush1.xpose.msra.mxu0 0.0
        %1092 = vmatprep.subr.mxu0 0.0
        %1093 = vmatpush1.xpose.msra.mxu0 0.0
        %1094 = vmatprep.subr.mxu0 0.0
        %1095 = vmatpush1.xpose.msra.mxu0 0.0
        %1096 = vmatprep.subr.mxu0 0.0
        %1097 = vmatpush1.xpose.msra.mxu0 0.0
        %1098 = vmatprep.subr.mxu0 0.0
        %1099 = vmatpush1.xpose.msra.mxu0 0.0
        %1100 = vmatprep.subr.mxu0 0.0
        %1101 = vmatpush1.xpose.msra.mxu0 0.0
        %1102 = vmatprep.subr.mxu0 0.0
        %1103 = vmatpush1.xpose.msra.mxu0 0.0
        %1104 = vmatprep.subr.mxu0 0.0
        %1105 = vmatpush1.xpose.msra.mxu0 0.0
        %1106 = vmatprep.subr.mxu0 0.0
        %1107 = vmatpush1.xpose.msra.mxu0 0.0
        %1108 = vmatprep.subr.mxu0 0.0
        %1109 = vmatpush1.xpose.msra.mxu0 0.0
        %1110 = vmatprep.subr.mxu0 0.0
        %1111 = vmatpush1.xpose.msra.mxu0 0.0
        %1112 = vmatprep.subr.mxu0 0.0
        %1113 = vmatpush1.xpose.msra.mxu0 0.0
        %1114 = vmatprep.subr.mxu0 0.0
        %1115 = vmatpush1.xpose.msra.mxu0 0.0
        %1116 = vmatprep.subr.mxu0 0.0
        %1117 = vmatpush1.xpose.msra.mxu0 0.0
        %1118 = vmatprep.subr.mxu0 0.0
        %1119 = vmatpush1.xpose.msra.mxu0 0.0
        %1120 = vmatprep.subr.mxu0 0.0
        %1121 = vmatpush1.xpose.msra.mxu0 0.0
        %1122 = vmatprep.mubr.f32.mxu0 0.0
        %1123 = vmatmul.mubr.f32.gmra.mrb[0].mxu0 %v1054
        %v1124 = vpop.f32.mrb[0].mxu0
        %v1125 = vadd.f32 0.0, %v1124
        %v1126 = vpop.f32.mrb[0].mxu0
        %1127 = vdwg.mxu0
        %v1128 = vmul.f32 %v1125, 0.35355338
        %v1129 = vadd.f32 %v1128, %v599
        %v1130 = vsel %vm719, %v1129, -inf
        %1131 = vmax.xlane.f32.xlu0 %v1130
        %v1132 = vpop.xlane.xlu0 %1131
        %v1133 = vsub.f32 %v1129, %v1132
        %v1134 = vmul.f32 %v1133, 1.442695
        %v1135 = vpow.pop %v1134
        %v1136 = vsel %vm719, %v1135, 0.0
        %1137 = vadd.xlane.f32.xlu0 %v1136
        %v1138 = vpop.xlane.xlu0 %1137
        %v1139 = vrcp.pop %v1138
        %v1140 = vmul.f32 %v1135, %v1139
        %1141 = vrot.lane.b32.xlu0 %v713, 48
        %v1142 = vpop.permute.xlu0 %1141
        %v1145 = vsel %vm719, %v1140, 0
        %1147 = vmatprep.subr.mxu0 0.0
        %1148 = vmatpush1.msra.mxu0 %v1142
        %1149 = vmatprep.subr.mxu0 0.0
        %1150 = vmatpush1.msra.mxu0 0.0
        %1151 = vmatprep.subr.mxu0 0.0
        %1152 = vmatpush1.msra.mxu0 0.0
        %1153 = vmatprep.subr.mxu0 0.0
        %1154 = vmatpush1.msra.mxu0 0.0
        %1155 = vmatprep.subr.mxu0 0.0
        %1156 = vmatpush1.msra.mxu0 0.0
        %1157 = vmatprep.subr.mxu0 0.0
        %1158 = vmatpush1.msra.mxu0 0.0
        %1159 = vmatprep.subr.mxu0 0.0
        %1160 = vmatpush1.msra.mxu0 0.0
        %1161 = vmatprep.subr.mxu0 0.0
        %1162 = vmatpush1.msra.mxu0 0.0
        %1163 = vmatprep.subr.mxu0 0.0
        %1164 = vmatpush1.msra.mxu0 0.0
        %1165 = vmatprep.subr.mxu0 0.0
        %1166 = vmatpush1.msra.mxu0 0.0
        %1167 = vmatprep.subr.mxu0 0.0
        %1168 = vmatpush1.msra.mxu0 0.0
        %1169 = vmatprep.subr.mxu0 0.0
        %1170 = vmatpush1.msra.mxu0 0.0
        %1171 = vmatprep.subr.mxu0 0.0
        %1172 = vmatpush1.msra.mxu0 0.0
        %1173 = vmatprep.subr.mxu0 0.0
        %1174 = vmatpush1.msra.mxu0 0.0
        %1175 = vmatprep.subr.mxu0 0.0
        %1176 = vmatpush1.msra.mxu0 0.0
        %1177 = vmatprep.subr.mxu0 0.0
        %1178 = vmatpush1.msra.mxu0 0.0
        %1179 = vmatprep.subr.mxu0 0.0
        %1180 = vmatpush1.msra.mxu0 0.0
        %1181 = vmatprep.subr.mxu0 0.0
        %1182 = vmatpush1.msra.mxu0 0.0
        %1183 = vmatprep.subr.mxu0 0.0
        %1184 = vmatpush1.msra.mxu0 0.0
        %1185 = vmatprep.subr.mxu0 0.0
        %1186 = vmatpush1.msra.mxu0 0.0
        %1187 = vmatprep.subr.mxu0 0.0
        %1188 = vmatpush1.msra.mxu0 0.0
        %1189 = vmatprep.subr.mxu0 0.0
        %1190 = vmatpush1.msra.mxu0 0.0
        %1191 = vmatprep.subr.mxu0 0.0
        %1192 = vmatpush1.msra.mxu0 0.0
        %1193 = vmatprep.subr.mxu0 0.0
        %1194 = vmatpush1.msra.mxu0 0.0
        %1195 = vmatprep.subr.mxu0 0.0
        %1196 = vmatpush1.msra.mxu0 0.0
        %1197 = vmatprep.subr.mxu0 0.0
        %1198 = vmatpush1.msra.mxu0 0.0
        %1199 = vmatprep.subr.mxu0 0.0
        %1200 = vmatpush1.msra.mxu0 0.0
        %1201 = vmatprep.subr.mxu0 0.0
        %1202 = vmatpush1.msra.mxu0 0.0
        %1203 = vmatprep.subr.mxu0 0.0
        %1204 = vmatpush1.msra.mxu0 0.0
        %1205 = vmatprep.subr.mxu0 0.0
        %1206 = vmatpush1.msra.mxu0 0.0
        %1207 = vmatprep.subr.mxu0 0.0
        %1208 = vmatpush1.msra.mxu0 0.0
        %1209 = vmatprep.subr.mxu0 0.0
        %1210 = vmatpush1.msra.mxu0 0.0
        %1211 = vmatprep.mubr.f32.mxu0 0.0
        %1212 = vmatmul.mubr.f32.gmra.mrb[0].mxu0 %v1145
        %v1213 = vpop.f32.mrb[0].mxu0
        %v1214 = vadd.f32 0.0, %v1213
        %v1215 = vpop.f32.mrb[0].mxu0
        %1216 = vdwg.mxu0
        %1217 = vrot.lane.b32.xlu0 %v713, 104
        %v1218 = vpop.permute.xlu0 %1217
        %1219 = vrot.lane.b32.xlu0 %v713, 72
        %v1220 = vpop.permute.xlu0 %1219
        %v1221 = vsel %vm719, %v1218, 0
        %v1223 = vsel %vm719, %v1220, 0
        %1225 = vmatprep.subr.mxu0 0.0
        %1226 = vmatpush1.xpose.msra.mxu0 %v1223
        %1227 = vmatprep.subr.mxu0 0.0
        %1228 = vmatpush1.xpose.msra.mxu0 0.0
        %1229 = vmatprep.subr.mxu0 0.0
        %1230 = vmatpush1.xpose.msra.mxu0 0.0
        %1231 = vmatprep.subr.mxu0 0.0
        %1232 = vmatpush1.xpose.msra.mxu0 0.0
        %1233 = vmatprep.subr.mxu0 0.0
        %1234 = vmatpush1.xpose.msra.mxu0 0.0
        %1235 = vmatprep.subr.mxu0 0.0
        %1236 = vmatpush1.xpose.msra.mxu0 0.0
        %1237 = vmatprep.subr.mxu0 0.0
        %1238 = vmatpush1.xpose.msra.mxu0 0.0
        %1239 = vmatprep.subr.mxu0 0.0
        %1240 = vmatpush1.xpose.msra.mxu0 0.0
        %1241 = vmatprep.subr.mxu0 0.0
        %1242 = vmatpush1.xpose.msra.mxu0 0.0
        %1243 = vmatprep.subr.mxu0 0.0
        %1244 = vmatpush1.xpose.msra.mxu0 0.0
        %1245 = vmatprep.subr.mxu0 0.0
        %1246 = vmatpush1.xpose.msra.mxu0 0.0
        %1247 = vmatprep.subr.mxu0 0.0
        %1248 = vmatpush1.xpose.msra.mxu0 0.0
        %1249 = vmatprep.subr.mxu0 0.0
        %1250 = vmatpush1.xpose.msra.mxu0 0.0
        %1251 = vmatprep.subr.mxu0 0.0
        %1252 = vmatpush1.xpose.msra.mxu0 0.0
        %1253 = vmatprep.subr.mxu0 0.0
        %1254 = vmatpush1.xpose.msra.mxu0 0.0
        %1255 = vmatprep.subr.mxu0 0.0
        %1256 = vmatpush1.xpose.msra.mxu0 0.0
        %1257 = vmatprep.subr.mxu0 0.0
        %1258 = vmatpush1.xpose.msra.mxu0 0.0
        %1259 = vmatprep.subr.mxu0 0.0
        %1260 = vmatpush1.xpose.msra.mxu0 0.0
        %1261 = vmatprep.subr.mxu0 0.0
        %1262 = vmatpush1.xpose.msra.mxu0 0.0
        %1263 = vmatprep.subr.mxu0 0.0
        %1264 = vmatpush1.xpose.msra.mxu0 0.0
        %1265 = vmatprep.subr.mxu0 0.0
        %1266 = vmatpush1.xpose.msra.mxu0 0.0
        %1267 = vmatprep.subr.mxu0 0.0
        %1268 = vmatpush1.xpose.msra.mxu0 0.0
        %1269 = vmatprep.subr.mxu0 0.0
        %1270 = vmatpush1.xpose.msra.mxu0 0.0
        %1271 = vmatprep.subr.mxu0 0.0
        %1272 = vmatpush1.xpose.msra.mxu0 0.0
        %1273 = vmatprep.subr.mxu0 0.0
        %1274 = vmatpush1.xpose.msra.mxu0 0.0
        %1275 = vmatprep.subr.mxu0 0.0
        %1276 = vmatpush1.xpose.msra.mxu0 0.0
        %1277 = vmatprep.subr.mxu0 0.0
        %1278 = vmatpush1.xpose.msra.mxu0 0.0
        %1279 = vmatprep.subr.mxu0 0.0
        %1280 = vmatpush1.xpose.msra.mxu0 0.0
        %1281 = vmatprep.subr.mxu0 0.0
        %1282 = vmatpush1.xpose.msra.mxu0 0.0
        %1283 = vmatprep.subr.mxu0 0.0
        %1284 = vmatpush1.xpose.msra.mxu0 0.0
        %1285 = vmatprep.subr.mxu0 0.0
        %1286 = vmatpush1.xpose.msra.mxu0 0.0
        %1287 = vmatprep.subr.mxu0 0.0
        %1288 = vmatpush1.xpose.msra.mxu0 0.0
        %1289 = vmatprep.mubr.f32.mxu0 0.0
        %1290 = vmatmul.mubr.f32.gmra.mrb[0].mxu0 %v1221
        %v1291 = vpop.f32.mrb[0].mxu0
        %v1292 = vadd.f32 0.0, %v1291
        %v1293 = vpop.f32.mrb[0].mxu0
        %1294 = vdwg.mxu0
        %v1295 = vmul.f32 %v1292, 0.35355338
        %v1296 = vadd.f32 %v1295, %v599
        %v1297 = vsel %vm719, %v1296, -inf
        %1298 = vmax.xlane.f32.xlu0 %v1297
        %v1299 = vpop.xlane.xlu0 %1298
        %v1300 = vsub.f32 %v1296, %v1299
        %v1301 = vmul.f32 %v1300, 1.442695
        %v1302 = vpow.pop %v1301
        %v1303 = vsel %vm719, %v1302, 0.0
        %1304 = vadd.xlane.f32.xlu0 %v1303
        %v1305 = vpop.xlane.xlu0 %1304
        %v1306 = vrcp.pop %v1305
        %v1307 = vmul.f32 %v1302, %v1306
        %1308 = vrot.lane.b32.xlu0 %v713, 40
        %v1309 = vpop.permute.xlu0 %1308
        %v1312 = vsel %vm719, %v1307, 0
        %1314 = vmatprep.subr.mxu0 0.0
        %1315 = vmatpush1.msra.mxu0 %v1309
        %1316 = vmatprep.subr.mxu0 0.0
        %1317 = vmatpush1.msra.mxu0 0.0
        %1318 = vmatprep.subr.mxu0 0.0
        %1319 = vmatpush1.msra.mxu0 0.0
        %1320 = vmatprep.subr.mxu0 0.0
        %1321 = vmatpush1.msra.mxu0 0.0
        %1322 = vmatprep.subr.mxu0 0.0
        %1323 = vmatpush1.msra.mxu0 0.0
        %1324 = vmatprep.subr.mxu0 0.0
        %1325 = vmatpush1.msra.mxu0 0.0
        %1326 = vmatprep.subr.mxu0 0.0
        %1327 = vmatpush1.msra.mxu0 0.0
        %1328 = vmatprep.subr.mxu0 0.0
        %1329 = vmatpush1.msra.mxu0 0.0
        %1330 = vmatprep.subr.mxu0 0.0
        %1331 = vmatpush1.msra.mxu0 0.0
        %1332 = vmatprep.subr.mxu0 0.0
        %1333 = vmatpush1.msra.mxu0 0.0
        %1334 = vmatprep.subr.mxu0 0.0
        %1335 = vmatpush1.msra.mxu0 0.0
        %1336 = vmatprep.subr.mxu0 0.0
        %1337 = vmatpush1.msra.mxu0 0.0
        %1338 = vmatprep.subr.mxu0 0.0
        %1339 = vmatpush1.msra.mxu0 0.0
        %1340 = vmatprep.subr.mxu0 0.0
        %1341 = vmatpush1.msra.mxu0 0.0
        %1342 = vmatprep.subr.mxu0 0.0
        %1343 = vmatpush1.msra.mxu0 0.0
        %1344 = vmatprep.subr.mxu0 0.0
        %1345 = vmatpush1.msra.mxu0 0.0
        %1346 = vmatprep.subr.mxu0 0.0
        %1347 = vmatpush1.msra.mxu0 0.0
        %1348 = vmatprep.subr.mxu0 0.0
        %1349 = vmatpush1.msra.mxu0 0.0
        %1350 = vmatprep.subr.mxu0 0.0
        %1351 = vmatpush1.msra.mxu0 0.0
        %1352 = vmatprep.subr.mxu0 0.0
        %1353 = vmatpush1.msra.mxu0 0.0
        %1354 = vmatprep.subr.mxu0 0.0
        %1355 = vmatpush1.msra.mxu0 0.0
        %1356 = vmatprep.subr.mxu0 0.0
        %1357 = vmatpush1.msra.mxu0 0.0
        %1358 = vmatprep.subr.mxu0 0.0
        %1359 = vmatpush1.msra.mxu0 0.0
        %1360 = vmatprep.subr.mxu0 0.0
        %1361 = vmatpush1.msra.mxu0 0.0
        %1362 = vmatprep.subr.mxu0 0.0
        %1363 = vmatpush1.msra.mxu0 0.0
        %1364 = vmatprep.subr.mxu0 0.0
        %1365 = vmatpush1.msra.mxu0 0.0
        %1366 = vmatprep.subr.mxu0 0.0
        %1367 = vmatpush1.msra.mxu0 0.0
        %1368 = vmatprep.subr.mxu0 0.0
        %1369 = vmatpush1.msra.mxu0 0.0
        %1370 = vmatprep.subr.mxu0 0.0
        %1371 = vmatpush1.msra.mxu0 0.0
        %1372 = vmatprep.subr.mxu0 0.0
        %1373 = vmatpush1.msra.mxu0 0.0
        %1374 = vmatprep.subr.mxu0 0.0
        %1375 = vmatpush1.msra.mxu0 0.0
        %1376 = vmatprep.subr.mxu0 0.0
        %1377 = vmatpush1.msra.mxu0 0.0
        %1378 = vmatprep.mubr.f32.mxu0 0.0
        %1379 = vmatmul.mubr.f32.gmra.mrb[0].mxu0 %v1312
        %v1380 = vpop.f32.mrb[0].mxu0
        %v1381 = vadd.f32 0.0, %v1380
        %v1382 = vpop.f32.mrb[0].mxu0
        %1383 = vdwg.mxu0
        %1385 = vrot.lane.b32.xlu0 %v1047, 8
        %v1386 = vpop.permute.xlu0 %1385
        %1389 = vrot.lane.b32.xlu0 %v1214, 16
        %v1390 = vpop.permute.xlu0 %1389
        %1393 = vrot.lane.b32.xlu0 %v1381, 24
        %v1394 = vpop.permute.xlu0 %1393
        %v1396 = vsel %vm719, %v880, %v1386
        %vm1397 = vcmask 130048
        %v1398 = vsel %vm1397, %v1396, %v1390
        %vm1399 = vcmask 195584
        %v1400 = vsel %vm1399, %v1398, %v1394
        %v1401 = vld [vmem:[%s7] sm:$0xff]
        %v1402 = vld [vmem:[%s7 + $0x8] sm:$0xff]
        %v1403 = vld [vmem:[%s7 + $0x10] sm:$0xff]
        %v1404 = vld [vmem:[%s7 + $0x18] sm:$0xff]
        %v1405 = vld [vmem:[%s8] sm:$0x1]
        %v1407 = vlaneseq
        %v1408 = vshrl.u32 %v1407, 7
        %v1409 = vsub.s32 0, %v1408
        %v1410 = vrot.slane %v1405, %v1409
        %v1413 = vsel %vm603, %v1400, 0
        %1415 = vmatprep.subr.mxu0 0.0
        %1416 = vmatpush1.msra.mxu0 %v1401
        %1417 = vmatprep.subr.mxu0 0.0
        %1418 = vmatpush1.msra.mxu0 %v1402
        %1419 = vmatprep.subr.mxu0 0.0
        %1420 = vmatpush1.msra.mxu0 %v1403
        %1421 = vmatprep.subr.mxu0 0.0
        %1422 = vmatpush1.msra.mxu0 %v1404
        %1423 = vmatprep.subr.mxu0 0.0
        %1424 = vmatpush1.msra.mxu0 0.0
        %1425 = vmatprep.subr.mxu0 0.0
        %1426 = vmatpush1.msra.mxu0 0.0
        %1427 = vmatprep.subr.mxu0 0.0
        %1428 = vmatpush1.msra.mxu0 0.0
        %1429 = vmatprep.subr.mxu0 0.0
        %1430 = vmatpush1.msra.mxu0 0.0
        %1431 = vmatprep.subr.mxu0 0.0
        %1432 = vmatpush1.msra.mxu0 0.0
        %1433 = vmatprep.subr.mxu0 0.0
        %1434 = vmatpush1.msra.mxu0 0.0
        %1435 = vmatprep.subr.mxu0 0.0
        %1436 = vmatpush1.msra.mxu0 0.0
        %1437 = vmatprep.subr.mxu0 0.0
        %1438 = vmatpush1.msra.mxu0 0.0
        %1439 = vmatprep.subr.mxu0 0.0
        %1440 = vmatpush1.msra.mxu0 0.0
        %1441 = vmatprep.subr.mxu0 0.0
        %1442 = vmatpush1.msra.mxu0 0.0
        %1443 = vmatprep.subr.mxu0 0.0
        %1444 = vmatpush1.msra.mxu0 0.0
        %1445 = vmatprep.subr.mxu0 0.0
        %1446 = vmatpush1.msra.mxu0 0.0
        %1447 = vmatprep.subr.mxu0 0.0
        %1448 = vmatpush1.msra.mxu0 0.0
        %1449 = vmatprep.subr.mxu0 0.0
        %1450 = vmatpush1.msra.mxu0 0.0
        %1451 = vmatprep.subr.mxu0 0.0
        %1452 = vmatpush1.msra.mxu0 0.0
        %1453 = vmatprep.subr.mxu0 0.0
        %1454 = vmatpush1.msra.mxu0 0.0
        %1455 = vmatprep.subr.mxu0 0.0
        %1456 = vmatpush1.msra.mxu0 0.0
        %1457 = vmatprep.subr.mxu0 0.0
        %1458 = vmatpush1.msra.mxu0 0.0
        %1459 = vmatprep.subr.mxu0 0.0
        %1460 = vmatpush1.msra.mxu0 0.0
        %1461 = vmatprep.subr.mxu0 0.0
        %1462 = vmatpush1.msra.mxu0 0.0
        %1463 = vmatprep.subr.mxu0 0.0
        %1464 = vmatpush1.msra.mxu0 0.0
        %1465 = vmatprep.subr.mxu0 0.0
        %1466 = vmatpush1.msra.mxu0 0.0
        %1467 = vmatprep.subr.mxu0 0.0
        %1468 = vmatpush1.msra.mxu0 0.0
        %1469 = vmatprep.subr.mxu0 0.0
        %1470 = vmatpush1.msra.mxu0 0.0
        %1471 = vmatprep.subr.mxu0 0.0
        %1472 = vmatpush1.msra.mxu0 0.0
        %1473 = vmatprep.subr.mxu0 0.0
        %1474 = vmatpush1.msra.mxu0 0.0
        %1475 = vmatprep.subr.mxu0 0.0
        %1476 = vmatpush1.msra.mxu0 0.0
        %1477 = vmatprep.subr.mxu0 0.0
        %1478 = vmatpush1.msra.mxu0 0.0
        %1479 = vmatprep.mubr.f32.mxu0 0.0
        %1480 = vmatmul.mubr.f32.gmra.mrb[0].mxu0 %v1413
        %v1481 = vpop.f32.mrb[0].mxu0
        %v1482 = vadd.f32 %v1410, %v1481
        %v1483 = vpop.f32.mrb[0].mxu0
        %1484 = vdwg.mxu0
        %v1485 = vadd.f32 %v593, %v1482
        %v1486 = vld [vmem:[%s9] sm:$0x1]
        %v1487 = vld [vmem:[%s10] sm:$0x1]
        %v1488 = vsel %vm603, %v1485, 0.0
        %1489 = vadd.xlane.f32.xlu0 %v1488
        %v1490 = vpop.xlane.xlu0 %1489
        %v1491 = vmul.f32 %v1490, %v607
        %v1492 = vsub.f32 %v1485, %v1491
        %v1493 = vmul.f32 %v1492, %v1492
        %v1494 = vsel %vm603, %v1493, 0.0
        %1495 = vadd.xlane.f32.xlu0 %v1494
        %v1496 = vpop.xlane.xlu0 %1495
        %v1497 = vmul.f32 %v1496, %v607
        %v1498 = vadd.f32 %v1497, 1e-05
        %v1499 = vrsqrt.pop %v1498
        %v1500 = vmul.f32 %v1492, %v1499
        %v1502 = vlaneseq
        %v1503 = vshrl.u32 %v1502, 7
        %v1504 = vsub.s32 0, %v1503
        %v1505 = vrot.slane %v1486, %v1504
        %v1507 = vmul.f32 %v1500, %v1505
        %v1509 = vlaneseq
        %v1510 = vshrl.u32 %v1509, 7
        %v1511 = vsub.s32 0, %v1510
        %v1512 = vrot.slane %v1487, %v1511
        %v1514 = vadd.f32 %v1507, %v1512
        %v1515 = vld [vmem:[%s11] sm:$0xff]
        %v1516 = vld [vmem:[%s11 + $0x8] sm:$0xff]
        %v1517 = vld [vmem:[%s11 + $0x10] sm:$0xff]
        %v1518 = vld [vmem:[%s11 + $0x18] sm:$0xff]
        %v1519 = vld [vmem:[%s12] sm:$0x1]
        %v1521 = vlaneseq
        %v1522 = vshrl.u32 %v1521, 7
        %v1523 = vsub.s32 0, %v1522
        %v1524 = vrot.slane %v1519, %v1523
        %v1527 = vsel %vm603, %v1514, 0
        %1529 = vmatprep.subr.mxu0 0.0
        %1530 = vmatpush1.msra.mxu0 %v1515
        %1531 = vmatprep.subr.mxu0 0.0
        %1532 = vmatpush1.msra.mxu0 %v1516
        %1533 = vmatprep.subr.mxu0 0.0
        %1534 = vmatpush1.msra.mxu0 %v1517
        %1535 = vmatprep.subr.mxu0 0.0
        %1536 = vmatpush1.msra.mxu0 %v1518
        %1537 = vmatprep.subr.mxu0 0.0
        %1538 = vmatpush1.msra.mxu0 0.0
        %1539 = vmatprep.subr.mxu0 0.0
        %1540 = vmatpush1.msra.mxu0 0.0
        %1541 = vmatprep.subr.mxu0 0.0
        %1542 = vmatpush1.msra.mxu0 0.0
        %1543 = vmatprep.subr.mxu0 0.0
        %1544 = vmatpush1.msra.mxu0 0.0
        %1545 = vmatprep.subr.mxu0 0.0
        %1546 = vmatpush1.msra.mxu0 0.0
        %1547 = vmatprep.subr.mxu0 0.0
        %1548 = vmatpush1.msra.mxu0 0.0
        %1549 = vmatprep.subr.mxu0 0.0
        %1550 = vmatpush1.msra.mxu0 0.0
        %1551 = vmatprep.subr.mxu0 0.0
        %1552 = vmatpush1.msra.mxu0 0.0
        %1553 = vmatprep.subr.mxu0 0.0
        %1554 = vmatpush1.msra.mxu0 0.0
        %1555 = vmatprep.subr.mxu0 0.0
        %1556 = vmatpush1.msra.mxu0 0.0
        %1557 = vmatprep.subr.mxu0 0.0
        %1558 = vmatpush1.msra.mxu0 0.0
        %1559 = vmatprep.subr.mxu0 0.0
        %1560 = vmatpush1.msra.mxu0 0.0
        %1561 = vmatprep.subr.mxu0 0.0
        %1562 = vmatpush1.msra.mxu0 0.0
        %1563 = vmatprep.subr.mxu0 0.0
        %1564 = vmatpush1.msra.mxu0 0.0
        %1565 = vmatprep.subr.mxu0 0.0
        %1566 = vmatpush1.msra.mxu0 0.0
        %1567 = vmatprep.subr.mxu0 0.0
        %1568 = vmatpush1.msra.mxu0 0.0
        %1569 = vmatprep.subr.mxu0 0.0
        %1570 = vmatpush1.msra.mxu0 0.0
        %1571 = vmatprep.subr.mxu0 0.0
        %1572 = vmatpush1.msra.mxu0 0.0
        %1573 = vmatprep.subr.mxu0 0.0
        %1574 = vmatpush1.msra.mxu0 0.0
        %1575 = vmatprep.subr.mxu0 0.0
        %1576 = vmatpush1.msra.mxu0 0.0
        %1577 = vmatprep.subr.mxu0 0.0
        %1578 = vmatpush1.msra.mxu0 0.0
        %1579 = vmatprep.subr.mxu0 0.0
        %1580 = vmatpush1.msra.mxu0 0.0
        %1581 = vmatprep.subr.mxu0 0.0
        %1582 = vmatpush1.msra.mxu0 0.0
        %1583 = vmatprep.subr.mxu0 0.0
        %1584 = vmatpush1.msra.mxu0 0.0
        %1585 = vmatprep.subr.mxu0 0.0
        %1586 = vmatpush1.msra.mxu0 0.0
        %1587 = vmatprep.subr.mxu0 0.0
        %1588 = vmatpush1.msra.mxu0 0.0
        %1589 = vmatprep.subr.mxu0 0.0
        %1590 = vmatpush1.msra.mxu0 0.0
        %1591 = vmatprep.subr.mxu0 0.0
        %1592 = vmatpush1.msra.mxu0 0.0
        %1593 = vmatprep.mubr.f32.mxu0 0.0
        %1594 = vmatmul.mubr.f32.gmra.mrb[0].mxu0 %v1527
        %v1595 = vpop.f32.mrb[0].mxu0
        %v1596 = vadd.f32 %v1524, %v1595
        %v1597 = vpop.f32.mrb[0].mxu0
        %1598 = vdwg.mxu0
        %v1599 = vmul.f32 %v1596, 0.5
        %v1600 = vmul.f32 %v1596, 0.044715
        %v1601 = vmul.f32 %v1600, %v1596
        %v1602 = vmul.f32 %v1601, %v1596
        %v1603 = vadd.f32 %v1596, %v1602
        %v1604 = vmul.f32 %v1603, 0.7978846
        %v1605 = vtanh.pop %v1604
        %v1606 = vadd.f32 %v1605, 1.0
        %v1607 = vmul.f32 %v1599, %v1606
        %v1608 = vld [vmem:[%s13] sm:$0xff]
        %v1609 = vld [vmem:[%s13 + $0x8] sm:$0xff]
        %v1610 = vld [vmem:[%s13 + $0x10] sm:$0xff]
        %v1611 = vld [vmem:[%s13 + $0x18] sm:$0xff]
        %v1612 = vld [vmem:[%s13 + $0x20] sm:$0xff]
        %v1613 = vld [vmem:[%s13 + $0x28] sm:$0xff]
        %v1614 = vld [vmem:[%s13 + $0x30] sm:$0xff]
        %v1615 = vld [vmem:[%s13 + $0x38] sm:$0xff]
        %vm1616 = vcmask 523264
        %v1618 = vsel %vm1616, %v1607, 0
        %1620 = vmatprep.subr.mxu0 0.0
        %1621 = vmatpush1.msra.mxu0 %v1608
        %1622 = vmatprep.subr.mxu0 0.0
        %1623 = vmatpush1.msra.mxu0 %v1609
        %1624 = vmatprep.subr.mxu0 0.0
        %1625 = vmatpush1.msra.mxu0 %v1610
        %1626 = vmatprep.subr.mxu0 0.0
        %1627 = vmatpush1.msra.mxu0 %v1611
        %1628 = vmatprep.subr.mxu0 0.0
        %1629 = vmatpush1.msra.mxu0 %v1612
        %1630 = vmatprep.subr.mxu0 0.0
        %1631 = vmatpush1.msra.mxu0 %v1613
        %1632 = vmatprep.subr.mxu0 0.0
        %1633 = vmatpush1.msra.mxu0 %v1614
        %1634 = vmatprep.subr.mxu0 0.0
        %1635 = vmatpush1.msra.mxu0 %v1615
        %1636 = vmatprep.subr.mxu0 0.0
        %1637 = vmatpush1.msra.mxu0 0.0
        %1638 = vmatprep.subr.mxu0 0.0
        %1639 = vmatpush1.msra.mxu0 0.0
        %1640 = vmatprep.subr.mxu0 0.0
        %1641 = vmatpush1.msra.mxu0 0.0
        %1642 = vmatprep.subr.mxu0 0.0
        %1643 = vmatpush1.msra.mxu0 0.0
        %1644 = vmatprep.subr.mxu0 0.0
        %1645 = vmatpush1.msra.mxu0 0.0
        %1646 = vmatprep.subr.mxu0 0.0
        %1647 = vmatpush1.msra.mxu0 0.0
        %1648 = vmatprep.subr.mxu0 0.0
        %1649 = vmatpush1.msra.mxu0 0.0
        %1650 = vmatprep.subr.mxu0 0.0
        %1651 = vmatpush1.msra.mxu0 0.0
        %1652 = vmatprep.subr.mxu0 0.0
        %1653 = vmatpush1.msra.mxu0 0.0
        %1654 = vmatprep.subr.mxu0 0.0
        %1655 = vmatpush1.msra.mxu0 0.0
        %1656 = vmatprep.subr.mxu0 0.0
        %1657 = vmatpush1.msra.mxu0 0.0
        %1658 = vmatprep.subr.mxu0 0.0
        %1659 = vmatpush1.msra.mxu0 0.0
        %1660 = vmatprep.subr.mxu0 0.0
        %1661 = vmatpush1.msra.mxu0 0.0
        %1662 = vmatprep.subr.mxu0 0.0
        %1663 = vmatpush1.msra.mxu0 0.0
        %1664 = vmatprep.subr.mxu0 0.0
        %1665 = vmatpush1.msra.mxu0 0.0
        %1666 = vmatprep.subr.mxu0 0.0
        %1667 = vmatpush1.msra.mxu0 0.0
        %1668 = vmatprep.subr.mxu0 0.0
        %1669 = vmatpush1.msra.mxu0 0.0
        %1670 = vmatprep.subr.mxu0 0.0
        %1671 = vmatpush1.msra.mxu0 0.0
        %1672 = vmatprep.subr.mxu0 0.0
        %1673 = vmatpush1.msra.mxu0 0.0
        %1674 = vmatprep.subr.mxu0 0.0
        %1675 = vmatpush1.msra.mxu0 0.0
        %1676 = vmatprep.subr.mxu0 0.0
        %1677 = vmatpush1.msra.mxu0 0.0
        %1678 = vmatprep.subr.mxu0 0.0
        %1679 = vmatpush1.msra.mxu0 0.0
        %1680 = vmatprep.subr.mxu0 0.0
        %1681 = vmatpush1.msra.mxu0 0.0
        %1682 = vmatprep.subr.mxu0 0.0
        %1683 = vmatpush1.msra.mxu0 0.0
        %1684 = vmatprep.mubr.f32.mxu0 0.0
        %1685 = vmatmul.mubr.f32.gmra.mrb[0].mxu0 %v1618
        %v1686 = vpop.f32.mrb[0].mxu0
        %v1687 = vadd.f32 0.0, %v1686
        %v1688 = vpop.f32.mrb[0].mxu0
        %1689 = vdwg.mxu0
        %v1690 = vadd.f32 %v1485, %v1687
        %v1691 = vld [vmem:[%s14] sm:$0x1]
        %v1693 = vlaneseq
        %v1694 = vshrl.u32 %v1693, 7
        %v1695 = vsub.s32 0, %v1694
        %v1696 = vrot.slane %v1691, %v1695
        %v1698 = vadd.f32 %v1690, %v1696
        %s1699 = scalar_lea.vmem %s3, 1
        %v1700 = vld [vmem:[%s1699] sm:$0x1]
        %s1701 = scalar_lea.vmem %s4, 1
        %v1702 = vld [vmem:[%s1701] sm:$0x1]
        %v1703 = vsel %vm603, %v1698, 0.0
        %1704 = vadd.xlane.f32.xlu0 %v1703
        %v1705 = vpop.xlane.xlu0 %1704
        %v1706 = vmul.f32 %v1705, %v607
        %v1707 = vsub.f32 %v1698, %v1706
        %v1708 = vmul.f32 %v1707, %v1707
        %v1709 = vsel %vm603, %v1708, 0.0
        %1710 = vadd.xlane.f32.xlu0 %v1709
        %v1711 = vpop.xlane.xlu0 %1710
        %v1712 = vmul.f32 %v1711, %v607
        %v1713 = vadd.f32 %v1712, 1e-05
        %v1714 = vrsqrt.pop %v1713
        %v1715 = vmul.f32 %v1707, %v1714
        %v1717 = vlaneseq
        %v1718 = vshrl.u32 %v1717, 7
        %v1719 = vsub.s32 0, %v1718
        %v1720 = vrot.slane %v1700, %v1719
        %v1722 = vmul.f32 %v1715, %v1720
        %v1724 = vlaneseq
        %v1725 = vshrl.u32 %v1724, 7
        %v1726 = vsub.s32 0, %v1725
        %v1727 = vrot.slane %v1702, %v1726
        %v1729 = vadd.f32 %v1722, %v1727
        %s1730 = scalar_lea.vmem %s5, 32
        %v1731 = vld [vmem:[%s1730] sm:$0xff]
        %v1732 = vld [vmem:[%s1730 + $0x8] sm:$0xff]
        %v1733 = vld [vmem:[%s1730 + $0x10] sm:$0xff]
        %v1734 = vld [vmem:[%s1730 + $0x18] sm:$0xff]
        %s1735 = scalar_lea.vmem %s6, 1
        %v1736 = vld [vmem:[%s1735] sm:$0x1]
        %v1738 = vlaneseq
        %v1739 = vshrl.u32 %v1738, 7
        %v1740 = vsub.s32 0, %v1739
        %v1741 = vrot.slane %v1736, %v1740
        %v1744 = vsel %vm603, %v1729, 0
        %1746 = vmatprep.subr.mxu0 0.0
        %1747 = vmatpush1.msra.mxu0 %v1731
        %1748 = vmatprep.subr.mxu0 0.0
        %1749 = vmatpush1.msra.mxu0 %v1732
        %1750 = vmatprep.subr.mxu0 0.0
        %1751 = vmatpush1.msra.mxu0 %v1733
        %1752 = vmatprep.subr.mxu0 0.0
        %1753 = vmatpush1.msra.mxu0 %v1734
        %1754 = vmatprep.subr.mxu0 0.0
        %1755 = vmatpush1.msra.mxu0 0.0
        %1756 = vmatprep.subr.mxu0 0.0
        %1757 = vmatpush1.msra.mxu0 0.0
        %1758 = vmatprep.subr.mxu0 0.0
        %1759 = vmatpush1.msra.mxu0 0.0
        %1760 = vmatprep.subr.mxu0 0.0
        %1761 = vmatpush1.msra.mxu0 0.0
        %1762 = vmatprep.subr.mxu0 0.0
        %1763 = vmatpush1.msra.mxu0 0.0
        %1764 = vmatprep.subr.mxu0 0.0
        %1765 = vmatpush1.msra.mxu0 0.0
        %1766 = vmatprep.subr.mxu0 0.0
        %1767 = vmatpush1.msra.mxu0 0.0
        %1768 = vmatprep.subr.mxu0 0.0
        %1769 = vmatpush1.msra.mxu0 0.0
        %1770 = vmatprep.subr.mxu0 0.0
        %1771 = vmatpush1.msra.mxu0 0.0
        %1772 = vmatprep.subr.mxu0 0.0
        %1773 = vmatpush1.msra.mxu0 0.0
        %1774 = vmatprep.subr.mxu0 0.0
        %1775 = vmatpush1.msra.mxu0 0.0
        %1776 = vmatprep.subr.mxu0 0.0
        %1777 = vmatpush1.msra.mxu0 0.0
        %1778 = vmatprep.subr.mxu0 0.0
        %1779 = vmatpush1.msra.mxu0 0.0
        %1780 = vmatprep.subr.mxu0 0.0
        %1781 = vmatpush1.msra.mxu0 0.0
        %1782 = vmatprep.subr.mxu0 0.0
        %1783 = vmatpush1.msra.mxu0 0.0
        %1784 = vmatprep.subr.mxu0 0.0
        %1785 = vmatpush1.msra.mxu0 0.0
        %1786 = vmatprep.subr.mxu0 0.0
        %1787 = vmatpush1.msra.mxu0 0.0
        %1788 = vmatprep.subr.mxu0 0.0
        %1789 = vmatpush1.msra.mxu0 0.0
        %1790 = vmatprep.subr.mxu0 0.0
        %1791 = vmatpush1.msra.mxu0 0.0
        %1792 = vmatprep.subr.mxu0 0.0
        %1793 = vmatpush1.msra.mxu0 0.0
        %1794 = vmatprep.subr.mxu0 0.0
        %1795 = vmatpush1.msra.mxu0 0.0
        %1796 = vmatprep.subr.mxu0 0.0
        %1797 = vmatpush1.msra.mxu0 0.0
        %1798 = vmatprep.subr.mxu0 0.0
        %1799 = vmatpush1.msra.mxu0 0.0
        %1800 = vmatprep.subr.mxu0 0.0
        %1801 = vmatpush1.msra.mxu0 0.0
        %1802 = vmatprep.subr.mxu0 0.0
        %1803 = vmatpush1.msra.mxu0 0.0
        %1804 = vmatprep.subr.mxu0 0.0
        %1805 = vmatpush1.msra.mxu0 0.0
        %1806 = vmatprep.subr.mxu0 0.0
        %1807 = vmatpush1.msra.mxu0 0.0
        %1808 = vmatprep.subr.mxu0 0.0
        %1809 = vmatpush1.msra.mxu0 0.0
        %1810 = vmatprep.mubr.f32.mxu0 0.0
        %1811 = vmatmul.mubr.f32.gmra.mrb[0].mxu0 %v1744
        %v1812 = vpop.f32.mrb[0].mxu0
        %v1813 = vadd.f32 %v1741, %v1812
        %v1814 = vpop.f32.mrb[0].mxu0
        %1815 = vdwg.mxu0
        %1817 = vrot.lane.b32.xlu0 %v1813, 96
        %v1818 = vpop.permute.xlu0 %1817
        %v1819 = vsel %vm719, %v1813, 0
        %v1821 = vsel %vm719, %v1818, 0
        %1823 = vmatprep.subr.mxu0 0.0
        %1824 = vmatpush1.xpose.msra.mxu0 %v1821
        %1825 = vmatprep.subr.mxu0 0.0
        %1826 = vmatpush1.xpose.msra.mxu0 0.0
        %1827 = vmatprep.subr.mxu0 0.0
        %1828 = vmatpush1.xpose.msra.mxu0 0.0
        %1829 = vmatprep.subr.mxu0 0.0
        %1830 = vmatpush1.xpose.msra.mxu0 0.0
        %1831 = vmatprep.subr.mxu0 0.0
        %1832 = vmatpush1.xpose.msra.mxu0 0.0
        %1833 = vmatprep.subr.mxu0 0.0
        %1834 = vmatpush1.xpose.msra.mxu0 0.0
        %1835 = vmatprep.subr.mxu0 0.0
        %1836 = vmatpush1.xpose.msra.mxu0 0.0
        %1837 = vmatprep.subr.mxu0 0.0
        %1838 = vmatpush1.xpose.msra.mxu0 0.0
        %1839 = vmatprep.subr.mxu0 0.0
        %1840 = vmatpush1.xpose.msra.mxu0 0.0
        %1841 = vmatprep.subr.mxu0 0.0
        %1842 = vmatpush1.xpose.msra.mxu0 0.0
        %1843 = vmatprep.subr.mxu0 0.0
        %1844 = vmatpush1.xpose.msra.mxu0 0.0
        %1845 = vmatprep.subr.mxu0 0.0
        %1846 = vmatpush1.xpose.msra.mxu0 0.0
        %1847 = vmatprep.subr.mxu0 0.0
        %1848 = vmatpush1.xpose.msra.mxu0 0.0
        %1849 = vmatprep.subr.mxu0 0.0
        %1850 = vmatpush1.xpose.msra.mxu0 0.0
        %1851 = vmatprep.subr.mxu0 0.0
        %1852 = vmatpush1.xpose.msra.mxu0 0.0
        %1853 = vmatprep.subr.mxu0 0.0
        %1854 = vmatpush1.xpose.msra.mxu0 0.0
        %1855 = vmatprep.subr.mxu0 0.0
        %1856 = vmatpush1.xpose.msra.mxu0 0.0
        %1857 = vmatprep.subr.mxu0 0.0
        %1858 = vmatpush1.xpose.msra.mxu0 0.0
        %1859 = vmatprep.subr.mxu0 0.0
        %1860 = vmatpush1.xpose.msra.mxu0 0.0
        %1861 = vmatprep.subr.mxu0 0.0
        %1862 = vmatpush1.xpose.msra.mxu0 0.0
        %1863 = vmatprep.subr.mxu0 0.0
        %1864 = vmatpush1.xpose.msra.mxu0 0.0
        %1865 = vmatprep.subr.mxu0 0.0
        %1866 = vmatpush1.xpose.msra.mxu0 0.0
        %1867 = vmatprep.subr.mxu0 0.0
        %1868 = vmatpush1.xpose.msra.mxu0 0.0
        %1869 = vmatprep.subr.mxu0 0.0
        %1870 = vmatpush1.xpose.msra.mxu0 0.0
        %1871 = vmatprep.subr.mxu0 0.0
        %1872 = vmatpush1.xpose.msra.mxu0 0.0
        %1873 = vmatprep.subr.mxu0 0.0
        %1874 = vmatpush1.xpose.msra.mxu0 0.0
        %1875 = vmatprep.subr.mxu0 0.0
        %1876 = vmatpush1.xpose.msra.mxu0 0.0
        %1877 = vmatprep.subr.mxu0 0.0
        %1878 = vmatpush1.xpose.msra.mxu0 0.0
        %1879 = vmatprep.subr.mxu0 0.0
        %1880 = vmatpush1.xpose.msra.mxu0 0.0
        %1881 = vmatprep.subr.mxu0 0.0
        %1882 = vmatpush1.xpose.msra.mxu0 0.0
        %1883 = vmatprep.subr.mxu0 0.0
        %1884 = vmatpush1.xpose.msra.mxu0 0.0
        %1885 = vmatprep.subr.mxu0 0.0
        %1886 = vmatpush1.xpose.msra.mxu0 0.0
        %1887 = vmatprep.mubr.f32.mxu0 0.0
        %1888 = vmatmul.mubr.f32.gmra.mrb[0].mxu0 %v1819
        %v1889 = vpop.f32.mrb[0].mxu0
        %v1890 = vadd.f32 0.0, %v1889
        %v1891 = vpop.f32.mrb[0].mxu0
        %1892 = vdwg.mxu0
        %v1893 = vmul.f32 %v1890, 0.35355338
        %v1894 = vadd.f32 %v1893, %v599
        %v1895 = vsel %vm719, %v1894, -inf
        %1896 = vmax.xlane.f32.xlu0 %v1895
        %v1897 = vpop.xlane.xlu0 %1896
        %v1898 = vsub.f32 %v1894, %v1897
        %v1899 = vmul.f32 %v1898, 1.442695
        %v1900 = vpow.pop %v1899
        %v1901 = vsel %vm719, %v1900, 0.0
        %1902 = vadd.xlane.f32.xlu0 %v1901
        %v1903 = vpop.xlane.xlu0 %1902
        %v1904 = vrcp.pop %v1903
        %v1905 = vmul.f32 %v1900, %v1904
        %1906 = vrot.lane.b32.xlu0 %v1813, 64
        %v1907 = vpop.permute.xlu0 %1906
        %v1910 = vsel %vm719, %v1905, 0
        %1912 = vmatprep.subr.mxu0 0.0
        %1913 = vmatpush1.msra.mxu0 %v1907
        %1914 = vmatprep.subr.mxu0 0.0
        %1915 = vmatpush1.msra.mxu0 0.0
        %1916 = vmatprep.subr.mxu0 0.0
        %1917 = vmatpush1.msra.mxu0 0.0
        %1918 = vmatprep.subr.mxu0 0.0
        %1919 = vmatpush1.msra.mxu0 0.0
        %1920 = vmatprep.subr.mxu0 0.0
        %1921 = vmatpush1.msra.mxu0 0.0
        %1922 = vmatprep.subr.mxu0 0.0
        %1923 = vmatpush1.msra.mxu0 0.0
        %1924 = vmatprep.subr.mxu0 0.0
        %1925 = vmatpush1.msra.mxu0 0.0
        %1926 = vmatprep.subr.mxu0 0.0
        %1927 = vmatpush1.msra.mxu0 0.0
        %1928 = vmatprep.subr.mxu0 0.0
        %1929 = vmatpush1.msra.mxu0 0.0
        %1930 = vmatprep.subr.mxu0 0.0
        %1931 = vmatpush1.msra.mxu0 0.0
        %1932 = vmatprep.subr.mxu0 0.0
        %1933 = vmatpush1.msra.mxu0 0.0
        %1934 = vmatprep.subr.mxu0 0.0
        %1935 = vmatpush1.msra.mxu0 0.0
        %1936 = vmatprep.subr.mxu0 0.0
        %1937 = vmatpush1.msra.mxu0 0.0
        %1938 = vmatprep.subr.mxu0 0.0
        %1939 = vmatpush1.msra.mxu0 0.0
        %1940 = vmatprep.subr.mxu0 0.0
        %1941 = vmatpush1.msra.mxu0 0.0
        %1942 = vmatprep.subr.mxu0 0.0
        %1943 = vmatpush1.msra.mxu0 0.0
        %1944 = vmatprep.subr.mxu0 0.0
        %1945 = vmatpush1.msra.mxu0 0.0
        %1946 = vmatprep.subr.mxu0 0.0
        %1947 = vmatpush1.msra.mxu0 0.0
        %1948 = vmatprep.subr.mxu0 0.0
        %1949 = vmatpush1.msra.mxu0 0.0
        %1950 = vmatprep.subr.mxu0 0.0
        %1951 = vmatpush1.msra.mxu0 0.0
        %1952 = vmatprep.subr.mxu0 0.0
        %1953 = vmatpush1.msra.mxu0 0.0
        %1954 = vmatprep.subr.mxu0 0.0
        %1955 = vmatpush1.msra.mxu0 0.0
        %1956 = vmatprep.subr.mxu0 0.0
        %1957 = vmatpush1.msra.mxu0 0.0
        %1958 = vmatprep.subr.mxu0 0.0
        %1959 = vmatpush1.msra.mxu0 0.0
        %1960 = vmatprep.subr.mxu0 0.0
        %1961 = vmatpush1.msra.mxu0 0.0
        %1962 = vmatprep.subr.mxu0 0.0
        %1963 = vmatpush1.msra.mxu0 0.0
        %1964 = vmatprep.subr.mxu0 0.0
        %1965 = vmatpush1.msra.mxu0 0.0
        %1966 = vmatprep.subr.mxu0 0.0
        %1967 = vmatpush1.msra.mxu0 0.0
        %1968 = vmatprep.subr.mxu0 0.0
        %1969 = vmatpush1.msra.mxu0 0.0
        %1970 = vmatprep.subr.mxu0 0.0
        %1971 = vmatpush1.msra.mxu0 0.0
        %1972 = vmatprep.subr.mxu0 0.0
        %1973 = vmatpush1.msra.mxu0 0.0
        %1974 = vmatprep.subr.mxu0 0.0
        %1975 = vmatpush1.msra.mxu0 0.0
        %1976 = vmatprep.mubr.f32.mxu0 0.0
        %1977 = vmatmul.mubr.f32.gmra.mrb[0].mxu0 %v1910
        %v1978 = vpop.f32.mrb[0].mxu0
        %v1979 = vadd.f32 0.0, %v1978
        %v1980 = vpop.f32.mrb[0].mxu0
        %1981 = vdwg.mxu0
        %1982 = vrot.lane.b32.xlu0 %v1813, 120
        %v1983 = vpop.permute.xlu0 %1982
        %1984 = vrot.lane.b32.xlu0 %v1813, 88
        %v1985 = vpop.permute.xlu0 %1984
        %v1986 = vsel %vm719, %v1983, 0
        %v1988 = vsel %vm719, %v1985, 0
        %1990 = vmatprep.subr.mxu0 0.0
        %1991 = vmatpush1.xpose.msra.mxu0 %v1988
        %1992 = vmatprep.subr.mxu0 0.0
        %1993 = vmatpush1.xpose.msra.mxu0 0.0
        %1994 = vmatprep.subr.mxu0 0.0
        %1995 = vmatpush1.xpose.msra.mxu0 0.0
        %1996 = vmatprep.subr.mxu0 0.0
        %1997 = vmatpush1.xpose.msra.mxu0 0.0
        %1998 = vmatprep.subr.mxu0 0.0
        %1999 = vmatpush1.xpose.msra.mxu0 0.0
        %2000 = vmatprep.subr.mxu0 0.0
        %2001 = vmatpush1.xpose.msra.mxu0 0.0
        %2002 = vmatprep.subr.mxu0 0.0
        %2003 = vmatpush1.xpose.msra.mxu0 0.0
        %2004 = vmatprep.subr.mxu0 0.0
        %2005 = vmatpush1.xpose.msra.mxu0 0.0
        %2006 = vmatprep.subr.mxu0 0.0
        %2007 = vmatpush1.xpose.msra.mxu0 0.0
        %2008 = vmatprep.subr.mxu0 0.0
        %2009 = vmatpush1.xpose.msra.mxu0 0.0
        %2010 = vmatprep.subr.mxu0 0.0
        %2011 = vmatpush1.xpose.msra.mxu0 0.0
        %2012 = vmatprep.subr.mxu0 0.0
        %2013 = vmatpush1.xpose.msra.mxu0 0.0
        %2014 = vmatprep.subr.mxu0 0.0
        %2015 = vmatpush1.xpose.msra.mxu0 0.0
        %2016 = vmatprep.subr.mxu0 0.0
        %2017 = vmatpush1.xpose.msra.mxu0 0.0
        %2018 = vmatprep.subr.mxu0 0.0
        %2019 = vmatpush1.xpose.msra.mxu0 0.0
        %2020 = vmatprep.subr.mxu0 0.0
        %2021 = vmatpush1.xpose.msra.mxu0 0.0
        %2022 = vmatprep.subr.mxu0 0.0
        %2023 = vmatpush1.xpose.msra.mxu0 0.0
        %2024 = vmatprep.subr.mxu0 0.0
        %2025 = vmatpush1.xpose.msra.mxu0 0.0
        %2026 = vmatprep.subr.mxu0 0.0
        %2027 = vmatpush1.xpose.msra.mxu0 0.0
        %2028 = vmatprep.subr.mxu0 0.0
        %2029 = vmatpush1.xpose.msra.mxu0 0.0
        %2030 = vmatprep.subr.mxu0 0.0
        %2031 = vmatpush1.xpose.msra.mxu0 0.0
        %2032 = vmatprep.subr.mxu0 0.0
        %2033 = vmatpush1.xpose.msra.mxu0 0.0
        %2034 = vmatprep.subr.mxu0 0.0
        %2035 = vmatpush1.xpose.msra.mxu0 0.0
        %2036 = vmatprep.subr.mxu0 0.0
        %2037 = vmatpush1.xpose.msra.mxu0 0.0
        %2038 = vmatprep.subr.mxu0 0.0
        %2039 = vmatpush1.xpose.msra.mxu0 0.0
        %2040 = vmatprep.subr.mxu0 0.0
        %2041 = vmatpush1.xpose.msra.mxu0 0.0
        %2042 = vmatprep.subr.mxu0 0.0
        %2043 = vmatpush1.xpose.msra.mxu0 0.0
        %2044 = vmatprep.subr.mxu0 0.0
        %2045 = vmatpush1.xpose.msra.mxu0 0.0
        %2046 = vmatprep.subr.mxu0 0.0
        %2047 = vmatpush1.xpose.msra.mxu0 0.0
        %2048 = vmatprep.subr.mxu0 0.0
        %2049 = vmatpush1.xpose.msra.mxu0 0.0
        %2050 = vmatprep.subr.mxu0 0.0
        %2051 = vmatpush1.xpose.msra.mxu0 0.0
        %2052 = vmatprep.subr.mxu0 0.0
        %2053 = vmatpush1.xpose.msra.mxu0 0.0
        %2054 = vmatprep.mubr.f32.mxu0 0.0
        %2055 = vmatmul.mubr.f32.gmra.mrb[0].mxu0 %v1986
        %v2056 = vpop.f32.mrb[0].mxu0
        %v2057 = vadd.f32 0.0, %v2056
        %v2058 = vpop.f32.mrb[0].mxu0
        %2059 = vdwg.mxu0
        %v2060 = vmul.f32 %v2057, 0.35355338
        %v2061 = vadd.f32 %v2060, %v599
        %v2062 = vsel %vm719, %v2061, -inf
        %2063 = vmax.xlane.f32.xlu0 %v2062
        %v2064 = vpop.xlane.xlu0 %2063
        %v2065 = vsub.f32 %v2061, %v2064
        %v2066 = vmul.f32 %v2065, 1.442695
        %v2067 = vpow.pop %v2066
        %v2068 = vsel %vm719, %v2067, 0.0
        %2069 = vadd.xlane.f32.xlu0 %v2068
        %v2070 = vpop.xlane.xlu0 %2069
        %v2071 = vrcp.pop %v2070
        %v2072 = vmul.f32 %v2067, %v2071
        %2073 = vrot.lane.b32.xlu0 %v1813, 56
        %v2074 = vpop.permute.xlu0 %2073
        %v2077 = vsel %vm719, %v2072, 0
        %2079 = vmatprep.subr.mxu0 0.0
        %2080 = vmatpush1.msra.mxu0 %v2074
        %2081 = vmatprep.subr.mxu0 0.0
        %2082 = vmatpush1.msra.mxu0 0.0
        %2083 = vmatprep.subr.mxu0 0.0
        %2084 = vmatpush1.msra.mxu0 0.0
        %2085 = vmatprep.subr.mxu0 0.0
        %2086 = vmatpush1.msra.mxu0 0.0
        %2087 = vmatprep.subr.mxu0 0.0
        %2088 = vmatpush1.msra.mxu0 0.0
        %2089 = vmatprep.subr.mxu0 0.0
        %2090 = vmatpush1.msra.mxu0 0.0
        %2091 = vmatprep.subr.mxu0 0.0
        %2092 = vmatpush1.msra.mxu0 0.0
        %2093 = vmatprep.subr.mxu0 0.0
        %2094 = vmatpush1.msra.mxu0 0.0
        %2095 = vmatprep.subr.mxu0 0.0
        %2096 = vmatpush1.msra.mxu0 0.0
        %2097 = vmatprep.subr.mxu0 0.0
        %2098 = vmatpush1.msra.mxu0 0.0
        %2099 = vmatprep.subr.mxu0 0.0
        %2100 = vmatpush1.msra.mxu0 0.0
        %2101 = vmatprep.subr.mxu0 0.0
        %2102 = vmatpush1.msra.mxu0 0.0
        %2103 = vmatprep.subr.mxu0 0.0
        %2104 = vmatpush1.msra.mxu0 0.0
        %2105 = vmatprep.subr.mxu0 0.0
        %2106 = vmatpush1.msra.mxu0 0.0
        %2107 = vmatprep.subr.mxu0 0.0
        %2108 = vmatpush1.msra.mxu0 0.0
        %2109 = vmatprep.subr.mxu0 0.0
        %2110 = vmatpush1.msra.mxu0 0.0
        %2111 = vmatprep.subr.mxu0 0.0
        %2112 = vmatpush1.msra.mxu0 0.0
        %2113 = vmatprep.subr.mxu0 0.0
        %2114 = vmatpush1.msra.mxu0 0.0
        %2115 = vmatprep.subr.mxu0 0.0
        %2116 = vmatpush1.msra.mxu0 0.0
        %2117 = vmatprep.subr.mxu0 0.0
        %2118 = vmatpush1.msra.mxu0 0.0
        %2119 = vmatprep.subr.mxu0 0.0
        %2120 = vmatpush1.msra.mxu0 0.0
        %2121 = vmatprep.subr.mxu0 0.0
        %2122 = vmatpush1.msra.mxu0 0.0
        %2123 = vmatprep.subr.mxu0 0.0
        %2124 = vmatpush1.msra.mxu0 0.0
        %2125 = vmatprep.subr.mxu0 0.0
        %2126 = vmatpush1.msra.mxu0 0.0
        %2127 = vmatprep.subr.mxu0 0.0
        %2128 = vmatpush1.msra.mxu0 0.0
        %2129 = vmatprep.subr.mxu0 0.0
        %2130 = vmatpush1.msra.mxu0 0.0
        %2131 = vmatprep.subr.mxu0 0.0
        %2132 = vmatpush1.msra.mxu0 0.0
        %2133 = vmatprep.subr.mxu0 0.0
        %2134 = vmatpush1.msra.mxu0 0.0
        %2135 = vmatprep.subr.mxu0 0.0
        %2136 = vmatpush1.msra.mxu0 0.0
        %2137 = vmatprep.subr.mxu0 0.0
        %2138 = vmatpush1.msra.mxu0 0.0
        %2139 = vmatprep.subr.mxu0 0.0
        %2140 = vmatpush1.msra.mxu0 0.0
        %2141 = vmatprep.subr.mxu0 0.0
        %2142 = vmatpush1.msra.mxu0 0.0
        %2143 = vmatprep.mubr.f32.mxu0 0.0
        %2144 = vmatmul.mubr.f32.gmra.mrb[0].mxu0 %v2077
        %v2145 = vpop.f32.mrb[0].mxu0
        %v2146 = vadd.f32 0.0, %v2145
        %v2147 = vpop.f32.mrb[0].mxu0
        %2148 = vdwg.mxu0
        %2149 = vrot.lane.b32.xlu0 %v1813, 112
        %v2150 = vpop.permute.xlu0 %2149
        %2151 = vrot.lane.b32.xlu0 %v1813, 80
        %v2152 = vpop.permute.xlu0 %2151
        %v2153 = vsel %vm719, %v2150, 0
        %v2155 = vsel %vm719, %v2152, 0
        %2157 = vmatprep.subr.mxu0 0.0
        %2158 = vmatpush1.xpose.msra.mxu0 %v2155
        %2159 = vmatprep.subr.mxu0 0.0
        %2160 = vmatpush1.xpose.msra.mxu0 0.0
        %2161 = vmatprep.subr.mxu0 0.0
        %2162 = vmatpush1.xpose.msra.mxu0 0.0
        %2163 = vmatprep.subr.mxu0 0.0
        %2164 = vmatpush1.xpose.msra.mxu0 0.0
        %2165 = vmatprep.subr.mxu0 0.0
        %2166 = vmatpush1.xpose.msra.mxu0 0.0
        %2167 = vmatprep.subr.mxu0 0.0
        %2168 = vmatpush1.xpose.msra.mxu0 0.0
        %2169 = vmatprep.subr.mxu0 0.0
        %2170 = vmatpush1.xpose.msra.mxu0 0.0
        %2171 = vmatprep.subr.mxu0 0.0
        %2172 = vmatpush1.xpose.msra.mxu0 0.0
        %2173 = vmatprep.subr.mxu0 0.0
        %2174 = vmatpush1.xpose.msra.mxu0 0.0
        %2175 = vmatprep.subr.mxu0 0.0
        %2176 = vmatpush1.xpose.msra.mxu0 0.0
        %2177 = vmatprep.subr.mxu0 0.0
        %2178 = vmatpush1.xpose.msra.mxu0 0.0
        %2179 = vmatprep.subr.mxu0 0.0
        %2180 = vmatpush1.xpose.msra.mxu0 0.0
        %2181 = vmatprep.subr.mxu0 0.0
        %2182 = vmatpush1.xpose.msra.mxu0 0.0
        %2183 = vmatprep.subr.mxu0 0.0
        %2184 = vmatpush1.xpose.msra.mxu0 0.0
        %2185 = vmatprep.subr.mxu0 0.0
        %2186 = vmatpush1.xpose.msra.mxu0 0.0
        %2187 = vmatprep.subr.mxu0 0.0
        %2188 = vmatpush1.xpose.msra.mxu0 0.0
        %2189 = vmatprep.subr.mxu0 0.0
        %2190 = vmatpush1.xpose.msra.mxu0 0.0
        %2191 = vmatprep.subr.mxu0 0.0
        %2192 = vmatpush1.xpose.msra.mxu0 0.0
        %2193 = vmatprep.subr.mxu0 0.0
        %2194 = vmatpush1.xpose.msra.mxu0 0.0
        %2195 = vmatprep.subr.mxu0 0.0
        %2196 = vmatpush1.xpose.msra.mxu0 0.0
        %2197 = vmatprep.subr.mxu0 0.0
        %2198 = vmatpush1.xpose.msra.mxu0 0.0
        %2199 = vmatprep.subr.mxu0 0.0
        %2200 = vmatpush1.xpose.msra.mxu0 0.0
        %2201 = vmatprep.subr.mxu0 0.0
        %2202 = vmatpush1.xpose.msra.mxu0 0.0
        %2203 = vmatprep.subr.mxu0 0.0
        %2204 = vmatpush1.xpose.msra.mxu0 0.0
        %2205 = vmatprep.subr.mxu0 0.0
        %2206 = vmatpush1.xpose.msra.mxu0 0.0
        %2207 = vmatprep.subr.mxu0 0.0
        %2208 = vmatpush1.xpose.msra.mxu0 0.0
        %2209 = vmatprep.subr.mxu0 0.0
        %2210 = vmatpush1.xpose.msra.mxu0 0.0
        %2211 = vmatprep.subr.mxu0 0.0
        %2212 = vmatpush1.xpose.msra.mxu0 0.0
        %2213 = vmatprep.subr.mxu0 0.0
        %2214 = vmatpush1.xpose.msra.mxu0 0.0
        %2215 = vmatprep.subr.mxu0 0.0
        %2216 = vmatpush1.xpose.msra.mxu0 0.0
        %2217 = vmatprep.subr.mxu0 0.0
        %2218 = vmatpush1.xpose.msra.mxu0 0.0
        %2219 = vmatprep.subr.mxu0 0.0
        %2220 = vmatpush1.xpose.msra.mxu0 0.0
        %2221 = vmatprep.mubr.f32.mxu0 0.0
        %2222 = vmatmul.mubr.f32.gmra.mrb[0].mxu0 %v2153
        %v2223 = vpop.f32.mrb[0].mxu0
        %v2224 = vadd.f32 0.0, %v2223
        %v2225 = vpop.f32.mrb[0].mxu0
        %2226 = vdwg.mxu0
        %v2227 = vmul.f32 %v2224, 0.35355338
        %v2228 = vadd.f32 %v2227, %v599
        %v2229 = vsel %vm719, %v2228, -inf
        %2230 = vmax.xlane.f32.xlu0 %v2229
        %v2231 = vpop.xlane.xlu0 %2230
        %v2232 = vsub.f32 %v2228, %v2231
        %v2233 = vmul.f32 %v2232, 1.442695
        %v2234 = vpow.pop %v2233
        %v2235 = vsel %vm719, %v2234, 0.0
        %2236 = vadd.xlane.f32.xlu0 %v2235
        %v2237 = vpop.xlane.xlu0 %2236
        %v2238 = vrcp.pop %v2237
        %v2239 = vmul.f32 %v2234, %v2238
        %2240 = vrot.lane.b32.xlu0 %v1813, 48
        %v2241 = vpop.permute.xlu0 %2240
        %v2244 = vsel %vm719, %v2239, 0
        %2246 = vmatprep.subr.mxu0 0.0
        %2247 = vmatpush1.msra.mxu0 %v2241
        %2248 = vmatprep.subr.mxu0 0.0
        %2249 = vmatpush1.msra.mxu0 0.0
        %2250 = vmatprep.subr.mxu0 0.0
        %2251 = vmatpush1.msra.mxu0 0.0
        %2252 = vmatprep.subr.mxu0 0.0
        %2253 = vmatpush1.msra.mxu0 0.0
        %2254 = vmatprep.subr.mxu0 0.0
        %2255 = vmatpush1.msra.mxu0 0.0
        %2256 = vmatprep.subr.mxu0 0.0
        %2257 = vmatpush1.msra.mxu0 0.0
        %2258 = vmatprep.subr.mxu0 0.0
        %2259 = vmatpush1.msra.mxu0 0.0
        %2260 = vmatprep.subr.mxu0 0.0
        %2261 = vmatpush1.msra.mxu0 0.0
        %2262 = vmatprep.subr.mxu0 0.0
        %2263 = vmatpush1.msra.mxu0 0.0
        %2264 = vmatprep.subr.mxu0 0.0
        %2265 = vmatpush1.msra.mxu0 0.0
        %2266 = vmatprep.subr.mxu0 0.0
        %2267 = vmatpush1.msra.mxu0 0.0
        %2268 = vmatprep.subr.mxu0 0.0
        %2269 = vmatpush1.msra.mxu0 0.0
        %2270 = vmatprep.subr.mxu0 0.0
        %2271 = vmatpush1.msra.mxu0 0.0
        %2272 = vmatprep.subr.mxu0 0.0
        %2273 = vmatpush1.msra.mxu0 0.0
        %2274 = vmatprep.subr.mxu0 0.0
        %2275 = vmatpush1.msra.mxu0 0.0
        %2276 = vmatprep.subr.mxu0 0.0
        %2277 = vmatpush1.msra.mxu0 0.0
        %2278 = vmatprep.subr.mxu0 0.0
        %2279 = vmatpush1.msra.mxu0 0.0
        %2280 = vmatprep.subr.mxu0 0.0
        %2281 = vmatpush1.msra.mxu0 0.0
        %2282 = vmatprep.subr.mxu0 0.0
        %2283 = vmatpush1.msra.mxu0 0.0
        %2284 = vmatprep.subr.mxu0 0.0
        %2285 = vmatpush1.msra.mxu0 0.0
        %2286 = vmatprep.subr.mxu0 0.0
        %2287 = vmatpush1.msra.mxu0 0.0
        %2288 = vmatprep.subr.mxu0 0.0
        %2289 = vmatpush1.msra.mxu0 0.0
        %2290 = vmatprep.subr.mxu0 0.0
        %2291 = vmatpush1.msra.mxu0 0.0
        %2292 = vmatprep.subr.mxu0 0.0
        %2293 = vmatpush1.msra.mxu0 0.0
        %2294 = vmatprep.subr.mxu0 0.0
        %2295 = vmatpush1.msra.mxu0 0.0
        %2296 = vmatprep.subr.mxu0 0.0
        %2297 = vmatpush1.msra.mxu0 0.0
        %2298 = vmatprep.subr.mxu0 0.0
        %2299 = vmatpush1.msra.mxu0 0.0
        %2300 = vmatprep.subr.mxu0 0.0
        %2301 = vmatpush1.msra.mxu0 0.0
        %2302 = vmatprep.subr.mxu0 0.0
        %2303 = vmatpush1.msra.mxu0 0.0
        %2304 = vmatprep.subr.mxu0 0.0
        %2305 = vmatpush1.msra.mxu0 0.0
        %2306 = vmatprep.subr.mxu0 0.0
        %2307 = vmatpush1.msra.mxu0 0.0
        %2308 = vmatprep.subr.mxu0 0.0
        %2309 = vmatpush1.msra.mxu0 0.0
        %2310 = vmatprep.mubr.f32.mxu0 0.0
        %2311 = vmatmul.mubr.f32.gmra.mrb[0].mxu0 %v2244
        %v2312 = vpop.f32.mrb[0].mxu0
        %v2313 = vadd.f32 0.0, %v2312
        %v2314 = vpop.f32.mrb[0].mxu0
        %2315 = vdwg.mxu0
        %2316 = vrot.lane.b32.xlu0 %v1813, 104
        %v2317 = vpop.permute.xlu0 %2316
        %2318 = vrot.lane.b32.xlu0 %v1813, 72
        %v2319 = vpop.permute.xlu0 %2318
        %v2320 = vsel %vm719, %v2317, 0
        %v2322 = vsel %vm719, %v2319, 0
        %2324 = vmatprep.subr.mxu0 0.0
        %2325 = vmatpush1.xpose.msra.mxu0 %v2322
        %2326 = vmatprep.subr.mxu0 0.0
        %2327 = vmatpush1.xpose.msra.mxu0 0.0
        %2328 = vmatprep.subr.mxu0 0.0
        %2329 = vmatpush1.xpose.msra.mxu0 0.0
        %2330 = vmatprep.subr.mxu0 0.0
        %2331 = vmatpush1.xpose.msra.mxu0 0.0
        %2332 = vmatprep.subr.mxu0 0.0
        %2333 = vmatpush1.xpose.msra.mxu0 0.0
        %2334 = vmatprep.subr.mxu0 0.0
        %2335 = vmatpush1.xpose.msra.mxu0 0.0
        %2336 = vmatprep.subr.mxu0 0.0
        %2337 = vmatpush1.xpose.msra.mxu0 0.0
        %2338 = vmatprep.subr.mxu0 0.0
        %2339 = vmatpush1.xpose.msra.mxu0 0.0
        %2340 = vmatprep.subr.mxu0 0.0
        %2341 = vmatpush1.xpose.msra.mxu0 0.0
        %2342 = vmatprep.subr.mxu0 0.0
        %2343 = vmatpush1.xpose.msra.mxu0 0.0
        %2344 = vmatprep.subr.mxu0 0.0
        %2345 = vmatpush1.xpose.msra.mxu0 0.0
        %2346 = vmatprep.subr.mxu0 0.0
        %2347 = vmatpush1.xpose.msra.mxu0 0.0
        %2348 = vmatprep.subr.mxu0 0.0
        %2349 = vmatpush1.xpose.msra.mxu0 0.0
        %2350 = vmatprep.subr.mxu0 0.0
        %2351 = vmatpush1.xpose.msra.mxu0 0.0
        %2352 = vmatprep.subr.mxu0 0.0
        %2353 = vmatpush1.xpose.msra.mxu0 0.0
        %2354 = vmatprep.subr.mxu0 0.0
        %2355 = vmatpush1.xpose.msra.mxu0 0.0
        %2356 = vmatprep.subr.mxu0 0.0
        %2357 = vmatpush1.xpose.msra.mxu0 0.0
        %2358 = vmatprep.subr.mxu0 0.0
        %2359 = vmatpush1.xpose.msra.mxu0 0.0
        %2360 = vmatprep.subr.mxu0 0.0
        %2361 = vmatpush1.xpose.msra.mxu0 0.0
        %2362 = vmatprep.subr.mxu0 0.0
        %2363 = vmatpush1.xpose.msra.mxu0 0.0
        %2364 = vmatprep.subr.mxu0 0.0
        %2365 = vmatpush1.xpose.msra.mxu0 0.0
        %2366 = vmatprep.subr.mxu0 0.0
        %2367 = vmatpush1.xpose.msra.mxu0 0.0
        %2368 = vmatprep.subr.mxu0 0.0
        %2369 = vmatpush1.xpose.msra.mxu0 0.0
        %2370 = vmatprep.subr.mxu0 0.0
        %2371 = vmatpush1.xpose.msra.mxu0 0.0
        %2372 = vmatprep.subr.mxu0 0.0
        %2373 = vmatpush1.xpose.msra.mxu0 0.0
        %2374 = vmatprep.subr.mxu0 0.0
        %2375 = vmatpush1.xpose.msra.mxu0 0.0
        %2376 = vmatprep.subr.mxu0 0.0
        %2377 = vmatpush1.xpose.msra.mxu0 0.0
        %2378 = vmatprep.subr.mxu0 0.0
        %2379 = vmatpush1.xpose.msra.mxu0 0.0
        %2380 = vmatprep.subr.mxu0 0.0
        %2381 = vmatpush1.xpose.msra.mxu0 0.0
        %2382 = vmatprep.subr.mxu0 0.0
        %2383 = vmatpush1.xpose.msra.mxu0 0.0
        %2384 = vmatprep.subr.mxu0 0.0
        %2385 = vmatpush1.xpose.msra.mxu0 0.0
        %2386 = vmatprep.subr.mxu0 0.0
        %2387 = vmatpush1.xpose.msra.mxu0 0.0
        %2388 = vmatprep.mubr.f32.mxu0 0.0
        %2389 = vmatmul.mubr.f32.gmra.mrb[0].mxu0 %v2320
        %v2390 = vpop.f32.mrb[0].mxu0
        %v2391 = vadd.f32 0.0, %v2390
        %v2392 = vpop.f32.mrb[0].mxu0
        %2393 = vdwg.mxu0
        %v2394 = vmul.f32 %v2391, 0.35355338
        %v2395 = vadd.f32 %v2394, %v599
        %v2396 = vsel %vm719, %v2395, -inf
        %2397 = vmax.xlane.f32.xlu0 %v2396
        %v2398 = vpop.xlane.xlu0 %2397
        %v2399 = vsub.f32 %v2395, %v2398
        %v2400 = vmul.f32 %v2399, 1.442695
        %v2401 = vpow.pop %v2400
        %v2402 = vsel %vm719, %v2401, 0.0
        %2403 = vadd.xlane.f32.xlu0 %v2402
        %v2404 = vpop.xlane.xlu0 %2403
        %v2405 = vrcp.pop %v2404
        %v2406 = vmul.f32 %v2401, %v2405
        %2407 = vrot.lane.b32.xlu0 %v1813, 40
        %v2408 = vpop.permute.xlu0 %2407
        %v2411 = vsel %vm719, %v2406, 0
        %2413 = vmatprep.subr.mxu0 0.0
        %2414 = vmatpush1.msra.mxu0 %v2408
        %2415 = vmatprep.subr.mxu0 0.0
        %2416 = vmatpush1.msra.mxu0 0.0
        %2417 = vmatprep.subr.mxu0 0.0
        %2418 = vmatpush1.msra.mxu0 0.0
        %2419 = vmatprep.subr.mxu0 0.0
        %2420 = vmatpush1.msra.mxu0 0.0
        %2421 = vmatprep.subr.mxu0 0.0
        %2422 = vmatpush1.msra.mxu0 0.0
        %2423 = vmatprep.subr.mxu0 0.0
        %2424 = vmatpush1.msra.mxu0 0.0
        %2425 = vmatprep.subr.mxu0 0.0
        %2426 = vmatpush1.msra.mxu0 0.0
        %2427 = vmatprep.subr.mxu0 0.0
        %2428 = vmatpush1.msra.mxu0 0.0
        %2429 = vmatprep.subr.mxu0 0.0
        %2430 = vmatpush1.msra.mxu0 0.0
        %2431 = vmatprep.subr.mxu0 0.0
        %2432 = vmatpush1.msra.mxu0 0.0
        %2433 = vmatprep.subr.mxu0 0.0
        %2434 = vmatpush1.msra.mxu0 0.0
        %2435 = vmatprep.subr.mxu0 0.0
        %2436 = vmatpush1.msra.mxu0 0.0
        %2437 = vmatprep.subr.mxu0 0.0
        %2438 = vmatpush1.msra.mxu0 0.0
        %2439 = vmatprep.subr.mxu0 0.0
        %2440 = vmatpush1.msra.mxu0 0.0
        %2441 = vmatprep.subr.mxu0 0.0
        %2442 = vmatpush1.msra.mxu0 0.0
        %2443 = vmatprep.subr.mxu0 0.0
        %2444 = vmatpush1.msra.mxu0 0.0
        %2445 = vmatprep.subr.mxu0 0.0
        %2446 = vmatpush1.msra.mxu0 0.0
        %2447 = vmatprep.subr.mxu0 0.0
        %2448 = vmatpush1.msra.mxu0 0.0
        %2449 = vmatprep.subr.mxu0 0.0
        %2450 = vmatpush1.msra.mxu0 0.0
        %2451 = vmatprep.subr.mxu0 0.0
        %2452 = vmatpush1.msra.mxu0 0.0
        %2453 = vmatprep.subr.mxu0 0.0
        %2454 = vmatpush1.msra.mxu0 0.0
        %2455 = vmatprep.subr.mxu0 0.0
        %2456 = vmatpush1.msra.mxu0 0.0
        %2457 = vmatprep.subr.mxu0 0.0
        %2458 = vmatpush1.msra.mxu0 0.0
        %2459 = vmatprep.subr.mxu0 0.0
        %2460 = vmatpush1.msra.mxu0 0.0
        %2461 = vmatprep.subr.mxu0 0.0
        %2462 = vmatpush1.msra.mxu0 0.0
        %2463 = vmatprep.subr.mxu0 0.0
        %2464 = vmatpush1.msra.mxu0 0.0
        %2465 = vmatprep.subr.mxu0 0.0
        %2466 = vmatpush1.msra.mxu0 0.0
        %2467 = vmatprep.subr.mxu0 0.0
        %2468 = vmatpush1.msra.mxu0 0.0
        %2469 = vmatprep.subr.mxu0 0.0
        %2470 = vmatpush1.msra.mxu0 0.0
        %2471 = vmatprep.subr.mxu0 0.0
        %2472 = vmatpush1.msra.mxu0 0.0
        %2473 = vmatprep.subr.mxu0 0.0
        %2474 = vmatpush1.msra.mxu0 0.0
        %2475 = vmatprep.subr.mxu0 0.0
        %2476 = vmatpush1.msra.mxu0 0.0
        %2477 = vmatprep.mubr.f32.mxu0 0.0
        %2478 = vmatmul.mubr.f32.gmra.mrb[0].mxu0 %v2411
        %v2479 = vpop.f32.mrb[0].mxu0
        %v2480 = vadd.f32 0.0, %v2479
        %v2481 = vpop.f32.mrb[0].mxu0
        %2482 = vdwg.mxu0
        %2484 = vrot.lane.b32.xlu0 %v2146, 8
        %v2485 = vpop.permute.xlu0 %2484
        %2488 = vrot.lane.b32.xlu0 %v2313, 16
        %v2489 = vpop.permute.xlu0 %2488
        %2492 = vrot.lane.b32.xlu0 %v2480, 24
        %v2493 = vpop.permute.xlu0 %2492
        %v2495 = vsel %vm719, %v1979, %v2485
        %v2496 = vsel %vm1397, %v2495, %v2489
        %v2497 = vsel %vm1399, %v2496, %v2493
        %s2498 = scalar_lea.vmem %s7, 32
        %v2499 = vld [vmem:[%s2498] sm:$0xff]
        %v2500 = vld [vmem:[%s2498 + $0x8] sm:$0xff]
        %v2501 = vld [vmem:[%s2498 + $0x10] sm:$0xff]
        %v2502 = vld [vmem:[%s2498 + $0x18] sm:$0xff]
        %s2503 = scalar_lea.vmem %s8, 1
        %v2504 = vld [vmem:[%s2503] sm:$0x1]
        %v2506 = vlaneseq
        %v2507 = vshrl.u32 %v2506, 7
        %v2508 = vsub.s32 0, %v2507
        %v2509 = vrot.slane %v2504, %v2508
        %v2512 = vsel %vm603, %v2497, 0
        %2514 = vmatprep.subr.mxu0 0.0
        %2515 = vmatpush1.msra.mxu0 %v2499
        %2516 = vmatprep.subr.mxu0 0.0
        %2517 = vmatpush1.msra.mxu0 %v2500
        %2518 = vmatprep.subr.mxu0 0.0
        %2519 = vmatpush1.msra.mxu0 %v2501
        %2520 = vmatprep.subr.mxu0 0.0
        %2521 = vmatpush1.msra.mxu0 %v2502
        %2522 = vmatprep.subr.mxu0 0.0
        %2523 = vmatpush1.msra.mxu0 0.0
        %2524 = vmatprep.subr.mxu0 0.0
        %2525 = vmatpush1.msra.mxu0 0.0
        %2526 = vmatprep.subr.mxu0 0.0
        %2527 = vmatpush1.msra.mxu0 0.0
        %2528 = vmatprep.subr.mxu0 0.0
        %2529 = vmatpush1.msra.mxu0 0.0
        %2530 = vmatprep.subr.mxu0 0.0
        %2531 = vmatpush1.msra.mxu0 0.0
        %2532 = vmatprep.subr.mxu0 0.0
        %2533 = vmatpush1.msra.mxu0 0.0
        %2534 = vmatprep.subr.mxu0 0.0
        %2535 = vmatpush1.msra.mxu0 0.0
        %2536 = vmatprep.subr.mxu0 0.0
        %2537 = vmatpush1.msra.mxu0 0.0
        %2538 = vmatprep.subr.mxu0 0.0
        %2539 = vmatpush1.msra.mxu0 0.0
        %2540 = vmatprep.subr.mxu0 0.0
        %2541 = vmatpush1.msra.mxu0 0.0
        %2542 = vmatprep.subr.mxu0 0.0
        %2543 = vmatpush1.msra.mxu0 0.0
        %2544 = vmatprep.subr.mxu0 0.0
        %2545 = vmatpush1.msra.mxu0 0.0
        %2546 = vmatprep.subr.mxu0 0.0
        %2547 = vmatpush1.msra.mxu0 0.0
        %2548 = vmatprep.subr.mxu0 0.0
        %2549 = vmatpush1.msra.mxu0 0.0
        %2550 = vmatprep.subr.mxu0 0.0
        %2551 = vmatpush1.msra.mxu0 0.0
        %2552 = vmatprep.subr.mxu0 0.0
        %2553 = vmatpush1.msra.mxu0 0.0
        %2554 = vmatprep.subr.mxu0 0.0
        %2555 = vmatpush1.msra.mxu0 0.0
        %2556 = vmatprep.subr.mxu0 0.0
        %2557 = vmatpush1.msra.mxu0 0.0
        %2558 = vmatprep.subr.mxu0 0.0
        %2559 = vmatpush1.msra.mxu0 0.0
        %2560 = vmatprep.subr.mxu0 0.0
        %2561 = vmatpush1.msra.mxu0 0.0
        %2562 = vmatprep.subr.mxu0 0.0
        %2563 = vmatpush1.msra.mxu0 0.0
        %2564 = vmatprep.subr.mxu0 0.0
        %2565 = vmatpush1.msra.mxu0 0.0
        %2566 = vmatprep.subr.mxu0 0.0
        %2567 = vmatpush1.msra.mxu0 0.0
        %2568 = vmatprep.subr.mxu0 0.0
        %2569 = vmatpush1.msra.mxu0 0.0
        %2570 = vmatprep.subr.mxu0 0.0
        %2571 = vmatpush1.msra.mxu0 0.0
        %2572 = vmatprep.subr.mxu0 0.0
        %2573 = vmatpush1.msra.mxu0 0.0
        %2574 = vmatprep.subr.mxu0 0.0
        %2575 = vmatpush1.msra.mxu0 0.0
        %2576 = vmatprep.subr.mxu0 0.0
        %2577 = vmatpush1.msra.mxu0 0.0
        %2578 = vmatprep.mubr.f32.mxu0 0.0
        %2579 = vmatmul.mubr.f32.gmra.mrb[0].mxu0 %v2512
        %v2580 = vpop.f32.mrb[0].mxu0
        %v2581 = vadd.f32 %v2509, %v2580
        %v2582 = vpop.f32.mrb[0].mxu0
        %2583 = vdwg.mxu0
        %v2584 = vadd.f32 %v1698, %v2581
        %s2585 = scalar_lea.vmem %s9, 1
        %v2586 = vld [vmem:[%s2585] sm:$0x1]
        %s2587 = scalar_lea.vmem %s10, 1
        %v2588 = vld [vmem:[%s2587] sm:$0x1]
        %v2589 = vsel %vm603, %v2584, 0.0
        %2590 = vadd.xlane.f32.xlu0 %v2589
        %v2591 = vpop.xlane.xlu0 %2590
        %v2592 = vmul.f32 %v2591, %v607
        %v2593 = vsub.f32 %v2584, %v2592
        %v2594 = vmul.f32 %v2593, %v2593
        %v2595 = vsel %vm603, %v2594, 0.0
        %2596 = vadd.xlane.f32.xlu0 %v2595
        %v2597 = vpop.xlane.xlu0 %2596
        %v2598 = vmul.f32 %v2597, %v607
        %v2599 = vadd.f32 %v2598, 1e-05
        %v2600 = vrsqrt.pop %v2599
        %v2601 = vmul.f32 %v2593, %v2600
        %v2603 = vlaneseq
        %v2604 = vshrl.u32 %v2603, 7
        %v2605 = vsub.s32 0, %v2604
        %v2606 = vrot.slane %v2586, %v2605
        %v2608 = vmul.f32 %v2601, %v2606
        %v2610 = vlaneseq
        %v2611 = vshrl.u32 %v2610, 7
        %v2612 = vsub.s32 0, %v2611
        %v2613 = vrot.slane %v2588, %v2612
        %v2615 = vadd.f32 %v2608, %v2613
        %s2616 = scalar_lea.vmem %s11, 32
        %v2617 = vld [vmem:[%s2616] sm:$0xff]
        %v2618 = vld [vmem:[%s2616 + $0x8] sm:$0xff]
        %v2619 = vld [vmem:[%s2616 + $0x10] sm:$0xff]
        %v2620 = vld [vmem:[%s2616 + $0x18] sm:$0xff]
        %s2621 = scalar_lea.vmem %s12, 1
        %v2622 = vld [vmem:[%s2621] sm:$0x1]
        %v2624 = vlaneseq
        %v2625 = vshrl.u32 %v2624, 7
        %v2626 = vsub.s32 0, %v2625
        %v2627 = vrot.slane %v2622, %v2626
        %v2630 = vsel %vm603, %v2615, 0
        %2632 = vmatprep.subr.mxu0 0.0
        %2633 = vmatpush1.msra.mxu0 %v2617
        %2634 = vmatprep.subr.mxu0 0.0
        %2635 = vmatpush1.msra.mxu0 %v2618
        %2636 = vmatprep.subr.mxu0 0.0
        %2637 = vmatpush1.msra.mxu0 %v2619
        %2638 = vmatprep.subr.mxu0 0.0
        %2639 = vmatpush1.msra.mxu0 %v2620
        %2640 = vmatprep.subr.mxu0 0.0
        %2641 = vmatpush1.msra.mxu0 0.0
        %2642 = vmatprep.subr.mxu0 0.0
        %2643 = vmatpush1.msra.mxu0 0.0
        %2644 = vmatprep.subr.mxu0 0.0
        %2645 = vmatpush1.msra.mxu0 0.0
        %2646 = vmatprep.subr.mxu0 0.0
        %2647 = vmatpush1.msra.mxu0 0.0
        %2648 = vmatprep.subr.mxu0 0.0
        %2649 = vmatpush1.msra.mxu0 0.0
        %2650 = vmatprep.subr.mxu0 0.0
        %2651 = vmatpush1.msra.mxu0 0.0
        %2652 = vmatprep.subr.mxu0 0.0
        %2653 = vmatpush1.msra.mxu0 0.0
        %2654 = vmatprep.subr.mxu0 0.0
        %2655 = vmatpush1.msra.mxu0 0.0
        %2656 = vmatprep.subr.mxu0 0.0
        %2657 = vmatpush1.msra.mxu0 0.0
        %2658 = vmatprep.subr.mxu0 0.0
        %2659 = vmatpush1.msra.mxu0 0.0
        %2660 = vmatprep.subr.mxu0 0.0
        %2661 = vmatpush1.msra.mxu0 0.0
        %2662 = vmatprep.subr.mxu0 0.0
        %2663 = vmatpush1.msra.mxu0 0.0
        %2664 = vmatprep.subr.mxu0 0.0
        %2665 = vmatpush1.msra.mxu0 0.0
        %2666 = vmatprep.subr.mxu0 0.0
        %2667 = vmatpush1.msra.mxu0 0.0
        %2668 = vmatprep.subr.mxu0 0.0
        %2669 = vmatpush1.msra.mxu0 0.0
        %2670 = vmatprep.subr.mxu0 0.0
        %2671 = vmatpush1.msra.mxu0 0.0
        %2672 = vmatprep.subr.mxu0 0.0
        %2673 = vmatpush1.msra.mxu0 0.0
        %2674 = vmatprep.subr.mxu0 0.0
        %2675 = vmatpush1.msra.mxu0 0.0
        %2676 = vmatprep.subr.mxu0 0.0
        %2677 = vmatpush1.msra.mxu0 0.0
        %2678 = vmatprep.subr.mxu0 0.0
        %2679 = vmatpush1.msra.mxu0 0.0
        %2680 = vmatprep.subr.mxu0 0.0
        %2681 = vmatpush1.msra.mxu0 0.0
        %2682 = vmatprep.subr.mxu0 0.0
        %2683 = vmatpush1.msra.mxu0 0.0
        %2684 = vmatprep.subr.mxu0 0.0
        %2685 = vmatpush1.msra.mxu0 0.0
        %2686 = vmatprep.subr.mxu0 0.0
        %2687 = vmatpush1.msra.mxu0 0.0
        %2688 = vmatprep.subr.mxu0 0.0
        %2689 = vmatpush1.msra.mxu0 0.0
        %2690 = vmatprep.subr.mxu0 0.0
        %2691 = vmatpush1.msra.mxu0 0.0
        %2692 = vmatprep.subr.mxu0 0.0
        %2693 = vmatpush1.msra.mxu0 0.0
        %2694 = vmatprep.subr.mxu0 0.0
        %2695 = vmatpush1.msra.mxu0 0.0
        %2696 = vmatprep.mubr.f32.mxu0 0.0
        %2697 = vmatmul.mubr.f32.gmra.mrb[0].mxu0 %v2630
        %v2698 = vpop.f32.mrb[0].mxu0
        %v2699 = vadd.f32 %v2627, %v2698
        %v2700 = vpop.f32.mrb[0].mxu0
        %2701 = vdwg.mxu0
        %v2702 = vmul.f32 %v2699, 0.5
        %v2703 = vmul.f32 %v2699, 0.044715
        %v2704 = vmul.f32 %v2703, %v2699
        %v2705 = vmul.f32 %v2704, %v2699
        %v2706 = vadd.f32 %v2699, %v2705
        %v2707 = vmul.f32 %v2706, 0.7978846
        %v2708 = vtanh.pop %v2707
        %v2709 = vadd.f32 %v2708, 1.0
        %v2710 = vmul.f32 %v2702, %v2709
        %s2711 = scalar_lea.vmem %s13, 64
        %v2712 = vld [vmem:[%s2711] sm:$0xff]
        %v2713 = vld [vmem:[%s2711 + $0x8] sm:$0xff]
        %v2714 = vld [vmem:[%s2711 + $0x10] sm:$0xff]
        %v2715 = vld [vmem:[%s2711 + $0x18] sm:$0xff]
        %v2716 = vld [vmem:[%s2711 + $0x20] sm:$0xff]
        %v2717 = vld [vmem:[%s2711 + $0x28] sm:$0xff]
        %v2718 = vld [vmem:[%s2711 + $0x30] sm:$0xff]
        %v2719 = vld [vmem:[%s2711 + $0x38] sm:$0xff]
        %v2721 = vsel %vm1616, %v2710, 0
        %2723 = vmatprep.subr.mxu0 0.0
        %2724 = vmatpush1.msra.mxu0 %v2712
        %2725 = vmatprep.subr.mxu0 0.0
        %2726 = vmatpush1.msra.mxu0 %v2713
        %2727 = vmatprep.subr.mxu0 0.0
        %2728 = vmatpush1.msra.mxu0 %v2714
        %2729 = vmatprep.subr.mxu0 0.0
        %2730 = vmatpush1.msra.mxu0 %v2715
        %2731 = vmatprep.subr.mxu0 0.0
        %2732 = vmatpush1.msra.mxu0 %v2716
        %2733 = vmatprep.subr.mxu0 0.0
        %2734 = vmatpush1.msra.mxu0 %v2717
        %2735 = vmatprep.subr.mxu0 0.0
        %2736 = vmatpush1.msra.mxu0 %v2718
        %2737 = vmatprep.subr.mxu0 0.0
        %2738 = vmatpush1.msra.mxu0 %v2719
        %2739 = vmatprep.subr.mxu0 0.0
        %2740 = vmatpush1.msra.mxu0 0.0
        %2741 = vmatprep.subr.mxu0 0.0
        %2742 = vmatpush1.msra.mxu0 0.0
        %2743 = vmatprep.subr.mxu0 0.0
        %2744 = vmatpush1.msra.mxu0 0.0
        %2745 = vmatprep.subr.mxu0 0.0
        %2746 = vmatpush1.msra.mxu0 0.0
        %2747 = vmatprep.subr.mxu0 0.0
        %2748 = vmatpush1.msra.mxu0 0.0
        %2749 = vmatprep.subr.mxu0 0.0
        %2750 = vmatpush1.msra.mxu0 0.0
        %2751 = vmatprep.subr.mxu0 0.0
        %2752 = vmatpush1.msra.mxu0 0.0
        %2753 = vmatprep.subr.mxu0 0.0
        %2754 = vmatpush1.msra.mxu0 0.0
        %2755 = vmatprep.subr.mxu0 0.0
        %2756 = vmatpush1.msra.mxu0 0.0
        %2757 = vmatprep.subr.mxu0 0.0
        %2758 = vmatpush1.msra.mxu0 0.0
        %2759 = vmatprep.subr.mxu0 0.0
        %2760 = vmatpush1.msra.mxu0 0.0
        %2761 = vmatprep.subr.mxu0 0.0
        %2762 = vmatpush1.msra.mxu0 0.0
        %2763 = vmatprep.subr.mxu0 0.0
        %2764 = vmatpush1.msra.mxu0 0.0
        %2765 = vmatprep.subr.mxu0 0.0
        %2766 = vmatpush1.msra.mxu0 0.0
        %2767 = vmatprep.subr.mxu0 0.0
        %2768 = vmatpush1.msra.mxu0 0.0
        %2769 = vmatprep.subr.mxu0 0.0
        %2770 = vmatpush1.msra.mxu0 0.0
        %2771 = vmatprep.subr.mxu0 0.0
        %2772 = vmatpush1.msra.mxu0 0.0
        %2773 = vmatprep.subr.mxu0 0.0
        %2774 = vmatpush1.msra.mxu0 0.0
        %2775 = vmatprep.subr.mxu0 0.0
        %2776 = vmatpush1.msra.mxu0 0.0
        %2777 = vmatprep.subr.mxu0 0.0
        %2778 = vmatpush1.msra.mxu0 0.0
        %2779 = vmatprep.subr.mxu0 0.0
        %2780 = vmatpush1.msra.mxu0 0.0
        %2781 = vmatprep.subr.mxu0 0.0
        %2782 = vmatpush1.msra.mxu0 0.0
        %2783 = vmatprep.subr.mxu0 0.0
        %2784 = vmatpush1.msra.mxu0 0.0
        %2785 = vmatprep.subr.mxu0 0.0
        %2786 = vmatpush1.msra.mxu0 0.0
        %2787 = vmatprep.mubr.f32.mxu0 0.0
        %2788 = vmatmul.mubr.f32.gmra.mrb[0].mxu0 %v2721
        %v2789 = vpop.f32.mrb[0].mxu0
        %v2790 = vadd.f32 0.0, %v2789
        %v2791 = vpop.f32.mrb[0].mxu0
        %2792 = vdwg.mxu0
        %v2793 = vadd.f32 %v2584, %v2790
        %s2794 = scalar_lea.vmem %s14, 1
        %v2795 = vld [vmem:[%s2794] sm:$0x1]
        %v2797 = vlaneseq
        %v2798 = vshrl.u32 %v2797, 7
        %v2799 = vsub.s32 0, %v2798
        %v2800 = vrot.slane %v2795, %v2799
        %v2802 = vadd.f32 %v2793, %v2800
        %v2803 = vld [vmem:[%s15] sm:$0x1]
        %v2804 = vld [vmem:[%s16] sm:$0x1]
        %v2805 = vsel %vm603, %v2802, 0.0
        %2806 = vadd.xlane.f32.xlu0 %v2805
        %v2807 = vpop.xlane.xlu0 %2806
        %v2808 = vmul.f32 %v2807, %v607
        %v2809 = vsub.f32 %v2802, %v2808
        %v2810 = vmul.f32 %v2809, %v2809
        %v2811 = vsel %vm603, %v2810, 0.0
        %2812 = vadd.xlane.f32.xlu0 %v2811
        %v2813 = vpop.xlane.xlu0 %2812
        %v2814 = vmul.f32 %v2813, %v607
        %v2815 = vadd.f32 %v2814, 1e-05
        %v2816 = vrsqrt.pop %v2815
        %v2817 = vmul.f32 %v2809, %v2816
        %v2819 = vlaneseq
        %v2820 = vshrl.u32 %v2819, 7
        %v2821 = vsub.s32 0, %v2820
        %v2822 = vrot.slane %v2803, %v2821
        %v2824 = vmul.f32 %v2817, %v2822
        %v2826 = vlaneseq
        %v2827 = vshrl.u32 %v2826, 7
        %v2828 = vsub.s32 0, %v2827
        %v2829 = vrot.slane %v2804, %v2828
        %v2831 = vadd.f32 %v2824, %v2829
        %2832 = vst.msk [vmem:[%s587] sm:$0xff] %vm603, %v2831
        %s2833 = sand.u32 %s410, 1
        %s2834 = scalar_lea.sflag [#allocation4], %s2833
        %s2835 = sand.u32 %s410, 1
        %s2836 = smul.addr %s2835, 8
        %s2837 = scalar_lea.vmem [#allocation7], %s2836
        // Predicated region
        $region97: #{tpu_custom_call.1} parent=87 // pred_check
          %p2838 = pneg %p420
        $region98: #{tpu_custom_call.1} parent=87 // pred_check_branch
          %2840 = sbr.rel (%p2838) target = $region100
        $region99: #{tpu_custom_call.1} parent=87 // pred_region
          %s2842 = ssub.s32 128, 128
          %2843 = vsyncadd %s2834, %s2842
          %s2844 = smul.addr %s35, 128
          %s2845 = scalar_lea.hbm %s17, %s2844
          %s2847 = sshll.u32 %s2837, 4
          %s2848 = int_to_ptr.vmem [resolvable:$true] %s2847
          %2850 = dma.vmem_to_hbm [thread:$0]  %s2848, 128, %s2845, %s2834
        $region100: #{tpu_custom_call.1} parent=87 // pred_fallthru
          _
      $region88: #{tpu_custom_call.1} parent=5 // pred_fallthru
        _
      %p2851 = scmp.le.s32.totalorder 2, %s30
      // Predicated region
      $region101: #{tpu_custom_call.1} parent=5 // pred_check
        %p2852 = pneg %p2851
      $region102: #{tpu_custom_call.1} parent=5 // pred_check_branch
        %2854 = sbr.rel (%p2852) target = $region104
      $region103: #{tpu_custom_call.1} parent=5 // pred_region
        %s2855 = ssub.s32 %s30, 2
        // Predicated region
        $region105: #{tpu_custom_call.1} parent=103 // pred_check
          %p2856 = pneg %p426
        $region106: #{tpu_custom_call.1} parent=103 // pred_check_branch
          %2858 = sbr.rel (%p2856) target = $region108
        $region107: #{tpu_custom_call.1} parent=103 // pred_region
          %s2859 = sand.u32 %s411, 1
          %s2860 = scalar_lea.sflag [#allocation4], %s2859
          %s2861 = sand.u32 %s411, 1
          %s2862 = smul.addr %s2861, 8
          %s2863 = scalar_lea.vmem [#allocation7], %s2862
          %2864 = dma.done %s2860, 128
        $region108: #{tpu_custom_call.1} parent=103 // pred_fallthru
          _
      $region104: #{tpu_custom_call.1} parent=5 // pred_fallthru
        _
    $region6: #{tpu_custom_call.1} parent=1 // loop_footer
      %s34 = sadd.s32 1, %s30
    $region7: #{tpu_custom_call.1} parent=1 // loop_footer_branch
      %29 = sbr.rel target = $region3
    $region8: #{tpu_custom_call.1} parent=1 // loop_exit
      _
    %2865 = vsyncpa [#allocation3], 1
    %s2866 = scalar_lea.sflag [#allocation3], 1
    %2867 = vsyncpa %s2866, 1
    %2868 = vsyncpa [#allocation6], 1
    %2869 = vsyncpa [#allocation4], 1
    %s2870 = scalar_lea.sflag [#allocation4], 1
    %2871 = vsyncpa %s2870, 1

</llo_original>
